<compile_context>
chip_gen: v7x
topology: tpu7x:2x2x1
jax: 0.10.0
libtpu: 0.0.40
codegen_flags: <defaults>
</compile_context>

<pallas_src>
import jax
import jax.numpy as jnp
from jax.experimental import pallas as pl
from jax.experimental.pallas import tpu as pltpu

LANE = 128      # lane width (last dim)
SUBLANE = 8     # sublane width (second-to-last dim)


def _round_up(x, m):
    return (x + m - 1) // m * m


# ----------------------------------------------------------------------------
# Fused Pallas kernel: all GRU layers + final Linear in one call.
# ----------------------------------------------------------------------------
def make_fused_gru_kernel(num_layers, T, Bp, Hp):
    H3 = 3 * Hp

    def kernel(*refs):
        # refs = (x, [wih, whh, b_i, b_hn] * L, fc_w, fc_b, out, seq_scr, iall_scr)
        x_ref = refs[0]
        layers = [refs[1 + 4 * l: 5 + 4 * l] for l in range(num_layers)]
        fcw_ref = refs[1 + 4 * num_layers]
        fcb_ref = refs[2 + 4 * num_layers]
        o_ref = refs[3 + 4 * num_layers]
        seq_ref = refs[4 + 4 * num_layers]    # (T*Bp, Hp)  layer-output sequence
        iall_ref = refs[5 + 4 * num_layers]   # (T*Bp, 3Hp) hoisted input projection

        h_last = None
        for l, (wih_ref, whh_ref, bi_ref, bhn_ref) in enumerate(layers):
            inp_ref = x_ref if l == 0 else seq_ref

            # Hoisted input-to-hidden projection for the whole sequence:
            # one (T*Bp, D) x (D, 3Hp) MXU matmul instead of 3*T tiny ones.
            iall_ref[...] = (
                jnp.dot(inp_ref[...], wih_ref[...],
                        preferred_element_type=jnp.float32)
                + bi_ref[...]
            )

            whh = whh_ref[...]          # (Hp, 3Hp), loaded once per layer
            b_hn = bhn_ref[...]         # (1, Hp)
            write_seq = l < num_layers - 1

            def step(t, h, whh=whh, b_hn=b_hn, write_seq=write_seq):
                row = pl.multiple_of(t * Bp, Bp)
                i_t = iall_ref[pl.ds(row, Bp), :]                     # (Bp, 3Hp)
                hh = jnp.dot(h, whh, preferred_element_type=jnp.float32)
                r = jax.nn.sigmoid(i_t[:, 0:Hp] + hh[:, 0:Hp])
                z = jax.nn.sigmoid(i_t[:, Hp:2 * Hp] + hh[:, Hp:2 * Hp])
                n = jnp.tanh(i_t[:, 2 * Hp:H3] + r * (hh[:, 2 * Hp:H3] + b_hn))
                h_new = (1.0 - z) * n + z * h
                if write_seq:
                    seq_ref[pl.ds(row, Bp), :] = h_new
                return h_new

            h0 = jnp.zeros((Bp, Hp), jnp.float32)
            h_last = jax.lax.fori_loop(0, T, step, h0, unroll=True)

        # Final Linear(hidden, n_class) fused into the same kernel.
        o_ref[...] = (
            jnp.dot(h_last, fcw_ref[...], preferred_element_type=jnp.float32)
            + fcb_ref[...]
        ).astype(o_ref.dtype)

    return kernel


# ----------------------------------------------------------------------------
# Parameter preparation: pad to lane-dense layout, fuse gates, fold biases.
# ----------------------------------------------------------------------------
def _prepare_params(params):
    H = params["gru"][0]["whh"].shape[-1]
    Hp = _round_up(H, LANE)
    flat = []
    for layer in params["gru"]:
        in_dim = layer["wih"].shape[1]
        Dp = _round_up(in_dim, LANE)
        wih = jnp.pad(layer["wih"], ((0, 0), (0, Dp - in_dim), (0, Hp - H)))
        wih = jnp.transpose(wih, (1, 0, 2)).reshape(Dp, 3 * Hp)       # (Dp, 3Hp)
        whh = jnp.pad(layer["whh"], ((0, 0), (0, Hp - H), (0, Hp - H)))
        whh = jnp.transpose(whh, (1, 0, 2)).reshape(Hp, 3 * Hp)       # (Hp, 3Hp)
        bih = jnp.pad(layer["bih"], ((0, 0), (0, 0), (0, Hp - H)))    # (3, 1, Hp)
        bhh = jnp.pad(layer["bhh"], ((0, 0), (0, 0), (0, Hp - H)))    # (3, 1, Hp)
        # Fold bhh_r / bhh_z into the hoisted input bias; keep bhh_n separate
        # (it must stay inside the r-scaled term).
        b_i = (bih + bhh.at[2].set(0.0)).transpose(1, 0, 2).reshape(1, 3 * Hp)
        b_hn = bhh[2]                                                 # (1, Hp)
        flat += [wih, whh, b_i, b_hn]
    C = params["fc_w"].shape[-1]
    Cp = _round_up(C, LANE)
    fc_w = jnp.pad(params["fc_w"], ((0, Hp - H), (0, Cp - C)))
    fc_b = jnp.pad(params["fc_b"], ((0, 0), (0, Cp - C)))
    flat += [fc_w, fc_b]
    return flat, Hp, Cp


# ----------------------------------------------------------------------------
# Forward wrapper
# ----------------------------------------------------------------------------
@jax.jit
def gru_forward(x_btd, params):
    """Equivalent of GRU.forward(input) with the module in eval mode.

    x_btd: (B, T, D) batch_first input (matches nn.GRU(batch_first=True)).
    """
    # TODO(synk): nn.Dropout in train mode draws random masks; eval-mode
    # identity is used here (inference semantics).
    B, T, D = x_btd.shape
    num_layers = len(params["gru"])
    C = params["fc_w"].shape[-1]

    Bp = _round_up(B, SUBLANE)
    Dp = _round_up(D, LANE)
    flat_w, Hp, Cp = _prepare_params(params)

    x = jnp.transpose(x_btd, (1, 0, 2)).astype(jnp.float32)          # (T, B, D)
    x = jnp.pad(x, ((0, 0), (0, Bp - B), (0, Dp - D)))
    x = x.reshape(T * Bp, Dp)                                        # time-major, flat

    kernel = make_fused_gru_kernel(num_layers, T, Bp, Hp)
    out_p = pl.pallas_call(
        kernel,
        out_shape=jax.ShapeDtypeStruct((Bp, Cp), jnp.float32),
        scratch_shapes=[
            pltpu.VMEM((T * Bp, Hp), jnp.float32),       # per-layer output sequence
            pltpu.VMEM((T * Bp, 3 * Hp), jnp.float32),   # hoisted input projection
        ],
    )(x, *flat_w)
    return out_p[:B, :C]


# ----------------------------------------------------------------------------
# Deterministic parameter construction (PyTorch-style shapes & init scale)
# ----------------------------------------------------------------------------
def init_params(key, input_size, hidden_size, num_layers, n_class):
    params = {"gru": []}
    scale = 1.0 / jnp.sqrt(hidden_size)
    for layer in range(num_layers):
        in_dim = input_size if layer == 0 else hidden_size
        key, k1, k2, k3, k4 = jax.random.split(key, 5)
        # PyTorch stores weight_ih_l{k}: (3H, in); we keep (3, in, H) gate-major (r, z, n).
        wih = jax.random.uniform(k1, (3, in_dim, hidden_size), jnp.float32, -scale, scale)
        whh = jax.random.uniform(k2, (3, hidden_size, hidden_size), jnp.float32, -scale, scale)
        bih = jax.random.uniform(k3, (3, 1, hidden_size), jnp.float32, -scale, scale)
        bhh = jax.random.uniform(k4, (3, 1, hidden_size), jnp.float32, -scale, scale)
        params["gru"].append({"wih": wih, "whh": whh, "bih": bih, "bhh": bhh})
    key, k5, k6 = jax.random.split(key, 3)
    fscale = 1.0 / jnp.sqrt(hidden_size)
    params["fc_w"] = jax.random.uniform(k5, (hidden_size, n_class), jnp.float32, -fscale, fscale)
    params["fc_b"] = jax.random.uniform(k6, (1, n_class), jnp.float32, -fscale, fscale)
    return params


# ----------------------------------------------------------------------------
# Pure-JAX reference (for correctness check)
# ----------------------------------------------------------------------------
def gru_reference(x_btd, params):
    x = jnp.transpose(x_btd, (1, 0, 2)).astype(jnp.float32)  # (T, B, D)
    for layer in params["gru"]:
        T, B, _ = x.shape
        H = layer["wih"].shape[-1]
        h = jnp.zeros((B, H), jnp.float32)
        ys = []
        for t in range(T):
            xt = x[t]
            i_r = xt @ layer["wih"][0] + layer["bih"][0]
            i_z = xt @ layer["wih"][1] + layer["bih"][1]
            i_n = xt @ layer["wih"][2] + layer["bih"][2]
            h_r = h @ layer["whh"][0] + layer["bhh"][0]
            h_z = h @ layer["whh"][1] + layer["bhh"][1]
            h_n = h @ layer["whh"][2] + layer["bhh"][2]
            r = jax.nn.sigmoid(i_r + h_r)
            z = jax.nn.sigmoid(i_z + h_z)
            n = jnp.tanh(i_n + r * h_n)
            h = (1.0 - z) * n + z * h
            ys.append(h)
        x = jnp.stack(ys, axis=0)
    return x[-1] @ params["fc_w"] + params["fc_b"]


if __name__ == "__main__":
    # Small shapes consistent with the module's forward:
    # batch=2, seq_len=8, input_size=16, hidden_size=32, num_layers=2, n_class=2
    B, T, D, H, L, C = 2, 8, 16, 32, 2, 2

    key = jax.random.PRNGKey(0)
    key, kx, kp = jax.random.split(key, 3)
    x = jax.random.normal(kx, (B, T, D), jnp.float32)
    params = init_params(kp, D, H, L, C)

    out = gru_forward(x, params)
    out = jax.block_until_ready(out)
    assert out.shape == (B, C), out.shape

    ref = gru_reference(x, params)
    assert jnp.allclose(out, ref, atol=1e-3, rtol=1e-3), (out, ref)

    print("KERNEL_OK")
</pallas_src>

<mosaic_0001>
module attributes {stable_mosaic.version = 11 : i64} {
  func.func @kernel(%arg0: memref<64x128xf32, #tpu.memory_space<vmem>>, %arg1: memref<128x384xf32, #tpu.memory_space<vmem>>, %arg2: memref<128x384xf32, #tpu.memory_space<vmem>>, %arg3: memref<1x384xf32, #tpu.memory_space<vmem>>, %arg4: memref<1x128xf32, #tpu.memory_space<vmem>>, %arg5: memref<128x384xf32, #tpu.memory_space<vmem>>, %arg6: memref<128x384xf32, #tpu.memory_space<vmem>>, %arg7: memref<1x384xf32, #tpu.memory_space<vmem>>, %arg8: memref<1x128xf32, #tpu.memory_space<vmem>>, %arg9: memref<128x128xf32, #tpu.memory_space<vmem>>, %arg10: memref<1x128xf32, #tpu.memory_space<vmem>>, %arg11: memref<8x128xf32, #tpu.memory_space<vmem>>, %arg12: memref<64x128xf32, #tpu.memory_space<vmem>>, %arg13: memref<64x384xf32, #tpu.memory_space<vmem>>) attributes {dimension_semantics = [], scalar_prefetch = 0 : i64, scratch_operands = 2 : i64, tpu.core_type = #tpu.core_type<tc>} {
    %c0 = arith.constant 0 : index
    %c0_0 = arith.constant 0 : index
    %0 = vector.load %arg0[%c0, %c0_0] : memref<64x128xf32, #tpu.memory_space<vmem>>, vector<64x128xf32>
    %c0_1 = arith.constant 0 : index
    %c0_2 = arith.constant 0 : index
    %1 = vector.load %arg1[%c0_1, %c0_2] : memref<128x384xf32, #tpu.memory_space<vmem>>, vector<128x384xf32>
    %cst = arith.constant dense<0.000000e+00> : vector<64x384xf32>
    %2 = tpu.matmul %0, %1, %cst {dimension_numbers = #tpu.dot_dimension_numbers<[1], [0], [0], [1], [0, 0, 1, 1], [], []>} : vector<64x128xf32>, vector<128x384xf32>, vector<64x384xf32> -> vector<64x384xf32>
    %c0_3 = arith.constant 0 : index
    %c0_4 = arith.constant 0 : index
    %3 = vector.load %arg3[%c0_3, %c0_4] : memref<1x384xf32, #tpu.memory_space<vmem>>, vector<1x384xf32>
    %4 = vector.broadcast %3 : vector<1x384xf32> to vector<64x384xf32>
    %5 = arith.addf %2, %4 : vector<64x384xf32>
    %c0_5 = arith.constant 0 : index
    %c0_6 = arith.constant 0 : index
    %6 = vector.load %arg13[%c0_5, %c0_6] : memref<64x384xf32, #tpu.memory_space<vmem>>, vector<64x384xf32>
    tpu.vector_store %arg13[%c0_5, %c0_6], %5 {strides = array<i32>} : memref<64x384xf32, #tpu.memory_space<vmem>>, vector<64x384xf32>,
    %c0_7 = arith.constant 0 : index
    %c0_8 = arith.constant 0 : index
    %7 = vector.load %arg2[%c0_7, %c0_8] : memref<128x384xf32, #tpu.memory_space<vmem>>, vector<128x384xf32>
    %c0_9 = arith.constant 0 : index
    %c0_10 = arith.constant 0 : index
    %8 = vector.load %arg4[%c0_9, %c0_10] : memref<1x128xf32, #tpu.memory_space<vmem>>, vector<1x128xf32>
    %cst_11 = arith.constant 0.000000e+00 : f32
    %9 = vector.broadcast %cst_11 : f32 to vector<8x128xf32>
    %c0_i32 = arith.constant 0 : i32
    %c8_i32 = arith.constant 8 : i32
    %10 = arith.muli %c0_i32, %c8_i32 : i32
    %11 = tpu.assume_multiple %10, 8 : i32
    %12 = arith.index_cast %11 : i32 to index
    %c0_12 = arith.constant 0 : index
    %13 = vector.load %arg13[%12, %c0_12] : memref<64x384xf32, #tpu.memory_space<vmem>>, vector<8x384xf32>
    %cst_13 = arith.constant dense<0.000000e+00> : vector<8x384xf32>
    %14 = tpu.matmul %9, %7, %cst_13 {dimension_numbers = #tpu.dot_dimension_numbers<[1], [0], [0], [1], [0, 0, 1, 1], [], []>} : vector<8x128xf32>, vector<128x384xf32>, vector<8x384xf32> -> vector<8x384xf32>
    %15 = vector.extract_strided_slice %13 {offsets = [0, 0], sizes = [8, 128], strides = [1, 1]} : vector<8x384xf32> to vector<8x128xf32>
    %16 = vector.extract_strided_slice %14 {offsets = [0, 0], sizes = [8, 128], strides = [1, 1]} : vector<8x384xf32> to vector<8x128xf32>
    %17 = arith.addf %15, %16 : vector<8x128xf32>
    %18 = arith.negf %17 : vector<8x128xf32>
    %19 = math.exp %18 : vector<8x128xf32>
    %cst_14 = arith.constant 1.000000e+00 : f32
    %20 = vector.broadcast %cst_14 : f32 to vector<8x128xf32>
    %21 = arith.addf %20, %19 : vector<8x128xf32>
    %22 = arith.divf %20, %21 : vector<8x128xf32>
    %23 = vector.extract_strided_slice %13 {offsets = [0, 128], sizes = [8, 128], strides = [1, 1]} : vector<8x384xf32> to vector<8x128xf32>
    %24 = vector.extract_strided_slice %14 {offsets = [0, 128], sizes = [8, 128], strides = [1, 1]} : vector<8x384xf32> to vector<8x128xf32>
    %25 = arith.addf %23, %24 : vector<8x128xf32>
    %26 = arith.negf %25 : vector<8x128xf32>
    %27 = math.exp %26 : vector<8x128xf32>
    %cst_15 = arith.constant 1.000000e+00 : f32
    %28 = vector.broadcast %cst_15 : f32 to vector<8x128xf32>
    %29 = arith.addf %28, %27 : vector<8x128xf32>
    %30 = arith.divf %28, %29 : vector<8x128xf32>
    %31 = vector.extract_strided_slice %13 {offsets = [0, 256], sizes = [8, 128], strides = [1, 1]} : vector<8x384xf32> to vector<8x128xf32>
    %32 = vector.extract_strided_slice %14 {offsets = [0, 256], sizes = [8, 128], strides = [1, 1]} : vector<8x384xf32> to vector<8x128xf32>
    %33 = vector.broadcast %8 : vector<1x128xf32> to vector<8x128xf32>
    %34 = arith.addf %32, %33 : vector<8x128xf32>
    %35 = arith.mulf %22, %34 : vector<8x128xf32>
    %36 = arith.addf %31, %35 : vector<8x128xf32>
    %37 = math.tanh %36 : vector<8x128xf32>
    %cst_16 = arith.constant 1.000000e+00 : f32
    %38 = vector.broadcast %cst_16 : f32 to vector<8x128xf32>
    %39 = arith.subf %38, %30 : vector<8x128xf32>
    %40 = arith.mulf %39, %37 : vector<8x128xf32>
    %41 = arith.mulf %30, %9 : vector<8x128xf32>
    %42 = arith.addf %40, %41 : vector<8x128xf32>
    %43 = arith.index_cast %11 : i32 to index
    %c0_17 = arith.constant 0 : index
    %44 = vector.load %arg12[%43, %c0_17] : memref<64x128xf32, #tpu.memory_space<vmem>>, vector<8x128xf32>
    tpu.vector_store %arg12[%43, %c0_17], %42 {strides = array<i32>} : memref<64x128xf32, #tpu.memory_space<vmem>>, vector<8x128xf32>,
    %c1_i32 = arith.constant 1 : i32
    %c8_i32_18 = arith.constant 8 : i32
    %45 = arith.muli %c1_i32, %c8_i32_18 : i32
    %46 = tpu.assume_multiple %45, 8 : i32
    %47 = arith.index_cast %46 : i32 to index
    %c0_19 = arith.constant 0 : index
    %48 = vector.load %arg13[%47, %c0_19] : memref<64x384xf32, #tpu.memory_space<vmem>>, vector<8x384xf32>
    %cst_20 = arith.constant dense<0.000000e+00> : vector<8x384xf32>
    %49 = tpu.matmul %42, %7, %cst_20 {dimension_numbers = #tpu.dot_dimension_numbers<[1], [0], [0], [1], [0, 0, 1, 1], [], []>} : vector<8x128xf32>, vector<128x384xf32>, vector<8x384xf32> -> vector<8x384xf32>
    %50 = vector.extract_strided_slice %48 {offsets = [0, 0], sizes = [8, 128], strides = [1, 1]} : vector<8x384xf32> to vector<8x128xf32>
    %51 = vector.extract_strided_slice %49 {offsets = [0, 0], sizes = [8, 128], strides = [1, 1]} : vector<8x384xf32> to vector<8x128xf32>
    %52 = arith.addf %50, %51 : vector<8x128xf32>
    %53 = arith.negf %52 : vector<8x128xf32>
    %54 = math.exp %53 : vector<8x128xf32>
    %cst_21 = arith.constant 1.000000e+00 : f32
    %55 = vector.broadcast %cst_21 : f32 to vector<8x128xf32>
    %56 = arith.addf %55, %54 : vector<8x128xf32>
    %57 = arith.divf %55, %56 : vector<8x128xf32>
    %58 = vector.extract_strided_slice %48 {offsets = [0, 128], sizes = [8, 128], strides = [1, 1]} : vector<8x384xf32> to vector<8x128xf32>
    %59 = vector.extract_strided_slice %49 {offsets = [0, 128], sizes = [8, 128], strides = [1, 1]} : vector<8x384xf32> to vector<8x128xf32>
    %60 = arith.addf %58, %59 : vector<8x128xf32>
    %61 = arith.negf %60 : vector<8x128xf32>
    %62 = math.exp %61 : vector<8x128xf32>
    %cst_22 = arith.constant 1.000000e+00 : f32
    %63 = vector.broadcast %cst_22 : f32 to vector<8x128xf32>
    %64 = arith.addf %63, %62 : vector<8x128xf32>
    %65 = arith.divf %63, %64 : vector<8x128xf32>
    %66 = vector.extract_strided_slice %48 {offsets = [0, 256], sizes = [8, 128], strides = [1, 1]} : vector<8x384xf32> to vector<8x128xf32>
    %67 = vector.extract_strided_slice %49 {offsets = [0, 256], sizes = [8, 128], strides = [1, 1]} : vector<8x384xf32> to vector<8x128xf32>
    %68 = vector.broadcast %8 : vector<1x128xf32> to vector<8x128xf32>
    %69 = arith.addf %67, %68 : vector<8x128xf32>
    %70 = arith.mulf %57, %69 : vector<8x128xf32>
    %71 = arith.addf %66, %70 : vector<8x128xf32>
    %72 = math.tanh %71 : vector<8x128xf32>
    %cst_23 = arith.constant 1.000000e+00 : f32
    %73 = vector.broadcast %cst_23 : f32 to vector<8x128xf32>
    %74 = arith.subf %73, %65 : vector<8x128xf32>
    %75 = arith.mulf %74, %72 : vector<8x128xf32>
    %76 = arith.mulf %65, %42 : vector<8x128xf32>
    %77 = arith.addf %75, %76 : vector<8x128xf32>
    %78 = arith.index_cast %46 : i32 to index
    %c0_24 = arith.constant 0 : index
    %79 = vector.load %arg12[%78, %c0_24] : memref<64x128xf32, #tpu.memory_space<vmem>>, vector<8x128xf32>
    tpu.vector_store %arg12[%78, %c0_24], %77 {strides = array<i32>} : memref<64x128xf32, #tpu.memory_space<vmem>>, vector<8x128xf32>,
    %c2_i32 = arith.constant 2 : i32
    %c8_i32_25 = arith.constant 8 : i32
    %80 = arith.muli %c2_i32, %c8_i32_25 : i32
    %81 = tpu.assume_multiple %80, 8 : i32
    %82 = arith.index_cast %81 : i32 to index
    %c0_26 = arith.constant 0 : index
    %83 = vector.load %arg13[%82, %c0_26] : memref<64x384xf32, #tpu.memory_space<vmem>>, vector<8x384xf32>
    %cst_27 = arith.constant dense<0.000000e+00> : vector<8x384xf32>
    %84 = tpu.matmul %77, %7, %cst_27 {dimension_numbers = #tpu.dot_dimension_numbers<[1], [0], [0], [1], [0, 0, 1, 1], [], []>} : vector<8x128xf32>, vector<128x384xf32>, vector<8x384xf32> -> vector<8x384xf32>
    %85 = vector.extract_strided_slice %83 {offsets = [0, 0], sizes = [8, 128], strides = [1, 1]} : vector<8x384xf32> to vector<8x128xf32>
    %86 = vector.extract_strided_slice %84 {offsets = [0, 0], sizes = [8, 128], strides = [1, 1]} : vector<8x384xf32> to vector<8x128xf32>
    %87 = arith.addf %85, %86 : vector<8x128xf32>
    %88 = arith.negf %87 : vector<8x128xf32>
    %89 = math.exp %88 : vector<8x128xf32>
    %cst_28 = arith.constant 1.000000e+00 : f32
    %90 = vector.broadcast %cst_28 : f32 to vector<8x128xf32>
    %91 = arith.addf %90, %89 : vector<8x128xf32>
    %92 = arith.divf %90, %91 : vector<8x128xf32>
    %93 = vector.extract_strided_slice %83 {offsets = [0, 128], sizes = [8, 128], strides = [1, 1]} : vector<8x384xf32> to vector<8x128xf32>
    %94 = vector.extract_strided_slice %84 {offsets = [0, 128], sizes = [8, 128], strides = [1, 1]} : vector<8x384xf32> to vector<8x128xf32>
    %95 = arith.addf %93, %94 : vector<8x128xf32>
    %96 = arith.negf %95 : vector<8x128xf32>
    %97 = math.exp %96 : vector<8x128xf32>
    %cst_29 = arith.constant 1.000000e+00 : f32
    %98 = vector.broadcast %cst_29 : f32 to vector<8x128xf32>
    %99 = arith.addf %98, %97 : vector<8x128xf32>
    %100 = arith.divf %98, %99 : vector<8x128xf32>
    %101 = vector.extract_strided_slice %83 {offsets = [0, 256], sizes = [8, 128], strides = [1, 1]} : vector<8x384xf32> to vector<8x128xf32>
    %102 = vector.extract_strided_slice %84 {offsets = [0, 256], sizes = [8, 128], strides = [1, 1]} : vector<8x384xf32> to vector<8x128xf32>
    %103 = vector.broadcast %8 : vector<1x128xf32> to vector<8x128xf32>
    %104 = arith.addf %102, %103 : vector<8x128xf32>
    %105 = arith.mulf %92, %104 : vector<8x128xf32>
    %106 = arith.addf %101, %105 : vector<8x128xf32>
    %107 = math.tanh %106 : vector<8x128xf32>
    %cst_30 = arith.constant 1.000000e+00 : f32
    %108 = vector.broadcast %cst_30 : f32 to vector<8x128xf32>
    %109 = arith.subf %108, %100 : vector<8x128xf32>
    %110 = arith.mulf %109, %107 : vector<8x128xf32>
    %111 = arith.mulf %100, %77 : vector<8x128xf32>
    %112 = arith.addf %110, %111 : vector<8x128xf32>
    %113 = arith.index_cast %81 : i32 to index
    %c0_31 = arith.constant 0 : index
    %114 = vector.load %arg12[%113, %c0_31] : memref<64x128xf32, #tpu.memory_space<vmem>>, vector<8x128xf32>
    tpu.vector_store %arg12[%113, %c0_31], %112 {strides = array<i32>} : memref<64x128xf32, #tpu.memory_space<vmem>>, vector<8x128xf32>,
    %c3_i32 = arith.constant 3 : i32
    %c8_i32_32 = arith.constant 8 : i32
    %115 = arith.muli %c3_i32, %c8_i32_32 : i32
    %116 = tpu.assume_multiple %115, 8 : i32
    %117 = arith.index_cast %116 : i32 to index
    %c0_33 = arith.constant 0 : index
    %118 = vector.load %arg13[%117, %c0_33] : memref<64x384xf32, #tpu.memory_space<vmem>>, vector<8x384xf32>
    %cst_34 = arith.constant dense<0.000000e+00> : vector<8x384xf32>
    %119 = tpu.matmul %112, %7, %cst_34 {dimension_numbers = #tpu.dot_dimension_numbers<[1], [0], [0], [1], [0, 0, 1, 1], [], []>} : vector<8x128xf32>, vector<128x384xf32>, vector<8x384xf32> -> vector<8x384xf32>
    %120 = vector.extract_strided_slice %118 {offsets = [0, 0], sizes = [8, 128], strides = [1, 1]} : vector<8x384xf32> to vector<8x128xf32>
    %121 = vector.extract_strided_slice %119 {offsets = [0, 0], sizes = [8, 128], strides = [1, 1]} : vector<8x384xf32> to vector<8x128xf32>
    %122 = arith.addf %120, %121 : vector<8x128xf32>
    %123 = arith.negf %122 : vector<8x128xf32>
    %124 = math.exp %123 : vector<8x128xf32>
    %cst_35 = arith.constant 1.000000e+00 : f32
    %125 = vector.broadcast %cst_35 : f32 to vector<8x128xf32>
    %126 = arith.addf %125, %124 : vector<8x128xf32>
    %127 = arith.divf %125, %126 : vector<8x128xf32>
    %128 = vector.extract_strided_slice %118 {offsets = [0, 128], sizes = [8, 128], strides = [1, 1]} : vector<8x384xf32> to vector<8x128xf32>
    %129 = vector.extract_strided_slice %119 {offsets = [0, 128], sizes = [8, 128], strides = [1, 1]} : vector<8x384xf32> to vector<8x128xf32>
    %130 = arith.addf %128, %129 : vector<8x128xf32>
    %131 = arith.negf %130 : vector<8x128xf32>
    %132 = math.exp %131 : vector<8x128xf32>
    %cst_36 = arith.constant 1.000000e+00 : f32
    %133 = vector.broadcast %cst_36 : f32 to vector<8x128xf32>
    %134 = arith.addf %133, %132 : vector<8x128xf32>
    %135 = arith.divf %133, %134 : vector<8x128xf32>
    %136 = vector.extract_strided_slice %118 {offsets = [0, 256], sizes = [8, 128], strides = [1, 1]} : vector<8x384xf32> to vector<8x128xf32>
    %137 = vector.extract_strided_slice %119 {offsets = [0, 256], sizes = [8, 128], strides = [1, 1]} : vector<8x384xf32> to vector<8x128xf32>
    %138 = vector.broadcast %8 : vector<1x128xf32> to vector<8x128xf32>
    %139 = arith.addf %137, %138 : vector<8x128xf32>
    %140 = arith.mulf %127, %139 : vector<8x128xf32>
    %141 = arith.addf %136, %140 : vector<8x128xf32>
    %142 = math.tanh %141 : vector<8x128xf32>
    %cst_37 = arith.constant 1.000000e+00 : f32
    %143 = vector.broadcast %cst_37 : f32 to vector<8x128xf32>
    %144 = arith.subf %143, %135 : vector<8x128xf32>
    %145 = arith.mulf %144, %142 : vector<8x128xf32>
    %146 = arith.mulf %135, %112 : vector<8x128xf32>
    %147 = arith.addf %145, %146 : vector<8x128xf32>
    %148 = arith.index_cast %116 : i32 to index
    %c0_38 = arith.constant 0 : index
    %149 = vector.load %arg12[%148, %c0_38] : memref<64x128xf32, #tpu.memory_space<vmem>>, vector<8x128xf32>
    tpu.vector_store %arg12[%148, %c0_38], %147 {strides = array<i32>} : memref<64x128xf32, #tpu.memory_space<vmem>>, vector<8x128xf32>,
    %c4_i32 = arith.constant 4 : i32
    %c8_i32_39 = arith.constant 8 : i32
    %150 = arith.muli %c4_i32, %c8_i32_39 : i32
    %151 = tpu.assume_multiple %150, 8 : i32
    %152 = arith.index_cast %151 : i32 to index
    %c0_40 = arith.constant 0 : index
    %153 = vector.load %arg13[%152, %c0_40] : memref<64x384xf32, #tpu.memory_space<vmem>>, vector<8x384xf32>
    %cst_41 = arith.constant dense<0.000000e+00> : vector<8x384xf32>
    %154 = tpu.matmul %147, %7, %cst_41 {dimension_numbers = #tpu.dot_dimension_numbers<[1], [0], [0], [1], [0, 0, 1, 1], [], []>} : vector<8x128xf32>, vector<128x384xf32>, vector<8x384xf32> -> vector<8x384xf32>
    %155 = vector.extract_strided_slice %153 {offsets = [0, 0], sizes = [8, 128], strides = [1, 1]} : vector<8x384xf32> to vector<8x128xf32>
    %156 = vector.extract_strided_slice %154 {offsets = [0, 0], sizes = [8, 128], strides = [1, 1]} : vector<8x384xf32> to vector<8x128xf32>
    %157 = arith.addf %155, %156 : vector<8x128xf32>
    %158 = arith.negf %157 : vector<8x128xf32>
    %159 = math.exp %158 : vector<8x128xf32>
    %cst_42 = arith.constant 1.000000e+00 : f32
    %160 = vector.broadcast %cst_42 : f32 to vector<8x128xf32>
    %161 = arith.addf %160, %159 : vector<8x128xf32>
    %162 = arith.divf %160, %161 : vector<8x128xf32>
    %163 = vector.extract_strided_slice %153 {offsets = [0, 128], sizes = [8, 128], strides = [1, 1]} : vector<8x384xf32> to vector<8x128xf32>
    %164 = vector.extract_strided_slice %154 {offsets = [0, 128], sizes = [8, 128], strides = [1, 1]} : vector<8x384xf32> to vector<8x128xf32>
    %165 = arith.addf %163, %164 : vector<8x128xf32>
    %166 = arith.negf %165 : vector<8x128xf32>
    %167 = math.exp %166 : vector<8x128xf32>
    %cst_43 = arith.constant 1.000000e+00 : f32
    %168 = vector.broadcast %cst_43 : f32 to vector<8x128xf32>
    %169 = arith.addf %168, %167 : vector<8x128xf32>
    %170 = arith.divf %168, %169 : vector<8x128xf32>
    %171 = vector.extract_strided_slice %153 {offsets = [0, 256], sizes = [8, 128], strides = [1, 1]} : vector<8x384xf32> to vector<8x128xf32>
    %172 = vector.extract_strided_slice %154 {offsets = [0, 256], sizes = [8, 128], strides = [1, 1]} : vector<8x384xf32> to vector<8x128xf32>
    %173 = vector.broadcast %8 : vector<1x128xf32> to vector<8x128xf32>
    %174 = arith.addf %172, %173 : vector<8x128xf32>
    %175 = arith.mulf %162, %174 : vector<8x128xf32>
    %176 = arith.addf %171, %175 : vector<8x128xf32>
    %177 = math.tanh %176 : vector<8x128xf32>
    %cst_44 = arith.constant 1.000000e+00 : f32
    %178 = vector.broadcast %cst_44 : f32 to vector<8x128xf32>
    %179 = arith.subf %178, %170 : vector<8x128xf32>
    %180 = arith.mulf %179, %177 : vector<8x128xf32>
    %181 = arith.mulf %170, %147 : vector<8x128xf32>
    %182 = arith.addf %180, %181 : vector<8x128xf32>
    %183 = arith.index_cast %151 : i32 to index
    %c0_45 = arith.constant 0 : index
    %184 = vector.load %arg12[%183, %c0_45] : memref<64x128xf32, #tpu.memory_space<vmem>>, vector<8x128xf32>
    tpu.vector_store %arg12[%183, %c0_45], %182 {strides = array<i32>} : memref<64x128xf32, #tpu.memory_space<vmem>>, vector<8x128xf32>,
    %c5_i32 = arith.constant 5 : i32
    %c8_i32_46 = arith.constant 8 : i32
    %185 = arith.muli %c5_i32, %c8_i32_46 : i32
    %186 = tpu.assume_multiple %185, 8 : i32
    %187 = arith.index_cast %186 : i32 to index
    %c0_47 = arith.constant 0 : index
    %188 = vector.load %arg13[%187, %c0_47] : memref<64x384xf32, #tpu.memory_space<vmem>>, vector<8x384xf32>
    %cst_48 = arith.constant dense<0.000000e+00> : vector<8x384xf32>
    %189 = tpu.matmul %182, %7, %cst_48 {dimension_numbers = #tpu.dot_dimension_numbers<[1], [0], [0], [1], [0, 0, 1, 1], [], []>} : vector<8x128xf32>, vector<128x384xf32>, vector<8x384xf32> -> vector<8x384xf32>
    %190 = vector.extract_strided_slice %188 {offsets = [0, 0], sizes = [8, 128], strides = [1, 1]} : vector<8x384xf32> to vector<8x128xf32>
    %191 = vector.extract_strided_slice %189 {offsets = [0, 0], sizes = [8, 128], strides = [1, 1]} : vector<8x384xf32> to vector<8x128xf32>
    %192 = arith.addf %190, %191 : vector<8x128xf32>
    %193 = arith.negf %192 : vector<8x128xf32>
    %194 = math.exp %193 : vector<8x128xf32>
    %cst_49 = arith.constant 1.000000e+00 : f32
    %195 = vector.broadcast %cst_49 : f32 to vector<8x128xf32>
    %196 = arith.addf %195, %194 : vector<8x128xf32>
    %197 = arith.divf %195, %196 : vector<8x128xf32>
    %198 = vector.extract_strided_slice %188 {offsets = [0, 128], sizes = [8, 128], strides = [1, 1]} : vector<8x384xf32> to vector<8x128xf32>
    %199 = vector.extract_strided_slice %189 {offsets = [0, 128], sizes = [8, 128], strides = [1, 1]} : vector<8x384xf32> to vector<8x128xf32>
    %200 = arith.addf %198, %199 : vector<8x128xf32>
    %201 = arith.negf %200 : vector<8x128xf32>
    %202 = math.exp %201 : vector<8x128xf32>
    %cst_50 = arith.constant 1.000000e+00 : f32
    %203 = vector.broadcast %cst_50 : f32 to vector<8x128xf32>
    %204 = arith.addf %203, %202 : vector<8x128xf32>
    %205 = arith.divf %203, %204 : vector<8x128xf32>
    %206 = vector.extract_strided_slice %188 {offsets = [0, 256], sizes = [8, 128], strides = [1, 1]} : vector<8x384xf32> to vector<8x128xf32>
    %207 = vector.extract_strided_slice %189 {offsets = [0, 256], sizes = [8, 128], strides = [1, 1]} : vector<8x384xf32> to vector<8x128xf32>
    %208 = vector.broadcast %8 : vector<1x128xf32> to vector<8x128xf32>
    %209 = arith.addf %207, %208 : vector<8x128xf32>
    %210 = arith.mulf %197, %209 : vector<8x128xf32>
    %211 = arith.addf %206, %210 : vector<8x128xf32>
    %212 = math.tanh %211 : vector<8x128xf32>
    %cst_51 = arith.constant 1.000000e+00 : f32
    %213 = vector.broadcast %cst_51 : f32 to vector<8x128xf32>
    %214 = arith.subf %213, %205 : vector<8x128xf32>
    %215 = arith.mulf %214, %212 : vector<8x128xf32>
    %216 = arith.mulf %205, %182 : vector<8x128xf32>
    %217 = arith.addf %215, %216 : vector<8x128xf32>
    %218 = arith.index_cast %186 : i32 to index
    %c0_52 = arith.constant 0 : index
    %219 = vector.load %arg12[%218, %c0_52] : memref<64x128xf32, #tpu.memory_space<vmem>>, vector<8x128xf32>
    tpu.vector_store %arg12[%218, %c0_52], %217 {strides = array<i32>} : memref<64x128xf32, #tpu.memory_space<vmem>>, vector<8x128xf32>,
    %c6_i32 = arith.constant 6 : i32
    %c8_i32_53 = arith.constant 8 : i32
    %220 = arith.muli %c6_i32, %c8_i32_53 : i32
    %221 = tpu.assume_multiple %220, 8 : i32
    %222 = arith.index_cast %221 : i32 to index
    %c0_54 = arith.constant 0 : index
    %223 = vector.load %arg13[%222, %c0_54] : memref<64x384xf32, #tpu.memory_space<vmem>>, vector<8x384xf32>
    %cst_55 = arith.constant dense<0.000000e+00> : vector<8x384xf32>
    %224 = tpu.matmul %217, %7, %cst_55 {dimension_numbers = #tpu.dot_dimension_numbers<[1], [0], [0], [1], [0, 0, 1, 1], [], []>} : vector<8x128xf32>, vector<128x384xf32>, vector<8x384xf32> -> vector<8x384xf32>
    %225 = vector.extract_strided_slice %223 {offsets = [0, 0], sizes = [8, 128], strides = [1, 1]} : vector<8x384xf32> to vector<8x128xf32>
    %226 = vector.extract_strided_slice %224 {offsets = [0, 0], sizes = [8, 128], strides = [1, 1]} : vector<8x384xf32> to vector<8x128xf32>
    %227 = arith.addf %225, %226 : vector<8x128xf32>
    %228 = arith.negf %227 : vector<8x128xf32>
    %229 = math.exp %228 : vector<8x128xf32>
    %cst_56 = arith.constant 1.000000e+00 : f32
    %230 = vector.broadcast %cst_56 : f32 to vector<8x128xf32>
    %231 = arith.addf %230, %229 : vector<8x128xf32>
    %232 = arith.divf %230, %231 : vector<8x128xf32>
    %233 = vector.extract_strided_slice %223 {offsets = [0, 128], sizes = [8, 128], strides = [1, 1]} : vector<8x384xf32> to vector<8x128xf32>
    %234 = vector.extract_strided_slice %224 {offsets = [0, 128], sizes = [8, 128], strides = [1, 1]} : vector<8x384xf32> to vector<8x128xf32>
    %235 = arith.addf %233, %234 : vector<8x128xf32>
    %236 = arith.negf %235 : vector<8x128xf32>
    %237 = math.exp %236 : vector<8x128xf32>
    %cst_57 = arith.constant 1.000000e+00 : f32
    %238 = vector.broadcast %cst_57 : f32 to vector<8x128xf32>
    %239 = arith.addf %238, %237 : vector<8x128xf32>
    %240 = arith.divf %238, %239 : vector<8x128xf32>
    %241 = vector.extract_strided_slice %223 {offsets = [0, 256], sizes = [8, 128], strides = [1, 1]} : vector<8x384xf32> to vector<8x128xf32>
    %242 = vector.extract_strided_slice %224 {offsets = [0, 256], sizes = [8, 128], strides = [1, 1]} : vector<8x384xf32> to vector<8x128xf32>
    %243 = vector.broadcast %8 : vector<1x128xf32> to vector<8x128xf32>
    %244 = arith.addf %242, %243 : vector<8x128xf32>
    %245 = arith.mulf %232, %244 : vector<8x128xf32>
    %246 = arith.addf %241, %245 : vector<8x128xf32>
    %247 = math.tanh %246 : vector<8x128xf32>
    %cst_58 = arith.constant 1.000000e+00 : f32
    %248 = vector.broadcast %cst_58 : f32 to vector<8x128xf32>
    %249 = arith.subf %248, %240 : vector<8x128xf32>
    %250 = arith.mulf %249, %247 : vector<8x128xf32>
    %251 = arith.mulf %240, %217 : vector<8x128xf32>
    %252 = arith.addf %250, %251 : vector<8x128xf32>
    %253 = arith.index_cast %221 : i32 to index
    %c0_59 = arith.constant 0 : index
    %254 = vector.load %arg12[%253, %c0_59] : memref<64x128xf32, #tpu.memory_space<vmem>>, vector<8x128xf32>
    tpu.vector_store %arg12[%253, %c0_59], %252 {strides = array<i32>} : memref<64x128xf32, #tpu.memory_space<vmem>>, vector<8x128xf32>,
    %c7_i32 = arith.constant 7 : i32
    %c8_i32_60 = arith.constant 8 : i32
    %255 = arith.muli %c7_i32, %c8_i32_60 : i32
    %256 = tpu.assume_multiple %255, 8 : i32
    %257 = arith.index_cast %256 : i32 to index
    %c0_61 = arith.constant 0 : index
    %258 = vector.load %arg13[%257, %c0_61] : memref<64x384xf32, #tpu.memory_space<vmem>>, vector<8x384xf32>
    %cst_62 = arith.constant dense<0.000000e+00> : vector<8x384xf32>
    %259 = tpu.matmul %252, %7, %cst_62 {dimension_numbers = #tpu.dot_dimension_numbers<[1], [0], [0], [1], [0, 0, 1, 1], [], []>} : vector<8x128xf32>, vector<128x384xf32>, vector<8x384xf32> -> vector<8x384xf32>
    %260 = vector.extract_strided_slice %258 {offsets = [0, 0], sizes = [8, 128], strides = [1, 1]} : vector<8x384xf32> to vector<8x128xf32>
    %261 = vector.extract_strided_slice %259 {offsets = [0, 0], sizes = [8, 128], strides = [1, 1]} : vector<8x384xf32> to vector<8x128xf32>
    %262 = arith.addf %260, %261 : vector<8x128xf32>
    %263 = arith.negf %262 : vector<8x128xf32>
    %264 = math.exp %263 : vector<8x128xf32>
    %cst_63 = arith.constant 1.000000e+00 : f32
    %265 = vector.broadcast %cst_63 : f32 to vector<8x128xf32>
    %266 = arith.addf %265, %264 : vector<8x128xf32>
    %267 = arith.divf %265, %266 : vector<8x128xf32>
    %268 = vector.extract_strided_slice %258 {offsets = [0, 128], sizes = [8, 128], strides = [1, 1]} : vector<8x384xf32> to vector<8x128xf32>
    %269 = vector.extract_strided_slice %259 {offsets = [0, 128], sizes = [8, 128], strides = [1, 1]} : vector<8x384xf32> to vector<8x128xf32>
    %270 = arith.addf %268, %269 : vector<8x128xf32>
    %271 = arith.negf %270 : vector<8x128xf32>
    %272 = math.exp %271 : vector<8x128xf32>
    %cst_64 = arith.constant 1.000000e+00 : f32
    %273 = vector.broadcast %cst_64 : f32 to vector<8x128xf32>
    %274 = arith.addf %273, %272 : vector<8x128xf32>
    %275 = arith.divf %273, %274 : vector<8x128xf32>
    %276 = vector.extract_strided_slice %258 {offsets = [0, 256], sizes = [8, 128], strides = [1, 1]} : vector<8x384xf32> to vector<8x128xf32>
    %277 = vector.extract_strided_slice %259 {offsets = [0, 256], sizes = [8, 128], strides = [1, 1]} : vector<8x384xf32> to vector<8x128xf32>
    %278 = vector.broadcast %8 : vector<1x128xf32> to vector<8x128xf32>
    %279 = arith.addf %277, %278 : vector<8x128xf32>
    %280 = arith.mulf %267, %279 : vector<8x128xf32>
    %281 = arith.addf %276, %280 : vector<8x128xf32>
    %282 = math.tanh %281 : vector<8x128xf32>
    %cst_65 = arith.constant 1.000000e+00 : f32
    %283 = vector.broadcast %cst_65 : f32 to vector<8x128xf32>
    %284 = arith.subf %283, %275 : vector<8x128xf32>
    %285 = arith.mulf %284, %282 : vector<8x128xf32>
    %286 = arith.mulf %275, %252 : vector<8x128xf32>
    %287 = arith.addf %285, %286 : vector<8x128xf32>
    %288 = arith.index_cast %256 : i32 to index
    %c0_66 = arith.constant 0 : index
    %289 = vector.load %arg12[%288, %c0_66] : memref<64x128xf32, #tpu.memory_space<vmem>>, vector<8x128xf32>
    tpu.vector_store %arg12[%288, %c0_66], %287 {strides = array<i32>} : memref<64x128xf32, #tpu.memory_space<vmem>>, vector<8x128xf32>,
    %c8_i32_67 = arith.constant 8 : i32
    %c0_68 = arith.constant 0 : index
    %c0_69 = arith.constant 0 : index
    %290 = vector.load %arg12[%c0_68, %c0_69] : memref<64x128xf32, #tpu.memory_space<vmem>>, vector<64x128xf32>
    %c0_70 = arith.constant 0 : index
    %c0_71 = arith.constant 0 : index
    %291 = vector.load %arg5[%c0_70, %c0_71] : memref<128x384xf32, #tpu.memory_space<vmem>>, vector<128x384xf32>
    %cst_72 = arith.constant dense<0.000000e+00> : vector<64x384xf32>
    %292 = tpu.matmul %290, %291, %cst_72 {dimension_numbers = #tpu.dot_dimension_numbers<[1], [0], [0], [1], [0, 0, 1, 1], [], []>} : vector<64x128xf32>, vector<128x384xf32>, vector<64x384xf32> -> vector<64x384xf32>
    %c0_73 = arith.constant 0 : index
    %c0_74 = arith.constant 0 : index
    %293 = vector.load %arg7[%c0_73, %c0_74] : memref<1x384xf32, #tpu.memory_space<vmem>>, vector<1x384xf32>
    %294 = vector.broadcast %293 : vector<1x384xf32> to vector<64x384xf32>
    %295 = arith.addf %292, %294 : vector<64x384xf32>
    %c0_75 = arith.constant 0 : index
    %c0_76 = arith.constant 0 : index
    %296 = vector.load %arg13[%c0_75, %c0_76] : memref<64x384xf32, #tpu.memory_space<vmem>>, vector<64x384xf32>
    tpu.vector_store %arg13[%c0_75, %c0_76], %295 {strides = array<i32>} : memref<64x384xf32, #tpu.memory_space<vmem>>, vector<64x384xf32>,
    %c0_77 = arith.constant 0 : index
    %c0_78 = arith.constant 0 : index
    %297 = vector.load %arg6[%c0_77, %c0_78] : memref<128x384xf32, #tpu.memory_space<vmem>>, vector<128x384xf32>
    %c0_79 = arith.constant 0 : index
    %c0_80 = arith.constant 0 : index
    %298 = vector.load %arg8[%c0_79, %c0_80] : memref<1x128xf32, #tpu.memory_space<vmem>>, vector<1x128xf32>
    %cst_81 = arith.constant 0.000000e+00 : f32
    %299 = vector.broadcast %cst_81 : f32 to vector<8x128xf32>
    %c0_i32_82 = arith.constant 0 : i32
    %c8_i32_83 = arith.constant 8 : i32
    %300 = arith.muli %c0_i32_82, %c8_i32_83 : i32
    %301 = tpu.assume_multiple %300, 8 : i32
    %302 = arith.index_cast %301 : i32 to index
    %c0_84 = arith.constant 0 : index
    %303 = vector.load %arg13[%302, %c0_84] : memref<64x384xf32, #tpu.memory_space<vmem>>, vector<8x384xf32>
    %cst_85 = arith.constant dense<0.000000e+00> : vector<8x384xf32>
    %304 = tpu.matmul %299, %297, %cst_85 {dimension_numbers = #tpu.dot_dimension_numbers<[1], [0], [0], [1], [0, 0, 1, 1], [], []>} : vector<8x128xf32>, vector<128x384xf32>, vector<8x384xf32> -> vector<8x384xf32>
    %305 = vector.extract_strided_slice %303 {offsets = [0, 0], sizes = [8, 128], strides = [1, 1]} : vector<8x384xf32> to vector<8x128xf32>
    %306 = vector.extract_strided_slice %304 {offsets = [0, 0], sizes = [8, 128], strides = [1, 1]} : vector<8x384xf32> to vector<8x128xf32>
    %307 = arith.addf %305, %306 : vector<8x128xf32>
    %308 = arith.negf %307 : vector<8x128xf32>
    %309 = math.exp %308 : vector<8x128xf32>
    %cst_86 = arith.constant 1.000000e+00 : f32
    %310 = vector.broadcast %cst_86 : f32 to vector<8x128xf32>
    %311 = arith.addf %310, %309 : vector<8x128xf32>
    %312 = arith.divf %310, %311 : vector<8x128xf32>
    %313 = vector.extract_strided_slice %303 {offsets = [0, 128], sizes = [8, 128], strides = [1, 1]} : vector<8x384xf32> to vector<8x128xf32>
    %314 = vector.extract_strided_slice %304 {offsets = [0, 128], sizes = [8, 128], strides = [1, 1]} : vector<8x384xf32> to vector<8x128xf32>
    %315 = arith.addf %313, %314 : vector<8x128xf32>
    %316 = arith.negf %315 : vector<8x128xf32>
    %317 = math.exp %316 : vector<8x128xf32>
    %cst_87 = arith.constant 1.000000e+00 : f32
    %318 = vector.broadcast %cst_87 : f32 to vector<8x128xf32>
    %319 = arith.addf %318, %317 : vector<8x128xf32>
    %320 = arith.divf %318, %319 : vector<8x128xf32>
    %321 = vector.extract_strided_slice %303 {offsets = [0, 256], sizes = [8, 128], strides = [1, 1]} : vector<8x384xf32> to vector<8x128xf32>
    %322 = vector.extract_strided_slice %304 {offsets = [0, 256], sizes = [8, 128], strides = [1, 1]} : vector<8x384xf32> to vector<8x128xf32>
    %323 = vector.broadcast %298 : vector<1x128xf32> to vector<8x128xf32>
    %324 = arith.addf %322, %323 : vector<8x128xf32>
    %325 = arith.mulf %312, %324 : vector<8x128xf32>
    %326 = arith.addf %321, %325 : vector<8x128xf32>
    %327 = math.tanh %326 : vector<8x128xf32>
    %cst_88 = arith.constant 1.000000e+00 : f32
    %328 = vector.broadcast %cst_88 : f32 to vector<8x128xf32>
    %329 = arith.subf %328, %320 : vector<8x128xf32>
    %330 = arith.mulf %329, %327 : vector<8x128xf32>
    %331 = arith.mulf %320, %299 : vector<8x128xf32>
    %332 = arith.addf %330, %331 : vector<8x128xf32>
    %c1_i32_89 = arith.constant 1 : i32
    %c8_i32_90 = arith.constant 8 : i32
    %333 = arith.muli %c1_i32_89, %c8_i32_90 : i32
    %334 = tpu.assume_multiple %333, 8 : i32
    %335 = arith.index_cast %334 : i32 to index
    %c0_91 = arith.constant 0 : index
    %336 = vector.load %arg13[%335, %c0_91] : memref<64x384xf32, #tpu.memory_space<vmem>>, vector<8x384xf32>
    %cst_92 = arith.constant dense<0.000000e+00> : vector<8x384xf32>
    %337 = tpu.matmul %332, %297, %cst_92 {dimension_numbers = #tpu.dot_dimension_numbers<[1], [0], [0], [1], [0, 0, 1, 1], [], []>} : vector<8x128xf32>, vector<128x384xf32>, vector<8x384xf32> -> vector<8x384xf32>
    %338 = vector.extract_strided_slice %336 {offsets = [0, 0], sizes = [8, 128], strides = [1, 1]} : vector<8x384xf32> to vector<8x128xf32>
    %339 = vector.extract_strided_slice %337 {offsets = [0, 0], sizes = [8, 128], strides = [1, 1]} : vector<8x384xf32> to vector<8x128xf32>
    %340 = arith.addf %338, %339 : vector<8x128xf32>
    %341 = arith.negf %340 : vector<8x128xf32>
    %342 = math.exp %341 : vector<8x128xf32>
    %cst_93 = arith.constant 1.000000e+00 : f32
    %343 = vector.broadcast %cst_93 : f32 to vector<8x128xf32>
    %344 = arith.addf %343, %342 : vector<8x128xf32>
    %345 = arith.divf %343, %344 : vector<8x128xf32>
    %346 = vector.extract_strided_slice %336 {offsets = [0, 128], sizes = [8, 128], strides = [1, 1]} : vector<8x384xf32> to vector<8x128xf32>
    %347 = vector.extract_strided_slice %337 {offsets = [0, 128], sizes = [8, 128], strides = [1, 1]} : vector<8x384xf32> to vector<8x128xf32>
    %348 = arith.addf %346, %347 : vector<8x128xf32>
    %349 = arith.negf %348 : vector<8x128xf32>
    %350 = math.exp %349 : vector<8x128xf32>
    %cst_94 = arith.constant 1.000000e+00 : f32
    %351 = vector.broadcast %cst_94 : f32 to vector<8x128xf32>
    %352 = arith.addf %351, %350 : vector<8x128xf32>
    %353 = arith.divf %351, %352 : vector<8x128xf32>
    %354 = vector.extract_strided_slice %336 {offsets = [0, 256], sizes = [8, 128], strides = [1, 1]} : vector<8x384xf32> to vector<8x128xf32>
    %355 = vector.extract_strided_slice %337 {offsets = [0, 256], sizes = [8, 128], strides = [1, 1]} : vector<8x384xf32> to vector<8x128xf32>
    %356 = vector.broadcast %298 : vector<1x128xf32> to vector<8x128xf32>
    %357 = arith.addf %355, %356 : vector<8x128xf32>
    %358 = arith.mulf %345, %357 : vector<8x128xf32>
    %359 = arith.addf %354, %358 : vector<8x128xf32>
    %360 = math.tanh %359 : vector<8x128xf32>
    %cst_95 = arith.constant 1.000000e+00 : f32
    %361 = vector.broadcast %cst_95 : f32 to vector<8x128xf32>
    %362 = arith.subf %361, %353 : vector<8x128xf32>
    %363 = arith.mulf %362, %360 : vector<8x128xf32>
    %364 = arith.mulf %353, %332 : vector<8x128xf32>
    %365 = arith.addf %363, %364 : vector<8x128xf32>
    %c2_i32_96 = arith.constant 2 : i32
    %c8_i32_97 = arith.constant 8 : i32
    %366 = arith.muli %c2_i32_96, %c8_i32_97 : i32
    %367 = tpu.assume_multiple %366, 8 : i32
    %368 = arith.index_cast %367 : i32 to index
    %c0_98 = arith.constant 0 : index
    %369 = vector.load %arg13[%368, %c0_98] : memref<64x384xf32, #tpu.memory_space<vmem>>, vector<8x384xf32>
    %cst_99 = arith.constant dense<0.000000e+00> : vector<8x384xf32>
    %370 = tpu.matmul %365, %297, %cst_99 {dimension_numbers = #tpu.dot_dimension_numbers<[1], [0], [0], [1], [0, 0, 1, 1], [], []>} : vector<8x128xf32>, vector<128x384xf32>, vector<8x384xf32> -> vector<8x384xf32>
    %371 = vector.extract_strided_slice %369 {offsets = [0, 0], sizes = [8, 128], strides = [1, 1]} : vector<8x384xf32> to vector<8x128xf32>
    %372 = vector.extract_strided_slice %370 {offsets = [0, 0], sizes = [8, 128], strides = [1, 1]} : vector<8x384xf32> to vector<8x128xf32>
    %373 = arith.addf %371, %372 : vector<8x128xf32>
    %374 = arith.negf %373 : vector<8x128xf32>
    %375 = math.exp %374 : vector<8x128xf32>
    %cst_100 = arith.constant 1.000000e+00 : f32
    %376 = vector.broadcast %cst_100 : f32 to vector<8x128xf32>
    %377 = arith.addf %376, %375 : vector<8x128xf32>
    %378 = arith.divf %376, %377 : vector<8x128xf32>
    %379 = vector.extract_strided_slice %369 {offsets = [0, 128], sizes = [8, 128], strides = [1, 1]} : vector<8x384xf32> to vector<8x128xf32>
    %380 = vector.extract_strided_slice %370 {offsets = [0, 128], sizes = [8, 128], strides = [1, 1]} : vector<8x384xf32> to vector<8x128xf32>
    %381 = arith.addf %379, %380 : vector<8x128xf32>
    %382 = arith.negf %381 : vector<8x128xf32>
    %383 = math.exp %382 : vector<8x128xf32>
    %cst_101 = arith.constant 1.000000e+00 : f32
    %384 = vector.broadcast %cst_101 : f32 to vector<8x128xf32>
    %385 = arith.addf %384, %383 : vector<8x128xf32>
    %386 = arith.divf %384, %385 : vector<8x128xf32>
    %387 = vector.extract_strided_slice %369 {offsets = [0, 256], sizes = [8, 128], strides = [1, 1]} : vector<8x384xf32> to vector<8x128xf32>
    %388 = vector.extract_strided_slice %370 {offsets = [0, 256], sizes = [8, 128], strides = [1, 1]} : vector<8x384xf32> to vector<8x128xf32>
    %389 = vector.broadcast %298 : vector<1x128xf32> to vector<8x128xf32>
    %390 = arith.addf %388, %389 : vector<8x128xf32>
    %391 = arith.mulf %378, %390 : vector<8x128xf32>
    %392 = arith.addf %387, %391 : vector<8x128xf32>
    %393 = math.tanh %392 : vector<8x128xf32>
    %cst_102 = arith.constant 1.000000e+00 : f32
    %394 = vector.broadcast %cst_102 : f32 to vector<8x128xf32>
    %395 = arith.subf %394, %386 : vector<8x128xf32>
    %396 = arith.mulf %395, %393 : vector<8x128xf32>
    %397 = arith.mulf %386, %365 : vector<8x128xf32>
    %398 = arith.addf %396, %397 : vector<8x128xf32>
    %c3_i32_103 = arith.constant 3 : i32
    %c8_i32_104 = arith.constant 8 : i32
    %399 = arith.muli %c3_i32_103, %c8_i32_104 : i32
    %400 = tpu.assume_multiple %399, 8 : i32
    %401 = arith.index_cast %400 : i32 to index
    %c0_105 = arith.constant 0 : index
    %402 = vector.load %arg13[%401, %c0_105] : memref<64x384xf32, #tpu.memory_space<vmem>>, vector<8x384xf32>
    %cst_106 = arith.constant dense<0.000000e+00> : vector<8x384xf32>
    %403 = tpu.matmul %398, %297, %cst_106 {dimension_numbers = #tpu.dot_dimension_numbers<[1], [0], [0], [1], [0, 0, 1, 1], [], []>} : vector<8x128xf32>, vector<128x384xf32>, vector<8x384xf32> -> vector<8x384xf32>
    %404 = vector.extract_strided_slice %402 {offsets = [0, 0], sizes = [8, 128], strides = [1, 1]} : vector<8x384xf32> to vector<8x128xf32>
    %405 = vector.extract_strided_slice %403 {offsets = [0, 0], sizes = [8, 128], strides = [1, 1]} : vector<8x384xf32> to vector<8x128xf32>
    %406 = arith.addf %404, %405 : vector<8x128xf32>
    %407 = arith.negf %406 : vector<8x128xf32>
    %408 = math.exp %407 : vector<8x128xf32>
    %cst_107 = arith.constant 1.000000e+00 : f32
    %409 = vector.broadcast %cst_107 : f32 to vector<8x128xf32>
    %410 = arith.addf %409, %408 : vector<8x128xf32>
    %411 = arith.divf %409, %410 : vector<8x128xf32>
    %412 = vector.extract_strided_slice %402 {offsets = [0, 128], sizes = [8, 128], strides = [1, 1]} : vector<8x384xf32> to vector<8x128xf32>
    %413 = vector.extract_strided_slice %403 {offsets = [0, 128], sizes = [8, 128], strides = [1, 1]} : vector<8x384xf32> to vector<8x128xf32>
    %414 = arith.addf %412, %413 : vector<8x128xf32>
    %415 = arith.negf %414 : vector<8x128xf32>
    %416 = math.exp %415 : vector<8x128xf32>
    %cst_108 = arith.constant 1.000000e+00 : f32
    %417 = vector.broadcast %cst_108 : f32 to vector<8x128xf32>
    %418 = arith.addf %417, %416 : vector<8x128xf32>
    %419 = arith.divf %417, %418 : vector<8x128xf32>
    %420 = vector.extract_strided_slice %402 {offsets = [0, 256], sizes = [8, 128], strides = [1, 1]} : vector<8x384xf32> to vector<8x128xf32>
    %421 = vector.extract_strided_slice %403 {offsets = [0, 256], sizes = [8, 128], strides = [1, 1]} : vector<8x384xf32> to vector<8x128xf32>
    %422 = vector.broadcast %298 : vector<1x128xf32> to vector<8x128xf32>
    %423 = arith.addf %421, %422 : vector<8x128xf32>
    %424 = arith.mulf %411, %423 : vector<8x128xf32>
    %425 = arith.addf %420, %424 : vector<8x128xf32>
    %426 = math.tanh %425 : vector<8x128xf32>
    %cst_109 = arith.constant 1.000000e+00 : f32
    %427 = vector.broadcast %cst_109 : f32 to vector<8x128xf32>
    %428 = arith.subf %427, %419 : vector<8x128xf32>
    %429 = arith.mulf %428, %426 : vector<8x128xf32>
    %430 = arith.mulf %419, %398 : vector<8x128xf32>
    %431 = arith.addf %429, %430 : vector<8x128xf32>
    %c4_i32_110 = arith.constant 4 : i32
    %c8_i32_111 = arith.constant 8 : i32
    %432 = arith.muli %c4_i32_110, %c8_i32_111 : i32
    %433 = tpu.assume_multiple %432, 8 : i32
    %434 = arith.index_cast %433 : i32 to index
    %c0_112 = arith.constant 0 : index
    %435 = vector.load %arg13[%434, %c0_112] : memref<64x384xf32, #tpu.memory_space<vmem>>, vector<8x384xf32>
    %cst_113 = arith.constant dense<0.000000e+00> : vector<8x384xf32>
    %436 = tpu.matmul %431, %297, %cst_113 {dimension_numbers = #tpu.dot_dimension_numbers<[1], [0], [0], [1], [0, 0, 1, 1], [], []>} : vector<8x128xf32>, vector<128x384xf32>, vector<8x384xf32> -> vector<8x384xf32>
    %437 = vector.extract_strided_slice %435 {offsets = [0, 0], sizes = [8, 128], strides = [1, 1]} : vector<8x384xf32> to vector<8x128xf32>
    %438 = vector.extract_strided_slice %436 {offsets = [0, 0], sizes = [8, 128], strides = [1, 1]} : vector<8x384xf32> to vector<8x128xf32>
    %439 = arith.addf %437, %438 : vector<8x128xf32>
    %440 = arith.negf %439 : vector<8x128xf32>
    %441 = math.exp %440 : vector<8x128xf32>
    %cst_114 = arith.constant 1.000000e+00 : f32
    %442 = vector.broadcast %cst_114 : f32 to vector<8x128xf32>
    %443 = arith.addf %442, %441 : vector<8x128xf32>
    %444 = arith.divf %442, %443 : vector<8x128xf32>
    %445 = vector.extract_strided_slice %435 {offsets = [0, 128], sizes = [8, 128], strides = [1, 1]} : vector<8x384xf32> to vector<8x128xf32>
    %446 = vector.extract_strided_slice %436 {offsets = [0, 128], sizes = [8, 128], strides = [1, 1]} : vector<8x384xf32> to vector<8x128xf32>
    %447 = arith.addf %445, %446 : vector<8x128xf32>
    %448 = arith.negf %447 : vector<8x128xf32>
    %449 = math.exp %448 : vector<8x128xf32>
    %cst_115 = arith.constant 1.000000e+00 : f32
    %450 = vector.broadcast %cst_115 : f32 to vector<8x128xf32>
    %451 = arith.addf %450, %449 : vector<8x128xf32>
    %452 = arith.divf %450, %451 : vector<8x128xf32>
    %453 = vector.extract_strided_slice %435 {offsets = [0, 256], sizes = [8, 128], strides = [1, 1]} : vector<8x384xf32> to vector<8x128xf32>
    %454 = vector.extract_strided_slice %436 {offsets = [0, 256], sizes = [8, 128], strides = [1, 1]} : vector<8x384xf32> to vector<8x128xf32>
    %455 = vector.broadcast %298 : vector<1x128xf32> to vector<8x128xf32>
    %456 = arith.addf %454, %455 : vector<8x128xf32>
    %457 = arith.mulf %444, %456 : vector<8x128xf32>
    %458 = arith.addf %453, %457 : vector<8x128xf32>
    %459 = math.tanh %458 : vector<8x128xf32>
    %cst_116 = arith.constant 1.000000e+00 : f32
    %460 = vector.broadcast %cst_116 : f32 to vector<8x128xf32>
    %461 = arith.subf %460, %452 : vector<8x128xf32>
    %462 = arith.mulf %461, %459 : vector<8x128xf32>
    %463 = arith.mulf %452, %431 : vector<8x128xf32>
    %464 = arith.addf %462, %463 : vector<8x128xf32>
    %c5_i32_117 = arith.constant 5 : i32
    %c8_i32_118 = arith.constant 8 : i32
    %465 = arith.muli %c5_i32_117, %c8_i32_118 : i32
    %466 = tpu.assume_multiple %465, 8 : i32
    %467 = arith.index_cast %466 : i32 to index
    %c0_119 = arith.constant 0 : index
    %468 = vector.load %arg13[%467, %c0_119] : memref<64x384xf32, #tpu.memory_space<vmem>>, vector<8x384xf32>
    %cst_120 = arith.constant dense<0.000000e+00> : vector<8x384xf32>
    %469 = tpu.matmul %464, %297, %cst_120 {dimension_numbers = #tpu.dot_dimension_numbers<[1], [0], [0], [1], [0, 0, 1, 1], [], []>} : vector<8x128xf32>, vector<128x384xf32>, vector<8x384xf32> -> vector<8x384xf32>
    %470 = vector.extract_strided_slice %468 {offsets = [0, 0], sizes = [8, 128], strides = [1, 1]} : vector<8x384xf32> to vector<8x128xf32>
    %471 = vector.extract_strided_slice %469 {offsets = [0, 0], sizes = [8, 128], strides = [1, 1]} : vector<8x384xf32> to vector<8x128xf32>
    %472 = arith.addf %470, %471 : vector<8x128xf32>
    %473 = arith.negf %472 : vector<8x128xf32>
    %474 = math.exp %473 : vector<8x128xf32>
    %cst_121 = arith.constant 1.000000e+00 : f32
    %475 = vector.broadcast %cst_121 : f32 to vector<8x128xf32>
    %476 = arith.addf %475, %474 : vector<8x128xf32>
    %477 = arith.divf %475, %476 : vector<8x128xf32>
    %478 = vector.extract_strided_slice %468 {offsets = [0, 128], sizes = [8, 128], strides = [1, 1]} : vector<8x384xf32> to vector<8x128xf32>
    %479 = vector.extract_strided_slice %469 {offsets = [0, 128], sizes = [8, 128], strides = [1, 1]} : vector<8x384xf32> to vector<8x128xf32>
    %480 = arith.addf %478, %479 : vector<8x128xf32>
    %481 = arith.negf %480 : vector<8x128xf32>
    %482 = math.exp %481 : vector<8x128xf32>
    %cst_122 = arith.constant 1.000000e+00 : f32
    %483 = vector.broadcast %cst_122 : f32 to vector<8x128xf32>
    %484 = arith.addf %483, %482 : vector<8x128xf32>
    %485 = arith.divf %483, %484 : vector<8x128xf32>
    %486 = vector.extract_strided_slice %468 {offsets = [0, 256], sizes = [8, 128], strides = [1, 1]} : vector<8x384xf32> to vector<8x128xf32>
    %487 = vector.extract_strided_slice %469 {offsets = [0, 256], sizes = [8, 128], strides = [1, 1]} : vector<8x384xf32> to vector<8x128xf32>
    %488 = vector.broadcast %298 : vector<1x128xf32> to vector<8x128xf32>
    %489 = arith.addf %487, %488 : vector<8x128xf32>
    %490 = arith.mulf %477, %489 : vector<8x128xf32>
    %491 = arith.addf %486, %490 : vector<8x128xf32>
    %492 = math.tanh %491 : vector<8x128xf32>
    %cst_123 = arith.constant 1.000000e+00 : f32
    %493 = vector.broadcast %cst_123 : f32 to vector<8x128xf32>
    %494 = arith.subf %493, %485 : vector<8x128xf32>
    %495 = arith.mulf %494, %492 : vector<8x128xf32>
    %496 = arith.mulf %485, %464 : vector<8x128xf32>
    %497 = arith.addf %495, %496 : vector<8x128xf32>
    %c6_i32_124 = arith.constant 6 : i32
    %c8_i32_125 = arith.constant 8 : i32
    %498 = arith.muli %c6_i32_124, %c8_i32_125 : i32
    %499 = tpu.assume_multiple %498, 8 : i32
    %500 = arith.index_cast %499 : i32 to index
    %c0_126 = arith.constant 0 : index
    %501 = vector.load %arg13[%500, %c0_126] : memref<64x384xf32, #tpu.memory_space<vmem>>, vector<8x384xf32>
    %cst_127 = arith.constant dense<0.000000e+00> : vector<8x384xf32>
    %502 = tpu.matmul %497, %297, %cst_127 {dimension_numbers = #tpu.dot_dimension_numbers<[1], [0], [0], [1], [0, 0, 1, 1], [], []>} : vector<8x128xf32>, vector<128x384xf32>, vector<8x384xf32> -> vector<8x384xf32>
    %503 = vector.extract_strided_slice %501 {offsets = [0, 0], sizes = [8, 128], strides = [1, 1]} : vector<8x384xf32> to vector<8x128xf32>
    %504 = vector.extract_strided_slice %502 {offsets = [0, 0], sizes = [8, 128], strides = [1, 1]} : vector<8x384xf32> to vector<8x128xf32>
    %505 = arith.addf %503, %504 : vector<8x128xf32>
    %506 = arith.negf %505 : vector<8x128xf32>
    %507 = math.exp %506 : vector<8x128xf32>
    %cst_128 = arith.constant 1.000000e+00 : f32
    %508 = vector.broadcast %cst_128 : f32 to vector<8x128xf32>
    %509 = arith.addf %508, %507 : vector<8x128xf32>
    %510 = arith.divf %508, %509 : vector<8x128xf32>
    %511 = vector.extract_strided_slice %501 {offsets = [0, 128], sizes = [8, 128], strides = [1, 1]} : vector<8x384xf32> to vector<8x128xf32>
    %512 = vector.extract_strided_slice %502 {offsets = [0, 128], sizes = [8, 128], strides = [1, 1]} : vector<8x384xf32> to vector<8x128xf32>
    %513 = arith.addf %511, %512 : vector<8x128xf32>
    %514 = arith.negf %513 : vector<8x128xf32>
    %515 = math.exp %514 : vector<8x128xf32>
    %cst_129 = arith.constant 1.000000e+00 : f32
    %516 = vector.broadcast %cst_129 : f32 to vector<8x128xf32>
    %517 = arith.addf %516, %515 : vector<8x128xf32>
    %518 = arith.divf %516, %517 : vector<8x128xf32>
    %519 = vector.extract_strided_slice %501 {offsets = [0, 256], sizes = [8, 128], strides = [1, 1]} : vector<8x384xf32> to vector<8x128xf32>
    %520 = vector.extract_strided_slice %502 {offsets = [0, 256], sizes = [8, 128], strides = [1, 1]} : vector<8x384xf32> to vector<8x128xf32>
    %521 = vector.broadcast %298 : vector<1x128xf32> to vector<8x128xf32>
    %522 = arith.addf %520, %521 : vector<8x128xf32>
    %523 = arith.mulf %510, %522 : vector<8x128xf32>
    %524 = arith.addf %519, %523 : vector<8x128xf32>
    %525 = math.tanh %524 : vector<8x128xf32>
    %cst_130 = arith.constant 1.000000e+00 : f32
    %526 = vector.broadcast %cst_130 : f32 to vector<8x128xf32>
    %527 = arith.subf %526, %518 : vector<8x128xf32>
    %528 = arith.mulf %527, %525 : vector<8x128xf32>
    %529 = arith.mulf %518, %497 : vector<8x128xf32>
    %530 = arith.addf %528, %529 : vector<8x128xf32>
    %c7_i32_131 = arith.constant 7 : i32
    %c8_i32_132 = arith.constant 8 : i32
    %531 = arith.muli %c7_i32_131, %c8_i32_132 : i32
    %532 = tpu.assume_multiple %531, 8 : i32
    %533 = arith.index_cast %532 : i32 to index
    %c0_133 = arith.constant 0 : index
    %534 = vector.load %arg13[%533, %c0_133] : memref<64x384xf32, #tpu.memory_space<vmem>>, vector<8x384xf32>
    %cst_134 = arith.constant dense<0.000000e+00> : vector<8x384xf32>
    %535 = tpu.matmul %530, %297, %cst_134 {dimension_numbers = #tpu.dot_dimension_numbers<[1], [0], [0], [1], [0, 0, 1, 1], [], []>} : vector<8x128xf32>, vector<128x384xf32>, vector<8x384xf32> -> vector<8x384xf32>
    %536 = vector.extract_strided_slice %534 {offsets = [0, 0], sizes = [8, 128], strides = [1, 1]} : vector<8x384xf32> to vector<8x128xf32>
    %537 = vector.extract_strided_slice %535 {offsets = [0, 0], sizes = [8, 128], strides = [1, 1]} : vector<8x384xf32> to vector<8x128xf32>
    %538 = arith.addf %536, %537 : vector<8x128xf32>
    %539 = arith.negf %538 : vector<8x128xf32>
    %540 = math.exp %539 : vector<8x128xf32>
    %cst_135 = arith.constant 1.000000e+00 : f32
    %541 = vector.broadcast %cst_135 : f32 to vector<8x128xf32>
    %542 = arith.addf %541, %540 : vector<8x128xf32>
    %543 = arith.divf %541, %542 : vector<8x128xf32>
    %544 = vector.extract_strided_slice %534 {offsets = [0, 128], sizes = [8, 128], strides = [1, 1]} : vector<8x384xf32> to vector<8x128xf32>
    %545 = vector.extract_strided_slice %535 {offsets = [0, 128], sizes = [8, 128], strides = [1, 1]} : vector<8x384xf32> to vector<8x128xf32>
    %546 = arith.addf %544, %545 : vector<8x128xf32>
    %547 = arith.negf %546 : vector<8x128xf32>
    %548 = math.exp %547 : vector<8x128xf32>
    %cst_136 = arith.constant 1.000000e+00 : f32
    %549 = vector.broadcast %cst_136 : f32 to vector<8x128xf32>
    %550 = arith.addf %549, %548 : vector<8x128xf32>
    %551 = arith.divf %549, %550 : vector<8x128xf32>
    %552 = vector.extract_strided_slice %534 {offsets = [0, 256], sizes = [8, 128], strides = [1, 1]} : vector<8x384xf32> to vector<8x128xf32>
    %553 = vector.extract_strided_slice %535 {offsets = [0, 256], sizes = [8, 128], strides = [1, 1]} : vector<8x384xf32> to vector<8x128xf32>
    %554 = vector.broadcast %298 : vector<1x128xf32> to vector<8x128xf32>
    %555 = arith.addf %553, %554 : vector<8x128xf32>
    %556 = arith.mulf %543, %555 : vector<8x128xf32>
    %557 = arith.addf %552, %556 : vector<8x128xf32>
    %558 = math.tanh %557 : vector<8x128xf32>
    %cst_137 = arith.constant 1.000000e+00 : f32
    %559 = vector.broadcast %cst_137 : f32 to vector<8x128xf32>
    %560 = arith.subf %559, %551 : vector<8x128xf32>
    %561 = arith.mulf %560, %558 : vector<8x128xf32>
    %562 = arith.mulf %551, %530 : vector<8x128xf32>
    %563 = arith.addf %561, %562 : vector<8x128xf32>
    %c8_i32_138 = arith.constant 8 : i32
    %c0_139 = arith.constant 0 : index
    %c0_140 = arith.constant 0 : index
    %564 = vector.load %arg9[%c0_139, %c0_140] : memref<128x128xf32, #tpu.memory_space<vmem>>, vector<128x128xf32>
    %cst_141 = arith.constant dense<0.000000e+00> : vector<8x128xf32>
    %565 = tpu.matmul %563, %564, %cst_141 {dimension_numbers = #tpu.dot_dimension_numbers<[1], [0], [0], [1], [0, 0, 1, 1], [], []>} : vector<8x128xf32>, vector<128x128xf32>, vector<8x128xf32> -> vector<8x128xf32>
    %c0_142 = arith.constant 0 : index
    %c0_143 = arith.constant 0 : index
    %566 = vector.load %arg10[%c0_142, %c0_143] : memref<1x128xf32, #tpu.memory_space<vmem>>, vector<1x128xf32>
    %567 = vector.broadcast %566 : vector<1x128xf32> to vector<8x128xf32>
    %568 = arith.addf %565, %567 : vector<8x128xf32>
    %c0_144 = arith.constant 0 : index
    %c0_145 = arith.constant 0 : index
    %569 = vector.load %arg11[%c0_144, %c0_145] : memref<8x128xf32, #tpu.memory_space<vmem>>, vector<8x128xf32>
    tpu.vector_store %arg11[%c0_144, %c0_145], %568 {strides = array<i32>} : memref<8x128xf32, #tpu.memory_space<vmem>>, vector<8x128xf32>,
    return
  }
}

</mosaic_0001>

<llo_original>
// kernel: gru_forward.1
$region0: #{gru_forward.1}
  #allocation0 [shape = 'u32[]', space=smem, size = 0x4, offset = 0x4, fixed_abs, tag = 'smem constant byte address 0x4 - core index']
  #allocation1 [shape = 'u32[144,128]{1,0:T(1,128)}', space=vmem, size = 0x12000, scoped, tag = 'internal scratch']
  #allocation2 [shape = 'f32[64,128]{1,0:T(8,128)}', space=vmem, size = 0x8000, scoped, tag = 'scratch operand']
  #allocation3 [shape = 'f32[64,384]{1,0:T(8,128)}', space=vmem, size = 0x18000, scoped, tag = 'scratch operand']
  %s0 = inlined_call_operand.vmem [shape: f32[64,128], index: 0, kind: input, shape index: {}]
  %s1 = inlined_call_operand.vmem [shape: f32[128,384], index: 1, kind: input, shape index: {}]
  %s2 = inlined_call_operand.vmem [shape: f32[128,384], index: 2, kind: input, shape index: {}]
  %s3 = inlined_call_operand.vmem [shape: f32[1,384], index: 3, kind: input, shape index: {}]
  %s4 = inlined_call_operand.vmem [shape: f32[1,128], index: 4, kind: input, shape index: {}]
  %s5 = inlined_call_operand.vmem [shape: f32[128,384], index: 5, kind: input, shape index: {}]
  %s6 = inlined_call_operand.vmem [shape: f32[128,384], index: 6, kind: input, shape index: {}]
  %s7 = inlined_call_operand.vmem [shape: f32[1,384], index: 7, kind: input, shape index: {}]
  %s8 = inlined_call_operand.vmem [shape: f32[1,128], index: 8, kind: input, shape index: {}]
  %s9 = inlined_call_operand.vmem [shape: f32[128,128], index: 9, kind: input, shape index: {}]
  %s10 = inlined_call_operand.vmem [shape: f32[1,128], index: 10, kind: input, shape index: {}]
  %s11 = inlined_call_operand.vmem [shape: f32[8,128], index: 11, kind: output, shape index: {}]
  %s12 = sld [smem:[#allocation0]]
  $region54: #{gru_forward.1} parent=0
    _
  %s14 = ssub.s32 1, %s12
  %s15 = scalar_select 0, %s14, %s12
  // Predicated region
  $region2: #{gru_forward.1} parent=0 // pred_check
    _
  $region3: #{gru_forward.1} parent=0 // pred_check_branch
    %17 = sbr.rel (0) target = $region5
  $region4: #{gru_forward.1} parent=0 // pred_region
    _
  $region5: #{gru_forward.1} parent=0 // pred_fallthru
    _
  // Predicated region
  $region6: #{gru_forward.1} parent=0 // pred_check
    _
  $region7: #{gru_forward.1} parent=0 // pred_check_branch
    %19 = sbr.rel (0) target = $region9
  $region8: #{gru_forward.1} parent=0 // pred_region
    _
  $region9: #{gru_forward.1} parent=0 // pred_fallthru
    _
  // Predicated region
  $region10: #{gru_forward.1} parent=0 // pred_check
    _
  $region11: #{gru_forward.1} parent=0 // pred_check_branch
    %21 = sbr.rel (0) target = $region13
  $region12: #{gru_forward.1} parent=0 // pred_region
    _
  $region13: #{gru_forward.1} parent=0 // pred_fallthru
    _
  // Predicated region
  $region14: #{gru_forward.1} parent=0 // pred_check
    _
  $region15: #{gru_forward.1} parent=0 // pred_check_branch
    %23 = sbr.rel (0) target = $region17
  $region16: #{gru_forward.1} parent=0 // pred_region
    _
  $region17: #{gru_forward.1} parent=0 // pred_fallthru
    _
  // Predicated region
  $region18: #{gru_forward.1} parent=0 // pred_check
    _
  $region19: #{gru_forward.1} parent=0 // pred_check_branch
    %25 = sbr.rel (0) target = $region21
  $region20: #{gru_forward.1} parent=0 // pred_region
    _
  $region21: #{gru_forward.1} parent=0 // pred_fallthru
    _
  // Predicated region
  $region22: #{gru_forward.1} parent=0 // pred_check
    _
  $region23: #{gru_forward.1} parent=0 // pred_check_branch
    %27 = sbr.rel (0) target = $region25
  $region24: #{gru_forward.1} parent=0 // pred_region
    _
  $region25: #{gru_forward.1} parent=0 // pred_fallthru
    _
  // Predicated region
  $region26: #{gru_forward.1} parent=0 // pred_check
    _
  $region27: #{gru_forward.1} parent=0 // pred_check_branch
    %29 = sbr.rel (0) target = $region29
  $region28: #{gru_forward.1} parent=0 // pred_region
    _
  $region29: #{gru_forward.1} parent=0 // pred_fallthru
    _
  // Predicated region
  $region30: #{gru_forward.1} parent=0 // pred_check
    _
  $region31: #{gru_forward.1} parent=0 // pred_check_branch
    %31 = sbr.rel (0) target = $region33
  $region32: #{gru_forward.1} parent=0 // pred_region
    _
  $region33: #{gru_forward.1} parent=0 // pred_fallthru
    _
  // Predicated region
  $region34: #{gru_forward.1} parent=0 // pred_check
    _
  $region35: #{gru_forward.1} parent=0 // pred_check_branch
    %33 = sbr.rel (0) target = $region37
  $region36: #{gru_forward.1} parent=0 // pred_region
    _
  $region37: #{gru_forward.1} parent=0 // pred_fallthru
    _
  // Predicated region
  $region38: #{gru_forward.1} parent=0 // pred_check
    _
  $region39: #{gru_forward.1} parent=0 // pred_check_branch
    %35 = sbr.rel (0) target = $region41
  $region40: #{gru_forward.1} parent=0 // pred_region
    _
  $region41: #{gru_forward.1} parent=0 // pred_fallthru
    _
  // Predicated region
  $region42: #{gru_forward.1} parent=0 // pred_check
    _
  $region43: #{gru_forward.1} parent=0 // pred_check_branch
    %37 = sbr.rel (0) target = $region45
  $region44: #{gru_forward.1} parent=0 // pred_region
    _
  $region45: #{gru_forward.1} parent=0 // pred_fallthru
    _
  %v38 = vld [vmem:[%s0] sm:$0xff]
  %v39 = vld [vmem:[%s0 + $0x8] sm:$0xff]
  %v40 = vld [vmem:[%s0 + $0x10] sm:$0xff]
  %v41 = vld [vmem:[%s0 + $0x18] sm:$0xff]
  %v42 = vld [vmem:[%s0 + $0x20] sm:$0xff]
  %v43 = vld [vmem:[%s0 + $0x28] sm:$0xff]
  %v44 = vld [vmem:[%s0 + $0x30] sm:$0xff]
  %v45 = vld [vmem:[%s0 + $0x38] sm:$0xff]
  %v46 = vld [vmem:[%s1] sm:$0xff]
  %v47 = vld [vmem:[%s1 + $0x8] sm:$0xff]
  %v48 = vld [vmem:[%s1 + $0x10] sm:$0xff]
  %v49 = vld [vmem:[%s1 + $0x18] sm:$0xff]
  %v50 = vld [vmem:[%s1 + $0x20] sm:$0xff]
  %v51 = vld [vmem:[%s1 + $0x28] sm:$0xff]
  %v52 = vld [vmem:[%s1 + $0x30] sm:$0xff]
  %v53 = vld [vmem:[%s1 + $0x38] sm:$0xff]
  %v54 = vld [vmem:[%s1 + $0x40] sm:$0xff]
  %v55 = vld [vmem:[%s1 + $0x48] sm:$0xff]
  %v56 = vld [vmem:[%s1 + $0x50] sm:$0xff]
  %v57 = vld [vmem:[%s1 + $0x58] sm:$0xff]
  %v58 = vld [vmem:[%s1 + $0x60] sm:$0xff]
  %v59 = vld [vmem:[%s1 + $0x68] sm:$0xff]
  %v60 = vld [vmem:[%s1 + $0x70] sm:$0xff]
  %v61 = vld [vmem:[%s1 + $0x78] sm:$0xff]
  %v62 = vld [vmem:[%s1 + $0x80] sm:$0xff]
  %v63 = vld [vmem:[%s1 + $0x88] sm:$0xff]
  %v64 = vld [vmem:[%s1 + $0x90] sm:$0xff]
  %v65 = vld [vmem:[%s1 + $0x98] sm:$0xff]
  %v66 = vld [vmem:[%s1 + $0xa0] sm:$0xff]
  %v67 = vld [vmem:[%s1 + $0xa8] sm:$0xff]
  %v68 = vld [vmem:[%s1 + $0xb0] sm:$0xff]
  %v69 = vld [vmem:[%s1 + $0xb8] sm:$0xff]
  %v70 = vld [vmem:[%s1 + $0xc0] sm:$0xff]
  %v71 = vld [vmem:[%s1 + $0xc8] sm:$0xff]
  %v72 = vld [vmem:[%s1 + $0xd0] sm:$0xff]
  %v73 = vld [vmem:[%s1 + $0xd8] sm:$0xff]
  %v74 = vld [vmem:[%s1 + $0xe0] sm:$0xff]
  %v75 = vld [vmem:[%s1 + $0xe8] sm:$0xff]
  %v76 = vld [vmem:[%s1 + $0xf0] sm:$0xff]
  %v77 = vld [vmem:[%s1 + $0xf8] sm:$0xff]
  %v78 = vld [vmem:[%s1 + $0x100] sm:$0xff]
  %v79 = vld [vmem:[%s1 + $0x108] sm:$0xff]
  %v80 = vld [vmem:[%s1 + $0x110] sm:$0xff]
  %v81 = vld [vmem:[%s1 + $0x118] sm:$0xff]
  %v82 = vld [vmem:[%s1 + $0x120] sm:$0xff]
  %v83 = vld [vmem:[%s1 + $0x128] sm:$0xff]
  %v84 = vld [vmem:[%s1 + $0x130] sm:$0xff]
  %v85 = vld [vmem:[%s1 + $0x138] sm:$0xff]
  %v86 = vld [vmem:[%s1 + $0x140] sm:$0xff]
  %v87 = vld [vmem:[%s1 + $0x148] sm:$0xff]
  %v88 = vld [vmem:[%s1 + $0x150] sm:$0xff]
  %v89 = vld [vmem:[%s1 + $0x158] sm:$0xff]
  %v90 = vld [vmem:[%s1 + $0x160] sm:$0xff]
  %v91 = vld [vmem:[%s1 + $0x168] sm:$0xff]
  %v92 = vld [vmem:[%s1 + $0x170] sm:$0xff]
  %v93 = vld [vmem:[%s1 + $0x178] sm:$0xff]
  %v94 = vld [vmem:[%s3] sm:$0x7]
  %v96 = vlaneseq
  %v97 = vshrl.u32 %v96, 7
  %v98 = vsub.s32 0, %v97
  %v99 = vrot.slane %v94, %v98
  %v100 = vlaneseq
  %v101 = vshrl.u32 %v100, 7
  %v102 = vsub.s32 1, %v101
  %v103 = vrot.slane %v94, %v102
  %v104 = vlaneseq
  %v105 = vshrl.u32 %v104, 7
  %v106 = vsub.s32 2, %v105
  %v107 = vrot.slane %v94, %v106
  %111 = vmatprep.subr.mxu0 %v47
  %112 = vmatpush1.msra.mxu0 %v46
  %113 = vmatprep.subr.mxu0 %v50
  %114 = vmatpush1.msra.mxu0 %v49
  %115 = vmatprep.subr.mxu0 %v53
  %116 = vmatpush1.msra.mxu0 %v52
  %117 = vmatprep.subr.mxu0 %v56
  %118 = vmatpush1.msra.mxu0 %v55
  %119 = vmatprep.subr.mxu0 %v59
  %120 = vmatpush1.msra.mxu0 %v58
  %121 = vmatprep.subr.mxu0 %v62
  %122 = vmatpush1.msra.mxu0 %v61
  %123 = vmatprep.subr.mxu0 %v65
  %124 = vmatpush1.msra.mxu0 %v64
  %125 = vmatprep.subr.mxu0 %v68
  %126 = vmatpush1.msra.mxu0 %v67
  %127 = vmatprep.subr.mxu0 %v71
  %128 = vmatpush1.msra.mxu0 %v70
  %129 = vmatprep.subr.mxu0 %v74
  %130 = vmatpush1.msra.mxu0 %v73
  %131 = vmatprep.subr.mxu0 %v77
  %132 = vmatpush1.msra.mxu0 %v76
  %133 = vmatprep.subr.mxu0 %v80
  %134 = vmatpush1.msra.mxu0 %v79
  %135 = vmatprep.subr.mxu0 %v83
  %136 = vmatpush1.msra.mxu0 %v82
  %137 = vmatprep.subr.mxu0 %v86
  %138 = vmatpush1.msra.mxu0 %v85
  %139 = vmatprep.subr.mxu0 %v89
  %140 = vmatpush1.msra.mxu0 %v88
  %141 = vmatprep.subr.mxu0 %v92
  %142 = vmatpush1.msra.mxu0 %v91
  %143 = vmatprep.subr.mxu0 0.0
  %144 = vmatpush1.msra.mxu0 0.0
  %145 = vmatprep.subr.mxu0 0.0
  %146 = vmatpush1.msra.mxu0 0.0
  %147 = vmatprep.subr.mxu0 0.0
  %148 = vmatpush1.msra.mxu0 0.0
  %149 = vmatprep.subr.mxu0 0.0
  %150 = vmatpush1.msra.mxu0 0.0
  %151 = vmatprep.subr.mxu0 0.0
  %152 = vmatpush1.msra.mxu0 0.0
  %153 = vmatprep.subr.mxu0 0.0
  %154 = vmatpush1.msra.mxu0 0.0
  %155 = vmatprep.subr.mxu0 0.0
  %156 = vmatpush1.msra.mxu0 0.0
  %157 = vmatprep.subr.mxu0 0.0
  %158 = vmatpush1.msra.mxu0 0.0
  %159 = vmatprep.subr.mxu0 0.0
  %160 = vmatpush1.msra.mxu0 0.0
  %161 = vmatprep.subr.mxu0 0.0
  %162 = vmatpush1.msra.mxu0 0.0
  %163 = vmatprep.subr.mxu0 0.0
  %164 = vmatpush1.msra.mxu0 0.0
  %165 = vmatprep.subr.mxu0 0.0
  %166 = vmatpush1.msra.mxu0 0.0
  %167 = vmatprep.subr.mxu0 0.0
  %168 = vmatpush1.msra.mxu0 0.0
  %169 = vmatprep.subr.mxu0 0.0
  %170 = vmatpush1.msra.mxu0 0.0
  %171 = vmatprep.subr.mxu0 0.0
  %172 = vmatpush1.msra.mxu0 0.0
  %173 = vmatprep.subr.mxu0 0.0
  %174 = vmatpush1.msra.mxu0 0.0
  %175 = vmatprep.mubr.f32.mxu0 0.0
  %176 = vmatmul.mubr.f32.gmra.mrb[0].mxu0 %v38
  %v177 = vpop.f32.mrb[0].mxu0
  %v178 = vadd.f32 %v99, %v177
  %v179 = vpop.f32.mrb[0].mxu0
  %v180 = vadd.f32 %v103, %v179
  %181 = vmatprep.mubr.f32.mxu0 0.0
  %182 = vmatmul.mubr.f32.gmra.mrb[0].mxu0 %v39
  %v183 = vpop.f32.mrb[0].mxu0
  %v184 = vadd.f32 %v99, %v183
  %v185 = vpop.f32.mrb[0].mxu0
  %v186 = vadd.f32 %v103, %v185
  %187 = vmatprep.mubr.f32.mxu0 0.0
  %188 = vmatmul.mubr.f32.gmra.mrb[0].mxu0 %v40
  %v189 = vpop.f32.mrb[0].mxu0
  %v190 = vadd.f32 %v99, %v189
  %v191 = vpop.f32.mrb[0].mxu0
  %v192 = vadd.f32 %v103, %v191
  %193 = vmatprep.mubr.f32.mxu0 0.0
  %194 = vmatmul.mubr.f32.gmra.mrb[0].mxu0 %v41
  %v195 = vpop.f32.mrb[0].mxu0
  %v196 = vadd.f32 %v99, %v195
  %v197 = vpop.f32.mrb[0].mxu0
  %v198 = vadd.f32 %v103, %v197
  %199 = vmatprep.mubr.f32.mxu0 0.0
  %200 = vmatmul.mubr.f32.gmra.mrb[0].mxu0 %v42
  %v201 = vpop.f32.mrb[0].mxu0
  %v202 = vadd.f32 %v99, %v201
  %v203 = vpop.f32.mrb[0].mxu0
  %v204 = vadd.f32 %v103, %v203
  %205 = vmatprep.mubr.f32.mxu0 0.0
  %206 = vmatmul.mubr.f32.gmra.mrb[0].mxu0 %v43
  %v207 = vpop.f32.mrb[0].mxu0
  %v208 = vadd.f32 %v99, %v207
  %v209 = vpop.f32.mrb[0].mxu0
  %v210 = vadd.f32 %v103, %v209
  %211 = vmatprep.mubr.f32.mxu0 0.0
  %212 = vmatmul.mubr.f32.gmra.mrb[0].mxu0 %v44
  %v213 = vpop.f32.mrb[0].mxu0
  %v214 = vadd.f32 %v99, %v213
  %v215 = vpop.f32.mrb[0].mxu0
  %v216 = vadd.f32 %v103, %v215
  %217 = vmatprep.mubr.f32.mxu0 0.0
  %218 = vmatmul.mubr.f32.gmra.mrb[0].mxu0 %v45
  %v219 = vpop.f32.mrb[0].mxu0
  %v220 = vadd.f32 %v99, %v219
  %v221 = vpop.f32.mrb[0].mxu0
  %v222 = vadd.f32 %v103, %v221
  %223 = vdwg.mxu0
  %224 = vmatprep.subr.mxu0 0.0
  %225 = vmatpush1.msra.mxu0 %v48
  %226 = vmatprep.subr.mxu0 0.0
  %227 = vmatpush1.msra.mxu0 %v51
  %228 = vmatprep.subr.mxu0 0.0
  %229 = vmatpush1.msra.mxu0 %v54
  %230 = vmatprep.subr.mxu0 0.0
  %231 = vmatpush1.msra.mxu0 %v57
  %232 = vmatprep.subr.mxu0 0.0
  %233 = vmatpush1.msra.mxu0 %v60
  %234 = vmatprep.subr.mxu0 0.0
  %235 = vmatpush1.msra.mxu0 %v63
  %236 = vmatprep.subr.mxu0 0.0
  %237 = vmatpush1.msra.mxu0 %v66
  %238 = vmatprep.subr.mxu0 0.0
  %239 = vmatpush1.msra.mxu0 %v69
  %240 = vmatprep.subr.mxu0 0.0
  %241 = vmatpush1.msra.mxu0 %v72
  %242 = vmatprep.subr.mxu0 0.0
  %243 = vmatpush1.msra.mxu0 %v75
  %244 = vmatprep.subr.mxu0 0.0
  %245 = vmatpush1.msra.mxu0 %v78
  %246 = vmatprep.subr.mxu0 0.0
  %247 = vmatpush1.msra.mxu0 %v81
  %248 = vmatprep.subr.mxu0 0.0
  %249 = vmatpush1.msra.mxu0 %v84
  %250 = vmatprep.subr.mxu0 0.0
  %251 = vmatpush1.msra.mxu0 %v87
  %252 = vmatprep.subr.mxu0 0.0
  %253 = vmatpush1.msra.mxu0 %v90
  %254 = vmatprep.subr.mxu0 0.0
  %255 = vmatpush1.msra.mxu0 %v93
  %256 = vmatprep.subr.mxu0 0.0
  %257 = vmatpush1.msra.mxu0 0.0
  %258 = vmatprep.subr.mxu0 0.0
  %259 = vmatpush1.msra.mxu0 0.0
  %260 = vmatprep.subr.mxu0 0.0
  %261 = vmatpush1.msra.mxu0 0.0
  %262 = vmatprep.subr.mxu0 0.0
  %263 = vmatpush1.msra.mxu0 0.0
  %264 = vmatprep.subr.mxu0 0.0
  %265 = vmatpush1.msra.mxu0 0.0
  %266 = vmatprep.subr.mxu0 0.0
  %267 = vmatpush1.msra.mxu0 0.0
  %268 = vmatprep.subr.mxu0 0.0
  %269 = vmatpush1.msra.mxu0 0.0
  %270 = vmatprep.subr.mxu0 0.0
  %271 = vmatpush1.msra.mxu0 0.0
  %272 = vmatprep.subr.mxu0 0.0
  %273 = vmatpush1.msra.mxu0 0.0
  %274 = vmatprep.subr.mxu0 0.0
  %275 = vmatpush1.msra.mxu0 0.0
  %276 = vmatprep.subr.mxu0 0.0
  %277 = vmatpush1.msra.mxu0 0.0
  %278 = vmatprep.subr.mxu0 0.0
  %279 = vmatpush1.msra.mxu0 0.0
  %280 = vmatprep.subr.mxu0 0.0
  %281 = vmatpush1.msra.mxu0 0.0
  %282 = vmatprep.subr.mxu0 0.0
  %283 = vmatpush1.msra.mxu0 0.0
  %284 = vmatprep.subr.mxu0 0.0
  %285 = vmatpush1.msra.mxu0 0.0
  %286 = vmatprep.subr.mxu0 0.0
  %287 = vmatpush1.msra.mxu0 0.0
  %288 = vmatprep.mubr.f32.mxu0 0.0
  %289 = vmatmul.mubr.f32.gmra.mrb[0].mxu0 %v38
  %v290 = vpop.f32.mrb[0].mxu0
  %v291 = vadd.f32 %v107, %v290
  %v292 = vpop.f32.mrb[0].mxu0
  %293 = vmatprep.mubr.f32.mxu0 0.0
  %294 = vmatmul.mubr.f32.gmra.mrb[0].mxu0 %v39
  %v295 = vpop.f32.mrb[0].mxu0
  %v296 = vadd.f32 %v107, %v295
  %v297 = vpop.f32.mrb[0].mxu0
  %298 = vmatprep.mubr.f32.mxu0 0.0
  %299 = vmatmul.mubr.f32.gmra.mrb[0].mxu0 %v40
  %v300 = vpop.f32.mrb[0].mxu0
  %v301 = vadd.f32 %v107, %v300
  %v302 = vpop.f32.mrb[0].mxu0
  %303 = vmatprep.mubr.f32.mxu0 0.0
  %304 = vmatmul.mubr.f32.gmra.mrb[0].mxu0 %v41
  %v305 = vpop.f32.mrb[0].mxu0
  %v306 = vadd.f32 %v107, %v305
  %v307 = vpop.f32.mrb[0].mxu0
  %308 = vmatprep.mubr.f32.mxu0 0.0
  %309 = vmatmul.mubr.f32.gmra.mrb[0].mxu0 %v42
  %v310 = vpop.f32.mrb[0].mxu0
  %v311 = vadd.f32 %v107, %v310
  %v312 = vpop.f32.mrb[0].mxu0
  %313 = vmatprep.mubr.f32.mxu0 0.0
  %314 = vmatmul.mubr.f32.gmra.mrb[0].mxu0 %v43
  %v315 = vpop.f32.mrb[0].mxu0
  %v316 = vadd.f32 %v107, %v315
  %v317 = vpop.f32.mrb[0].mxu0
  %318 = vmatprep.mubr.f32.mxu0 0.0
  %319 = vmatmul.mubr.f32.gmra.mrb[0].mxu0 %v44
  %v320 = vpop.f32.mrb[0].mxu0
  %v321 = vadd.f32 %v107, %v320
  %v322 = vpop.f32.mrb[0].mxu0
  %323 = vmatprep.mubr.f32.mxu0 0.0
  %324 = vmatmul.mubr.f32.gmra.mrb[0].mxu0 %v45
  %v325 = vpop.f32.mrb[0].mxu0
  %v326 = vadd.f32 %v107, %v325
  %v327 = vpop.f32.mrb[0].mxu0
  %328 = vdwg.mxu0
  %329 = vst [vmem:[#allocation3] sm:$0xff] %v178
  %330 = vst [vmem:[#allocation3 + $0x8] sm:$0xff] %v180
  %331 = vst [vmem:[#allocation3 + $0x10] sm:$0xff] %v291
  %332 = vst [vmem:[#allocation3 + $0x18] sm:$0xff] %v184
  %333 = vst [vmem:[#allocation3 + $0x20] sm:$0xff] %v186
  %334 = vst [vmem:[#allocation3 + $0x28] sm:$0xff] %v296
  %335 = vst [vmem:[#allocation3 + $0x30] sm:$0xff] %v190
  %336 = vst [vmem:[#allocation3 + $0x38] sm:$0xff] %v192
  %337 = vst [vmem:[#allocation3 + $0x40] sm:$0xff] %v301
  %338 = vst [vmem:[#allocation3 + $0x48] sm:$0xff] %v196
  %339 = vst [vmem:[#allocation3 + $0x50] sm:$0xff] %v198
  %340 = vst [vmem:[#allocation3 + $0x58] sm:$0xff] %v306
  %341 = vst [vmem:[#allocation3 + $0x60] sm:$0xff] %v202
  %342 = vst [vmem:[#allocation3 + $0x68] sm:$0xff] %v204
  %343 = vst [vmem:[#allocation3 + $0x70] sm:$0xff] %v311
  %344 = vst [vmem:[#allocation3 + $0x78] sm:$0xff] %v208
  %345 = vst [vmem:[#allocation3 + $0x80] sm:$0xff] %v210
  %346 = vst [vmem:[#allocation3 + $0x88] sm:$0xff] %v316
  %347 = vst [vmem:[#allocation3 + $0x90] sm:$0xff] %v214
  %348 = vst [vmem:[#allocation3 + $0x98] sm:$0xff] %v216
  %349 = vst [vmem:[#allocation3 + $0xa0] sm:$0xff] %v321
  %350 = vst [vmem:[#allocation3 + $0xa8] sm:$0xff] %v220
  %351 = vst [vmem:[#allocation3 + $0xb0] sm:$0xff] %v222
  %352 = vst [vmem:[#allocation3 + $0xb8] sm:$0xff] %v326
  %v353 = vld [vmem:[%s2] sm:$0xff]
  %v354 = vld [vmem:[%s2 + $0x8] sm:$0xff]
  %v355 = vld [vmem:[%s2 + $0x10] sm:$0xff]
  %v356 = vld [vmem:[%s2 + $0x18] sm:$0xff]
  %v357 = vld [vmem:[%s2 + $0x20] sm:$0xff]
  %v358 = vld [vmem:[%s2 + $0x28] sm:$0xff]
  %v359 = vld [vmem:[%s2 + $0x30] sm:$0xff]
  %v360 = vld [vmem:[%s2 + $0x38] sm:$0xff]
  %v361 = vld [vmem:[%s2 + $0x40] sm:$0xff]
  %v362 = vld [vmem:[%s2 + $0x48] sm:$0xff]
  %v363 = vld [vmem:[%s2 + $0x50] sm:$0xff]
  %v364 = vld [vmem:[%s2 + $0x58] sm:$0xff]
  %v365 = vld [vmem:[%s2 + $0x60] sm:$0xff]
  %v366 = vld [vmem:[%s2 + $0x68] sm:$0xff]
  %v367 = vld [vmem:[%s2 + $0x70] sm:$0xff]
  %v368 = vld [vmem:[%s2 + $0x78] sm:$0xff]
  %v369 = vld [vmem:[%s2 + $0x80] sm:$0xff]
  %v370 = vld [vmem:[%s2 + $0x88] sm:$0xff]
  %v371 = vld [vmem:[%s2 + $0x90] sm:$0xff]
  %v372 = vld [vmem:[%s2 + $0x98] sm:$0xff]
  %v373 = vld [vmem:[%s2 + $0xa0] sm:$0xff]
  %v374 = vld [vmem:[%s2 + $0xa8] sm:$0xff]
  %v375 = vld [vmem:[%s2 + $0xb0] sm:$0xff]
  %v376 = vld [vmem:[%s2 + $0xb8] sm:$0xff]
  %v377 = vld [vmem:[%s2 + $0xc0] sm:$0xff]
  %v378 = vld [vmem:[%s2 + $0xc8] sm:$0xff]
  %v379 = vld [vmem:[%s2 + $0xd0] sm:$0xff]
  %v380 = vld [vmem:[%s2 + $0xd8] sm:$0xff]
  %v381 = vld [vmem:[%s2 + $0xe0] sm:$0xff]
  %v382 = vld [vmem:[%s2 + $0xe8] sm:$0xff]
  %v383 = vld [vmem:[%s2 + $0xf0] sm:$0xff]
  %v384 = vld [vmem:[%s2 + $0xf8] sm:$0xff]
  %v385 = vld [vmem:[%s2 + $0x100] sm:$0xff]
  %v386 = vld [vmem:[%s2 + $0x108] sm:$0xff]
  %v387 = vld [vmem:[%s2 + $0x110] sm:$0xff]
  %v388 = vld [vmem:[%s2 + $0x118] sm:$0xff]
  %v389 = vld [vmem:[%s2 + $0x120] sm:$0xff]
  %v390 = vld [vmem:[%s2 + $0x128] sm:$0xff]
  %v391 = vld [vmem:[%s2 + $0x130] sm:$0xff]
  %v392 = vld [vmem:[%s2 + $0x138] sm:$0xff]
  %v393 = vld [vmem:[%s2 + $0x140] sm:$0xff]
  %v394 = vld [vmem:[%s2 + $0x148] sm:$0xff]
  %v395 = vld [vmem:[%s2 + $0x150] sm:$0xff]
  %v396 = vld [vmem:[%s2 + $0x158] sm:$0xff]
  %v397 = vld [vmem:[%s2 + $0x160] sm:$0xff]
  %v398 = vld [vmem:[%s2 + $0x168] sm:$0xff]
  %v399 = vld [vmem:[%s2 + $0x170] sm:$0xff]
  %v400 = vld [vmem:[%s2 + $0x178] sm:$0xff]
  %v401 = vld [vmem:[%s4] sm:$0x1]
  %s402 = smul.u32 0, 3
  %s403 = smul.addr %s402, 8
  %s404 = scalar_lea.vmem [#allocation3], %s403
  %v405 = vld [vmem:[%s404] sm:$0xff]
  %v406 = vld [vmem:[%s404 + $0x8] sm:$0xff]
  %v407 = vld [vmem:[%s404 + $0x10] sm:$0xff]
  %408 = vmatprep.subr.mxu0 %v354
  %409 = vmatpush1.msra.mxu0 %v353
  %410 = vmatprep.subr.mxu0 %v357
  %411 = vmatpush1.msra.mxu0 %v356
  %412 = vmatprep.subr.mxu0 %v360
  %413 = vmatpush1.msra.mxu0 %v359
  %414 = vmatprep.subr.mxu0 %v363
  %415 = vmatpush1.msra.mxu0 %v362
  %416 = vmatprep.subr.mxu0 %v366
  %417 = vmatpush1.msra.mxu0 %v365
  %418 = vmatprep.subr.mxu0 %v369
  %419 = vmatpush1.msra.mxu0 %v368
  %420 = vmatprep.subr.mxu0 %v372
  %421 = vmatpush1.msra.mxu0 %v371
  %422 = vmatprep.subr.mxu0 %v375
  %423 = vmatpush1.msra.mxu0 %v374
  %424 = vmatprep.subr.mxu0 %v378
  %425 = vmatpush1.msra.mxu0 %v377
  %426 = vmatprep.subr.mxu0 %v381
  %427 = vmatpush1.msra.mxu0 %v380
  %428 = vmatprep.subr.mxu0 %v384
  %429 = vmatpush1.msra.mxu0 %v383
  %430 = vmatprep.subr.mxu0 %v387
  %431 = vmatpush1.msra.mxu0 %v386
  %432 = vmatprep.subr.mxu0 %v390
  %433 = vmatpush1.msra.mxu0 %v389
  %434 = vmatprep.subr.mxu0 %v393
  %435 = vmatpush1.msra.mxu0 %v392
  %436 = vmatprep.subr.mxu0 %v396
  %437 = vmatpush1.msra.mxu0 %v395
  %438 = vmatprep.subr.mxu0 %v399
  %439 = vmatpush1.msra.mxu0 %v398
  %440 = vmatprep.subr.mxu0 0.0
  %441 = vmatpush1.msra.mxu0 0.0
  %442 = vmatprep.subr.mxu0 0.0
  %443 = vmatpush1.msra.mxu0 0.0
  %444 = vmatprep.subr.mxu0 0.0
  %445 = vmatpush1.msra.mxu0 0.0
  %446 = vmatprep.subr.mxu0 0.0
  %447 = vmatpush1.msra.mxu0 0.0
  %448 = vmatprep.subr.mxu0 0.0
  %449 = vmatpush1.msra.mxu0 0.0
  %450 = vmatprep.subr.mxu0 0.0
  %451 = vmatpush1.msra.mxu0 0.0
  %452 = vmatprep.subr.mxu0 0.0
  %453 = vmatpush1.msra.mxu0 0.0
  %454 = vmatprep.subr.mxu0 0.0
  %455 = vmatpush1.msra.mxu0 0.0
  %456 = vmatprep.subr.mxu0 0.0
  %457 = vmatpush1.msra.mxu0 0.0
  %458 = vmatprep.subr.mxu0 0.0
  %459 = vmatpush1.msra.mxu0 0.0
  %460 = vmatprep.subr.mxu0 0.0
  %461 = vmatpush1.msra.mxu0 0.0
  %462 = vmatprep.subr.mxu0 0.0
  %463 = vmatpush1.msra.mxu0 0.0
  %464 = vmatprep.subr.mxu0 0.0
  %465 = vmatpush1.msra.mxu0 0.0
  %466 = vmatprep.subr.mxu0 0.0
  %467 = vmatpush1.msra.mxu0 0.0
  %468 = vmatprep.subr.mxu0 0.0
  %469 = vmatpush1.msra.mxu0 0.0
  %470 = vmatprep.subr.mxu0 0.0
  %471 = vmatpush1.msra.mxu0 0.0
  %472 = vmatprep.mubr.f32.mxu0 0.0
  %473 = vmatmul.mubr.f32.gmra.mrb[0].mxu0 0.0
  %v474 = vpop.f32.mrb[0].mxu0
  %v475 = vadd.f32 0.0, %v474
  %v476 = vpop.f32.mrb[0].mxu0
  %v477 = vadd.f32 0.0, %v476
  %478 = vdwg.mxu0
  %479 = vmatprep.subr.mxu0 0.0
  %480 = vmatpush1.msra.mxu0 %v355
  %481 = vmatprep.subr.mxu0 0.0
  %482 = vmatpush1.msra.mxu0 %v358
  %483 = vmatprep.subr.mxu0 0.0
  %484 = vmatpush1.msra.mxu0 %v361
  %485 = vmatprep.subr.mxu0 0.0
  %486 = vmatpush1.msra.mxu0 %v364
  %487 = vmatprep.subr.mxu0 0.0
  %488 = vmatpush1.msra.mxu0 %v367
  %489 = vmatprep.subr.mxu0 0.0
  %490 = vmatpush1.msra.mxu0 %v370
  %491 = vmatprep.subr.mxu0 0.0
  %492 = vmatpush1.msra.mxu0 %v373
  %493 = vmatprep.subr.mxu0 0.0
  %494 = vmatpush1.msra.mxu0 %v376
  %495 = vmatprep.subr.mxu0 0.0
  %496 = vmatpush1.msra.mxu0 %v379
  %497 = vmatprep.subr.mxu0 0.0
  %498 = vmatpush1.msra.mxu0 %v382
  %499 = vmatprep.subr.mxu0 0.0
  %500 = vmatpush1.msra.mxu0 %v385
  %501 = vmatprep.subr.mxu0 0.0
  %502 = vmatpush1.msra.mxu0 %v388
  %503 = vmatprep.subr.mxu0 0.0
  %504 = vmatpush1.msra.mxu0 %v391
  %505 = vmatprep.subr.mxu0 0.0
  %506 = vmatpush1.msra.mxu0 %v394
  %507 = vmatprep.subr.mxu0 0.0
  %508 = vmatpush1.msra.mxu0 %v397
  %509 = vmatprep.subr.mxu0 0.0
  %510 = vmatpush1.msra.mxu0 %v400
  %511 = vmatprep.subr.mxu0 0.0
  %512 = vmatpush1.msra.mxu0 0.0
  %513 = vmatprep.subr.mxu0 0.0
  %514 = vmatpush1.msra.mxu0 0.0
  %515 = vmatprep.subr.mxu0 0.0
  %516 = vmatpush1.msra.mxu0 0.0
  %517 = vmatprep.subr.mxu0 0.0
  %518 = vmatpush1.msra.mxu0 0.0
  %519 = vmatprep.subr.mxu0 0.0
  %520 = vmatpush1.msra.mxu0 0.0
  %521 = vmatprep.subr.mxu0 0.0
  %522 = vmatpush1.msra.mxu0 0.0
  %523 = vmatprep.subr.mxu0 0.0
  %524 = vmatpush1.msra.mxu0 0.0
  %525 = vmatprep.subr.mxu0 0.0
  %526 = vmatpush1.msra.mxu0 0.0
  %527 = vmatprep.subr.mxu0 0.0
  %528 = vmatpush1.msra.mxu0 0.0
  %529 = vmatprep.subr.mxu0 0.0
  %530 = vmatpush1.msra.mxu0 0.0
  %531 = vmatprep.subr.mxu0 0.0
  %532 = vmatpush1.msra.mxu0 0.0
  %533 = vmatprep.subr.mxu0 0.0
  %534 = vmatpush1.msra.mxu0 0.0
  %535 = vmatprep.subr.mxu0 0.0
  %536 = vmatpush1.msra.mxu0 0.0
  %537 = vmatprep.subr.mxu0 0.0
  %538 = vmatpush1.msra.mxu0 0.0
  %539 = vmatprep.subr.mxu0 0.0
  %540 = vmatpush1.msra.mxu0 0.0
  %541 = vmatprep.subr.mxu0 0.0
  %542 = vmatpush1.msra.mxu0 0.0
  %543 = vmatprep.mubr.f32.mxu0 0.0
  %544 = vmatmul.mubr.f32.gmra.mrb[0].mxu0 0.0
  %v545 = vpop.f32.mrb[0].mxu0
  %v546 = vadd.f32 0.0, %v545
  %v547 = vpop.f32.mrb[0].mxu0
  %548 = vdwg.mxu0
  %v549 = vadd.f32 %v405, %v475
  %v550 = vxor.u32 %v549, 2147483648
  %v551 = vmul.f32 %v550, 1.442695
  %v552 = vpow.pop %v551
  %v553 = vadd.f32 %v552, 1.0
  %v554 = vrcp.pop %v553
  %v555 = vmul.f32 1.0, %v554
  %v556 = vadd.f32 %v406, %v477
  %v557 = vxor.u32 %v556, 2147483648
  %v558 = vmul.f32 %v557, 1.442695
  %v559 = vpow.pop %v558
  %v560 = vadd.f32 %v559, 1.0
  %v561 = vrcp.pop %v560
  %v562 = vmul.f32 1.0, %v561
  %v564 = vlaneseq
  %v565 = vshrl.u32 %v564, 7
  %v566 = vsub.s32 0, %v565
  %v567 = vrot.slane %v401, %v566
  %v569 = vadd.f32 %v546, %v567
  %v570 = vmul.f32 %v555, %v569
  %v571 = vadd.f32 %v407, %v570
  %v572 = vtanh.pop %v571
  %v573 = vsub.f32 1.0, %v562
  %v574 = vmul.f32 %v573, %v572
  %v575 = vmul.f32 %v562, 0.0
  %v576 = vadd.f32 %v574, %v575
  %577 = vst [vmem:[#allocation2] sm:$0xff] %v576
  %s578 = smul.u32 1, 3
  %s579 = smul.addr %s578, 8
  %s580 = scalar_lea.vmem [#allocation3], %s579
  %v581 = vld [vmem:[%s580] sm:$0xff]
  %v582 = vld [vmem:[%s580 + $0x8] sm:$0xff]
  %v583 = vld [vmem:[%s580 + $0x10] sm:$0xff]
  %584 = vmatprep.subr.mxu0 %v354
  %585 = vmatpush1.msra.mxu0 %v353
  %586 = vmatprep.subr.mxu0 %v357
  %587 = vmatpush1.msra.mxu0 %v356
  %588 = vmatprep.subr.mxu0 %v360
  %589 = vmatpush1.msra.mxu0 %v359
  %590 = vmatprep.subr.mxu0 %v363
  %591 = vmatpush1.msra.mxu0 %v362
  %592 = vmatprep.subr.mxu0 %v366
  %593 = vmatpush1.msra.mxu0 %v365
  %594 = vmatprep.subr.mxu0 %v369
  %595 = vmatpush1.msra.mxu0 %v368
  %596 = vmatprep.subr.mxu0 %v372
  %597 = vmatpush1.msra.mxu0 %v371
  %598 = vmatprep.subr.mxu0 %v375
  %599 = vmatpush1.msra.mxu0 %v374
  %600 = vmatprep.subr.mxu0 %v378
  %601 = vmatpush1.msra.mxu0 %v377
  %602 = vmatprep.subr.mxu0 %v381
  %603 = vmatpush1.msra.mxu0 %v380
  %604 = vmatprep.subr.mxu0 %v384
  %605 = vmatpush1.msra.mxu0 %v383
  %606 = vmatprep.subr.mxu0 %v387
  %607 = vmatpush1.msra.mxu0 %v386
  %608 = vmatprep.subr.mxu0 %v390
  %609 = vmatpush1.msra.mxu0 %v389
  %610 = vmatprep.subr.mxu0 %v393
  %611 = vmatpush1.msra.mxu0 %v392
  %612 = vmatprep.subr.mxu0 %v396
  %613 = vmatpush1.msra.mxu0 %v395
  %614 = vmatprep.subr.mxu0 %v399
  %615 = vmatpush1.msra.mxu0 %v398
  %616 = vmatprep.subr.mxu0 0.0
  %617 = vmatpush1.msra.mxu0 0.0
  %618 = vmatprep.subr.mxu0 0.0
  %619 = vmatpush1.msra.mxu0 0.0
  %620 = vmatprep.subr.mxu0 0.0
  %621 = vmatpush1.msra.mxu0 0.0
  %622 = vmatprep.subr.mxu0 0.0
  %623 = vmatpush1.msra.mxu0 0.0
  %624 = vmatprep.subr.mxu0 0.0
  %625 = vmatpush1.msra.mxu0 0.0
  %626 = vmatprep.subr.mxu0 0.0
  %627 = vmatpush1.msra.mxu0 0.0
  %628 = vmatprep.subr.mxu0 0.0
  %629 = vmatpush1.msra.mxu0 0.0
  %630 = vmatprep.subr.mxu0 0.0
  %631 = vmatpush1.msra.mxu0 0.0
  %632 = vmatprep.subr.mxu0 0.0
  %633 = vmatpush1.msra.mxu0 0.0
  %634 = vmatprep.subr.mxu0 0.0
  %635 = vmatpush1.msra.mxu0 0.0
  %636 = vmatprep.subr.mxu0 0.0
  %637 = vmatpush1.msra.mxu0 0.0
  %638 = vmatprep.subr.mxu0 0.0
  %639 = vmatpush1.msra.mxu0 0.0
  %640 = vmatprep.subr.mxu0 0.0
  %641 = vmatpush1.msra.mxu0 0.0
  %642 = vmatprep.subr.mxu0 0.0
  %643 = vmatpush1.msra.mxu0 0.0
  %644 = vmatprep.subr.mxu0 0.0
  %645 = vmatpush1.msra.mxu0 0.0
  %646 = vmatprep.subr.mxu0 0.0
  %647 = vmatpush1.msra.mxu0 0.0
  %648 = vmatprep.mubr.f32.mxu0 0.0
  %649 = vmatmul.mubr.f32.gmra.mrb[0].mxu0 %v576
  %v650 = vpop.f32.mrb[0].mxu0
  %v651 = vadd.f32 0.0, %v650
  %v652 = vpop.f32.mrb[0].mxu0
  %v653 = vadd.f32 0.0, %v652
  %654 = vdwg.mxu0
  %655 = vmatprep.subr.mxu0 0.0
  %656 = vmatpush1.msra.mxu0 %v355
  %657 = vmatprep.subr.mxu0 0.0
  %658 = vmatpush1.msra.mxu0 %v358
  %659 = vmatprep.subr.mxu0 0.0
  %660 = vmatpush1.msra.mxu0 %v361
  %661 = vmatprep.subr.mxu0 0.0
  %662 = vmatpush1.msra.mxu0 %v364
  %663 = vmatprep.subr.mxu0 0.0
  %664 = vmatpush1.msra.mxu0 %v367
  %665 = vmatprep.subr.mxu0 0.0
  %666 = vmatpush1.msra.mxu0 %v370
  %667 = vmatprep.subr.mxu0 0.0
  %668 = vmatpush1.msra.mxu0 %v373
  %669 = vmatprep.subr.mxu0 0.0
  %670 = vmatpush1.msra.mxu0 %v376
  %671 = vmatprep.subr.mxu0 0.0
  %672 = vmatpush1.msra.mxu0 %v379
  %673 = vmatprep.subr.mxu0 0.0
  %674 = vmatpush1.msra.mxu0 %v382
  %675 = vmatprep.subr.mxu0 0.0
  %676 = vmatpush1.msra.mxu0 %v385
  %677 = vmatprep.subr.mxu0 0.0
  %678 = vmatpush1.msra.mxu0 %v388
  %679 = vmatprep.subr.mxu0 0.0
  %680 = vmatpush1.msra.mxu0 %v391
  %681 = vmatprep.subr.mxu0 0.0
  %682 = vmatpush1.msra.mxu0 %v394
  %683 = vmatprep.subr.mxu0 0.0
  %684 = vmatpush1.msra.mxu0 %v397
  %685 = vmatprep.subr.mxu0 0.0
  %686 = vmatpush1.msra.mxu0 %v400
  %687 = vmatprep.subr.mxu0 0.0
  %688 = vmatpush1.msra.mxu0 0.0
  %689 = vmatprep.subr.mxu0 0.0
  %690 = vmatpush1.msra.mxu0 0.0
  %691 = vmatprep.subr.mxu0 0.0
  %692 = vmatpush1.msra.mxu0 0.0
  %693 = vmatprep.subr.mxu0 0.0
  %694 = vmatpush1.msra.mxu0 0.0
  %695 = vmatprep.subr.mxu0 0.0
  %696 = vmatpush1.msra.mxu0 0.0
  %697 = vmatprep.subr.mxu0 0.0
  %698 = vmatpush1.msra.mxu0 0.0
  %699 = vmatprep.subr.mxu0 0.0
  %700 = vmatpush1.msra.mxu0 0.0
  %701 = vmatprep.subr.mxu0 0.0
  %702 = vmatpush1.msra.mxu0 0.0
  %703 = vmatprep.subr.mxu0 0.0
  %704 = vmatpush1.msra.mxu0 0.0
  %705 = vmatprep.subr.mxu0 0.0
  %706 = vmatpush1.msra.mxu0 0.0
  %707 = vmatprep.subr.mxu0 0.0
  %708 = vmatpush1.msra.mxu0 0.0
  %709 = vmatprep.subr.mxu0 0.0
  %710 = vmatpush1.msra.mxu0 0.0
  %711 = vmatprep.subr.mxu0 0.0
  %712 = vmatpush1.msra.mxu0 0.0
  %713 = vmatprep.subr.mxu0 0.0
  %714 = vmatpush1.msra.mxu0 0.0
  %715 = vmatprep.subr.mxu0 0.0
  %716 = vmatpush1.msra.mxu0 0.0
  %717 = vmatprep.subr.mxu0 0.0
  %718 = vmatpush1.msra.mxu0 0.0
  %719 = vmatprep.mubr.f32.mxu0 0.0
  %720 = vmatmul.mubr.f32.gmra.mrb[0].mxu0 %v576
  %v721 = vpop.f32.mrb[0].mxu0
  %v722 = vadd.f32 0.0, %v721
  %v723 = vpop.f32.mrb[0].mxu0
  %724 = vdwg.mxu0
  %v725 = vadd.f32 %v581, %v651
  %v726 = vxor.u32 %v725, 2147483648
  %v727 = vmul.f32 %v726, 1.442695
  %v728 = vpow.pop %v727
  %v729 = vadd.f32 %v728, 1.0
  %v730 = vrcp.pop %v729
  %v731 = vmul.f32 1.0, %v730
  %v732 = vadd.f32 %v582, %v653
  %v733 = vxor.u32 %v732, 2147483648
  %v734 = vmul.f32 %v733, 1.442695
  %v735 = vpow.pop %v734
  %v736 = vadd.f32 %v735, 1.0
  %v737 = vrcp.pop %v736
  %v738 = vmul.f32 1.0, %v737
  %v739 = vadd.f32 %v722, %v567
  %v740 = vmul.f32 %v731, %v739
  %v741 = vadd.f32 %v583, %v740
  %v742 = vtanh.pop %v741
  %v743 = vsub.f32 1.0, %v738
  %v744 = vmul.f32 %v743, %v742
  %v745 = vmul.f32 %v738, %v576
  %v746 = vadd.f32 %v744, %v745
  %s747 = scalar_lea.vmem [#allocation2], 8
  %748 = vst [vmem:[%s747] sm:$0xff] %v746
  %s749 = smul.u32 2, 3
  %s750 = smul.addr %s749, 8
  %s751 = scalar_lea.vmem [#allocation3], %s750
  %v752 = vld [vmem:[%s751] sm:$0xff]
  %v753 = vld [vmem:[%s751 + $0x8] sm:$0xff]
  %v754 = vld [vmem:[%s751 + $0x10] sm:$0xff]
  %755 = vmatprep.subr.mxu0 %v354
  %756 = vmatpush1.msra.mxu0 %v353
  %757 = vmatprep.subr.mxu0 %v357
  %758 = vmatpush1.msra.mxu0 %v356
  %759 = vmatprep.subr.mxu0 %v360
  %760 = vmatpush1.msra.mxu0 %v359
  %761 = vmatprep.subr.mxu0 %v363
  %762 = vmatpush1.msra.mxu0 %v362
  %763 = vmatprep.subr.mxu0 %v366
  %764 = vmatpush1.msra.mxu0 %v365
  %765 = vmatprep.subr.mxu0 %v369
  %766 = vmatpush1.msra.mxu0 %v368
  %767 = vmatprep.subr.mxu0 %v372
  %768 = vmatpush1.msra.mxu0 %v371
  %769 = vmatprep.subr.mxu0 %v375
  %770 = vmatpush1.msra.mxu0 %v374
  %771 = vmatprep.subr.mxu0 %v378
  %772 = vmatpush1.msra.mxu0 %v377
  %773 = vmatprep.subr.mxu0 %v381
  %774 = vmatpush1.msra.mxu0 %v380
  %775 = vmatprep.subr.mxu0 %v384
  %776 = vmatpush1.msra.mxu0 %v383
  %777 = vmatprep.subr.mxu0 %v387
  %778 = vmatpush1.msra.mxu0 %v386
  %779 = vmatprep.subr.mxu0 %v390
  %780 = vmatpush1.msra.mxu0 %v389
  %781 = vmatprep.subr.mxu0 %v393
  %782 = vmatpush1.msra.mxu0 %v392
  %783 = vmatprep.subr.mxu0 %v396
  %784 = vmatpush1.msra.mxu0 %v395
  %785 = vmatprep.subr.mxu0 %v399
  %786 = vmatpush1.msra.mxu0 %v398
  %787 = vmatprep.subr.mxu0 0.0
  %788 = vmatpush1.msra.mxu0 0.0
  %789 = vmatprep.subr.mxu0 0.0
  %790 = vmatpush1.msra.mxu0 0.0
  %791 = vmatprep.subr.mxu0 0.0
  %792 = vmatpush1.msra.mxu0 0.0
  %793 = vmatprep.subr.mxu0 0.0
  %794 = vmatpush1.msra.mxu0 0.0
  %795 = vmatprep.subr.mxu0 0.0
  %796 = vmatpush1.msra.mxu0 0.0
  %797 = vmatprep.subr.mxu0 0.0
  %798 = vmatpush1.msra.mxu0 0.0
  %799 = vmatprep.subr.mxu0 0.0
  %800 = vmatpush1.msra.mxu0 0.0
  %801 = vmatprep.subr.mxu0 0.0
  %802 = vmatpush1.msra.mxu0 0.0
  %803 = vmatprep.subr.mxu0 0.0
  %804 = vmatpush1.msra.mxu0 0.0
  %805 = vmatprep.subr.mxu0 0.0
  %806 = vmatpush1.msra.mxu0 0.0
  %807 = vmatprep.subr.mxu0 0.0
  %808 = vmatpush1.msra.mxu0 0.0
  %809 = vmatprep.subr.mxu0 0.0
  %810 = vmatpush1.msra.mxu0 0.0
  %811 = vmatprep.subr.mxu0 0.0
  %812 = vmatpush1.msra.mxu0 0.0
  %813 = vmatprep.subr.mxu0 0.0
  %814 = vmatpush1.msra.mxu0 0.0
  %815 = vmatprep.subr.mxu0 0.0
  %816 = vmatpush1.msra.mxu0 0.0
  %817 = vmatprep.subr.mxu0 0.0
  %818 = vmatpush1.msra.mxu0 0.0
  %819 = vmatprep.mubr.f32.mxu0 0.0
  %820 = vmatmul.mubr.f32.gmra.mrb[0].mxu0 %v746
  %v821 = vpop.f32.mrb[0].mxu0
  %v822 = vadd.f32 0.0, %v821
  %v823 = vpop.f32.mrb[0].mxu0
  %v824 = vadd.f32 0.0, %v823
  %825 = vdwg.mxu0
  %826 = vmatprep.subr.mxu0 0.0
  %827 = vmatpush1.msra.mxu0 %v355
  %828 = vmatprep.subr.mxu0 0.0
  %829 = vmatpush1.msra.mxu0 %v358
  %830 = vmatprep.subr.mxu0 0.0
  %831 = vmatpush1.msra.mxu0 %v361
  %832 = vmatprep.subr.mxu0 0.0
  %833 = vmatpush1.msra.mxu0 %v364
  %834 = vmatprep.subr.mxu0 0.0
  %835 = vmatpush1.msra.mxu0 %v367
  %836 = vmatprep.subr.mxu0 0.0
  %837 = vmatpush1.msra.mxu0 %v370
  %838 = vmatprep.subr.mxu0 0.0
  %839 = vmatpush1.msra.mxu0 %v373
  %840 = vmatprep.subr.mxu0 0.0
  %841 = vmatpush1.msra.mxu0 %v376
  %842 = vmatprep.subr.mxu0 0.0
  %843 = vmatpush1.msra.mxu0 %v379
  %844 = vmatprep.subr.mxu0 0.0
  %845 = vmatpush1.msra.mxu0 %v382
  %846 = vmatprep.subr.mxu0 0.0
  %847 = vmatpush1.msra.mxu0 %v385
  %848 = vmatprep.subr.mxu0 0.0
  %849 = vmatpush1.msra.mxu0 %v388
  %850 = vmatprep.subr.mxu0 0.0
  %851 = vmatpush1.msra.mxu0 %v391
  %852 = vmatprep.subr.mxu0 0.0
  %853 = vmatpush1.msra.mxu0 %v394
  %854 = vmatprep.subr.mxu0 0.0
  %855 = vmatpush1.msra.mxu0 %v397
  %856 = vmatprep.subr.mxu0 0.0
  %857 = vmatpush1.msra.mxu0 %v400
  %858 = vmatprep.subr.mxu0 0.0
  %859 = vmatpush1.msra.mxu0 0.0
  %860 = vmatprep.subr.mxu0 0.0
  %861 = vmatpush1.msra.mxu0 0.0
  %862 = vmatprep.subr.mxu0 0.0
  %863 = vmatpush1.msra.mxu0 0.0
  %864 = vmatprep.subr.mxu0 0.0
  %865 = vmatpush1.msra.mxu0 0.0
  %866 = vmatprep.subr.mxu0 0.0
  %867 = vmatpush1.msra.mxu0 0.0
  %868 = vmatprep.subr.mxu0 0.0
  %869 = vmatpush1.msra.mxu0 0.0
  %870 = vmatprep.subr.mxu0 0.0
  %871 = vmatpush1.msra.mxu0 0.0
  %872 = vmatprep.subr.mxu0 0.0
  %873 = vmatpush1.msra.mxu0 0.0
  %874 = vmatprep.subr.mxu0 0.0
  %875 = vmatpush1.msra.mxu0 0.0
  %876 = vmatprep.subr.mxu0 0.0
  %877 = vmatpush1.msra.mxu0 0.0
  %878 = vmatprep.subr.mxu0 0.0
  %879 = vmatpush1.msra.mxu0 0.0
  %880 = vmatprep.subr.mxu0 0.0
  %881 = vmatpush1.msra.mxu0 0.0
  %882 = vmatprep.subr.mxu0 0.0
  %883 = vmatpush1.msra.mxu0 0.0
  %884 = vmatprep.subr.mxu0 0.0
  %885 = vmatpush1.msra.mxu0 0.0
  %886 = vmatprep.subr.mxu0 0.0
  %887 = vmatpush1.msra.mxu0 0.0
  %888 = vmatprep.subr.mxu0 0.0
  %889 = vmatpush1.msra.mxu0 0.0
  %890 = vmatprep.mubr.f32.mxu0 0.0
  %891 = vmatmul.mubr.f32.gmra.mrb[0].mxu0 %v746
  %v892 = vpop.f32.mrb[0].mxu0
  %v893 = vadd.f32 0.0, %v892
  %v894 = vpop.f32.mrb[0].mxu0
  %895 = vdwg.mxu0
  %v896 = vadd.f32 %v752, %v822
  %v897 = vxor.u32 %v896, 2147483648
  %v898 = vmul.f32 %v897, 1.442695
  %v899 = vpow.pop %v898
  %v900 = vadd.f32 %v899, 1.0
  %v901 = vrcp.pop %v900
  %v902 = vmul.f32 1.0, %v901
  %v903 = vadd.f32 %v753, %v824
  %v904 = vxor.u32 %v903, 2147483648
  %v905 = vmul.f32 %v904, 1.442695
  %v906 = vpow.pop %v905
  %v907 = vadd.f32 %v906, 1.0
  %v908 = vrcp.pop %v907
  %v909 = vmul.f32 1.0, %v908
  %v910 = vadd.f32 %v893, %v567
  %v911 = vmul.f32 %v902, %v910
  %v912 = vadd.f32 %v754, %v911
  %v913 = vtanh.pop %v912
  %v914 = vsub.f32 1.0, %v909
  %v915 = vmul.f32 %v914, %v913
  %v916 = vmul.f32 %v909, %v746
  %v917 = vadd.f32 %v915, %v916
  %s918 = scalar_lea.vmem [#allocation2], 16
  %919 = vst [vmem:[%s918] sm:$0xff] %v917
  %s920 = smul.u32 3, 3
  %s921 = smul.addr %s920, 8
  %s922 = scalar_lea.vmem [#allocation3], %s921
  %v923 = vld [vmem:[%s922] sm:$0xff]
  %v924 = vld [vmem:[%s922 + $0x8] sm:$0xff]
  %v925 = vld [vmem:[%s922 + $0x10] sm:$0xff]
  %926 = vmatprep.subr.mxu0 %v354
  %927 = vmatpush1.msra.mxu0 %v353
  %928 = vmatprep.subr.mxu0 %v357
  %929 = vmatpush1.msra.mxu0 %v356
  %930 = vmatprep.subr.mxu0 %v360
  %931 = vmatpush1.msra.mxu0 %v359
  %932 = vmatprep.subr.mxu0 %v363
  %933 = vmatpush1.msra.mxu0 %v362
  %934 = vmatprep.subr.mxu0 %v366
  %935 = vmatpush1.msra.mxu0 %v365
  %936 = vmatprep.subr.mxu0 %v369
  %937 = vmatpush1.msra.mxu0 %v368
  %938 = vmatprep.subr.mxu0 %v372
  %939 = vmatpush1.msra.mxu0 %v371
  %940 = vmatprep.subr.mxu0 %v375
  %941 = vmatpush1.msra.mxu0 %v374
  %942 = vmatprep.subr.mxu0 %v378
  %943 = vmatpush1.msra.mxu0 %v377
  %944 = vmatprep.subr.mxu0 %v381
  %945 = vmatpush1.msra.mxu0 %v380
  %946 = vmatprep.subr.mxu0 %v384
  %947 = vmatpush1.msra.mxu0 %v383
  %948 = vmatprep.subr.mxu0 %v387
  %949 = vmatpush1.msra.mxu0 %v386
  %950 = vmatprep.subr.mxu0 %v390
  %951 = vmatpush1.msra.mxu0 %v389
  %952 = vmatprep.subr.mxu0 %v393
  %953 = vmatpush1.msra.mxu0 %v392
  %954 = vmatprep.subr.mxu0 %v396
  %955 = vmatpush1.msra.mxu0 %v395
  %956 = vmatprep.subr.mxu0 %v399
  %957 = vmatpush1.msra.mxu0 %v398
  %958 = vmatprep.subr.mxu0 0.0
  %959 = vmatpush1.msra.mxu0 0.0
  %960 = vmatprep.subr.mxu0 0.0
  %961 = vmatpush1.msra.mxu0 0.0
  %962 = vmatprep.subr.mxu0 0.0
  %963 = vmatpush1.msra.mxu0 0.0
  %964 = vmatprep.subr.mxu0 0.0
  %965 = vmatpush1.msra.mxu0 0.0
  %966 = vmatprep.subr.mxu0 0.0
  %967 = vmatpush1.msra.mxu0 0.0
  %968 = vmatprep.subr.mxu0 0.0
  %969 = vmatpush1.msra.mxu0 0.0
  %970 = vmatprep.subr.mxu0 0.0
  %971 = vmatpush1.msra.mxu0 0.0
  %972 = vmatprep.subr.mxu0 0.0
  %973 = vmatpush1.msra.mxu0 0.0
  %974 = vmatprep.subr.mxu0 0.0
  %975 = vmatpush1.msra.mxu0 0.0
  %976 = vmatprep.subr.mxu0 0.0
  %977 = vmatpush1.msra.mxu0 0.0
  %978 = vmatprep.subr.mxu0 0.0
  %979 = vmatpush1.msra.mxu0 0.0
  %980 = vmatprep.subr.mxu0 0.0
  %981 = vmatpush1.msra.mxu0 0.0
  %982 = vmatprep.subr.mxu0 0.0
  %983 = vmatpush1.msra.mxu0 0.0
  %984 = vmatprep.subr.mxu0 0.0
  %985 = vmatpush1.msra.mxu0 0.0
  %986 = vmatprep.subr.mxu0 0.0
  %987 = vmatpush1.msra.mxu0 0.0
  %988 = vmatprep.subr.mxu0 0.0
  %989 = vmatpush1.msra.mxu0 0.0
  %990 = vmatprep.mubr.f32.mxu0 0.0
  %991 = vmatmul.mubr.f32.gmra.mrb[0].mxu0 %v917
  %v992 = vpop.f32.mrb[0].mxu0
  %v993 = vadd.f32 0.0, %v992
  %v994 = vpop.f32.mrb[0].mxu0
  %v995 = vadd.f32 0.0, %v994
  %996 = vdwg.mxu0
  %997 = vmatprep.subr.mxu0 0.0
  %998 = vmatpush1.msra.mxu0 %v355
  %999 = vmatprep.subr.mxu0 0.0
  %1000 = vmatpush1.msra.mxu0 %v358
  %1001 = vmatprep.subr.mxu0 0.0
  %1002 = vmatpush1.msra.mxu0 %v361
  %1003 = vmatprep.subr.mxu0 0.0
  %1004 = vmatpush1.msra.mxu0 %v364
  %1005 = vmatprep.subr.mxu0 0.0
  %1006 = vmatpush1.msra.mxu0 %v367
  %1007 = vmatprep.subr.mxu0 0.0
  %1008 = vmatpush1.msra.mxu0 %v370
  %1009 = vmatprep.subr.mxu0 0.0
  %1010 = vmatpush1.msra.mxu0 %v373
  %1011 = vmatprep.subr.mxu0 0.0
  %1012 = vmatpush1.msra.mxu0 %v376
  %1013 = vmatprep.subr.mxu0 0.0
  %1014 = vmatpush1.msra.mxu0 %v379
  %1015 = vmatprep.subr.mxu0 0.0
  %1016 = vmatpush1.msra.mxu0 %v382
  %1017 = vmatprep.subr.mxu0 0.0
  %1018 = vmatpush1.msra.mxu0 %v385
  %1019 = vmatprep.subr.mxu0 0.0
  %1020 = vmatpush1.msra.mxu0 %v388
  %1021 = vmatprep.subr.mxu0 0.0
  %1022 = vmatpush1.msra.mxu0 %v391
  %1023 = vmatprep.subr.mxu0 0.0
  %1024 = vmatpush1.msra.mxu0 %v394
  %1025 = vmatprep.subr.mxu0 0.0
  %1026 = vmatpush1.msra.mxu0 %v397
  %1027 = vmatprep.subr.mxu0 0.0
  %1028 = vmatpush1.msra.mxu0 %v400
  %1029 = vmatprep.subr.mxu0 0.0
  %1030 = vmatpush1.msra.mxu0 0.0
  %1031 = vmatprep.subr.mxu0 0.0
  %1032 = vmatpush1.msra.mxu0 0.0
  %1033 = vmatprep.subr.mxu0 0.0
  %1034 = vmatpush1.msra.mxu0 0.0
  %1035 = vmatprep.subr.mxu0 0.0
  %1036 = vmatpush1.msra.mxu0 0.0
  %1037 = vmatprep.subr.mxu0 0.0
  %1038 = vmatpush1.msra.mxu0 0.0
  %1039 = vmatprep.subr.mxu0 0.0
  %1040 = vmatpush1.msra.mxu0 0.0
  %1041 = vmatprep.subr.mxu0 0.0
  %1042 = vmatpush1.msra.mxu0 0.0
  %1043 = vmatprep.subr.mxu0 0.0
  %1044 = vmatpush1.msra.mxu0 0.0
  %1045 = vmatprep.subr.mxu0 0.0
  %1046 = vmatpush1.msra.mxu0 0.0
  %1047 = vmatprep.subr.mxu0 0.0
  %1048 = vmatpush1.msra.mxu0 0.0
  %1049 = vmatprep.subr.mxu0 0.0
  %1050 = vmatpush1.msra.mxu0 0.0
  %1051 = vmatprep.subr.mxu0 0.0
  %1052 = vmatpush1.msra.mxu0 0.0
  %1053 = vmatprep.subr.mxu0 0.0
  %1054 = vmatpush1.msra.mxu0 0.0
  %1055 = vmatprep.subr.mxu0 0.0
  %1056 = vmatpush1.msra.mxu0 0.0
  %1057 = vmatprep.subr.mxu0 0.0
  %1058 = vmatpush1.msra.mxu0 0.0
  %1059 = vmatprep.subr.mxu0 0.0
  %1060 = vmatpush1.msra.mxu0 0.0
  %1061 = vmatprep.mubr.f32.mxu0 0.0
  %1062 = vmatmul.mubr.f32.gmra.mrb[0].mxu0 %v917
  %v1063 = vpop.f32.mrb[0].mxu0
  %v1064 = vadd.f32 0.0, %v1063
  %v1065 = vpop.f32.mrb[0].mxu0
  %1066 = vdwg.mxu0
  %v1067 = vadd.f32 %v923, %v993
  %v1068 = vxor.u32 %v1067, 2147483648
  %v1069 = vmul.f32 %v1068, 1.442695
  %v1070 = vpow.pop %v1069
  %v1071 = vadd.f32 %v1070, 1.0
  %v1072 = vrcp.pop %v1071
  %v1073 = vmul.f32 1.0, %v1072
  %v1074 = vadd.f32 %v924, %v995
  %v1075 = vxor.u32 %v1074, 2147483648
  %v1076 = vmul.f32 %v1075, 1.442695
  %v1077 = vpow.pop %v1076
  %v1078 = vadd.f32 %v1077, 1.0
  %v1079 = vrcp.pop %v1078
  %v1080 = vmul.f32 1.0, %v1079
  %v1081 = vadd.f32 %v1064, %v567
  %v1082 = vmul.f32 %v1073, %v1081
  %v1083 = vadd.f32 %v925, %v1082
  %v1084 = vtanh.pop %v1083
  %v1085 = vsub.f32 1.0, %v1080
  %v1086 = vmul.f32 %v1085, %v1084
  %v1087 = vmul.f32 %v1080, %v917
  %v1088 = vadd.f32 %v1086, %v1087
  %s1089 = scalar_lea.vmem [#allocation2], 24
  %1090 = vst [vmem:[%s1089] sm:$0xff] %v1088
  %s1091 = smul.u32 4, 3
  %s1092 = smul.addr %s1091, 8
  %s1093 = scalar_lea.vmem [#allocation3], %s1092
  %v1094 = vld [vmem:[%s1093] sm:$0xff]
  %v1095 = vld [vmem:[%s1093 + $0x8] sm:$0xff]
  %v1096 = vld [vmem:[%s1093 + $0x10] sm:$0xff]
  %1097 = vmatprep.subr.mxu0 %v354
  %1098 = vmatpush1.msra.mxu0 %v353
  %1099 = vmatprep.subr.mxu0 %v357
  %1100 = vmatpush1.msra.mxu0 %v356
  %1101 = vmatprep.subr.mxu0 %v360
  %1102 = vmatpush1.msra.mxu0 %v359
  %1103 = vmatprep.subr.mxu0 %v363
  %1104 = vmatpush1.msra.mxu0 %v362
  %1105 = vmatprep.subr.mxu0 %v366
  %1106 = vmatpush1.msra.mxu0 %v365
  %1107 = vmatprep.subr.mxu0 %v369
  %1108 = vmatpush1.msra.mxu0 %v368
  %1109 = vmatprep.subr.mxu0 %v372
  %1110 = vmatpush1.msra.mxu0 %v371
  %1111 = vmatprep.subr.mxu0 %v375
  %1112 = vmatpush1.msra.mxu0 %v374
  %1113 = vmatprep.subr.mxu0 %v378
  %1114 = vmatpush1.msra.mxu0 %v377
  %1115 = vmatprep.subr.mxu0 %v381
  %1116 = vmatpush1.msra.mxu0 %v380
  %1117 = vmatprep.subr.mxu0 %v384
  %1118 = vmatpush1.msra.mxu0 %v383
  %1119 = vmatprep.subr.mxu0 %v387
  %1120 = vmatpush1.msra.mxu0 %v386
  %1121 = vmatprep.subr.mxu0 %v390
  %1122 = vmatpush1.msra.mxu0 %v389
  %1123 = vmatprep.subr.mxu0 %v393
  %1124 = vmatpush1.msra.mxu0 %v392
  %1125 = vmatprep.subr.mxu0 %v396
  %1126 = vmatpush1.msra.mxu0 %v395
  %1127 = vmatprep.subr.mxu0 %v399
  %1128 = vmatpush1.msra.mxu0 %v398
  %1129 = vmatprep.subr.mxu0 0.0
  %1130 = vmatpush1.msra.mxu0 0.0
  %1131 = vmatprep.subr.mxu0 0.0
  %1132 = vmatpush1.msra.mxu0 0.0
  %1133 = vmatprep.subr.mxu0 0.0
  %1134 = vmatpush1.msra.mxu0 0.0
  %1135 = vmatprep.subr.mxu0 0.0
  %1136 = vmatpush1.msra.mxu0 0.0
  %1137 = vmatprep.subr.mxu0 0.0
  %1138 = vmatpush1.msra.mxu0 0.0
  %1139 = vmatprep.subr.mxu0 0.0
  %1140 = vmatpush1.msra.mxu0 0.0
  %1141 = vmatprep.subr.mxu0 0.0
  %1142 = vmatpush1.msra.mxu0 0.0
  %1143 = vmatprep.subr.mxu0 0.0
  %1144 = vmatpush1.msra.mxu0 0.0
  %1145 = vmatprep.subr.mxu0 0.0
  %1146 = vmatpush1.msra.mxu0 0.0
  %1147 = vmatprep.subr.mxu0 0.0
  %1148 = vmatpush1.msra.mxu0 0.0
  %1149 = vmatprep.subr.mxu0 0.0
  %1150 = vmatpush1.msra.mxu0 0.0
  %1151 = vmatprep.subr.mxu0 0.0
  %1152 = vmatpush1.msra.mxu0 0.0
  %1153 = vmatprep.subr.mxu0 0.0
  %1154 = vmatpush1.msra.mxu0 0.0
  %1155 = vmatprep.subr.mxu0 0.0
  %1156 = vmatpush1.msra.mxu0 0.0
  %1157 = vmatprep.subr.mxu0 0.0
  %1158 = vmatpush1.msra.mxu0 0.0
  %1159 = vmatprep.subr.mxu0 0.0
  %1160 = vmatpush1.msra.mxu0 0.0
  %1161 = vmatprep.mubr.f32.mxu0 0.0
  %1162 = vmatmul.mubr.f32.gmra.mrb[0].mxu0 %v1088
  %v1163 = vpop.f32.mrb[0].mxu0
  %v1164 = vadd.f32 0.0, %v1163
  %v1165 = vpop.f32.mrb[0].mxu0
  %v1166 = vadd.f32 0.0, %v1165
  %1167 = vdwg.mxu0
  %1168 = vmatprep.subr.mxu0 0.0
  %1169 = vmatpush1.msra.mxu0 %v355
  %1170 = vmatprep.subr.mxu0 0.0
  %1171 = vmatpush1.msra.mxu0 %v358
  %1172 = vmatprep.subr.mxu0 0.0
  %1173 = vmatpush1.msra.mxu0 %v361
  %1174 = vmatprep.subr.mxu0 0.0
  %1175 = vmatpush1.msra.mxu0 %v364
  %1176 = vmatprep.subr.mxu0 0.0
  %1177 = vmatpush1.msra.mxu0 %v367
  %1178 = vmatprep.subr.mxu0 0.0
  %1179 = vmatpush1.msra.mxu0 %v370
  %1180 = vmatprep.subr.mxu0 0.0
  %1181 = vmatpush1.msra.mxu0 %v373
  %1182 = vmatprep.subr.mxu0 0.0
  %1183 = vmatpush1.msra.mxu0 %v376
  %1184 = vmatprep.subr.mxu0 0.0
  %1185 = vmatpush1.msra.mxu0 %v379
  %1186 = vmatprep.subr.mxu0 0.0
  %1187 = vmatpush1.msra.mxu0 %v382
  %1188 = vmatprep.subr.mxu0 0.0
  %1189 = vmatpush1.msra.mxu0 %v385
  %1190 = vmatprep.subr.mxu0 0.0
  %1191 = vmatpush1.msra.mxu0 %v388
  %1192 = vmatprep.subr.mxu0 0.0
  %1193 = vmatpush1.msra.mxu0 %v391
  %1194 = vmatprep.subr.mxu0 0.0
  %1195 = vmatpush1.msra.mxu0 %v394
  %1196 = vmatprep.subr.mxu0 0.0
  %1197 = vmatpush1.msra.mxu0 %v397
  %1198 = vmatprep.subr.mxu0 0.0
  %1199 = vmatpush1.msra.mxu0 %v400
  %1200 = vmatprep.subr.mxu0 0.0
  %1201 = vmatpush1.msra.mxu0 0.0
  %1202 = vmatprep.subr.mxu0 0.0
  %1203 = vmatpush1.msra.mxu0 0.0
  %1204 = vmatprep.subr.mxu0 0.0
  %1205 = vmatpush1.msra.mxu0 0.0
  %1206 = vmatprep.subr.mxu0 0.0
  %1207 = vmatpush1.msra.mxu0 0.0
  %1208 = vmatprep.subr.mxu0 0.0
  %1209 = vmatpush1.msra.mxu0 0.0
  %1210 = vmatprep.subr.mxu0 0.0
  %1211 = vmatpush1.msra.mxu0 0.0
  %1212 = vmatprep.subr.mxu0 0.0
  %1213 = vmatpush1.msra.mxu0 0.0
  %1214 = vmatprep.subr.mxu0 0.0
  %1215 = vmatpush1.msra.mxu0 0.0
  %1216 = vmatprep.subr.mxu0 0.0
  %1217 = vmatpush1.msra.mxu0 0.0
  %1218 = vmatprep.subr.mxu0 0.0
  %1219 = vmatpush1.msra.mxu0 0.0
  %1220 = vmatprep.subr.mxu0 0.0
  %1221 = vmatpush1.msra.mxu0 0.0
  %1222 = vmatprep.subr.mxu0 0.0
  %1223 = vmatpush1.msra.mxu0 0.0
  %1224 = vmatprep.subr.mxu0 0.0
  %1225 = vmatpush1.msra.mxu0 0.0
  %1226 = vmatprep.subr.mxu0 0.0
  %1227 = vmatpush1.msra.mxu0 0.0
  %1228 = vmatprep.subr.mxu0 0.0
  %1229 = vmatpush1.msra.mxu0 0.0
  %1230 = vmatprep.subr.mxu0 0.0
  %1231 = vmatpush1.msra.mxu0 0.0
  %1232 = vmatprep.mubr.f32.mxu0 0.0
  %1233 = vmatmul.mubr.f32.gmra.mrb[0].mxu0 %v1088
  %v1234 = vpop.f32.mrb[0].mxu0
  %v1235 = vadd.f32 0.0, %v1234
  %v1236 = vpop.f32.mrb[0].mxu0
  %1237 = vdwg.mxu0
  %v1238 = vadd.f32 %v1094, %v1164
  %v1239 = vxor.u32 %v1238, 2147483648
  %v1240 = vmul.f32 %v1239, 1.442695
  %v1241 = vpow.pop %v1240
  %v1242 = vadd.f32 %v1241, 1.0
  %v1243 = vrcp.pop %v1242
  %v1244 = vmul.f32 1.0, %v1243
  %v1245 = vadd.f32 %v1095, %v1166
  %v1246 = vxor.u32 %v1245, 2147483648
  %v1247 = vmul.f32 %v1246, 1.442695
  %v1248 = vpow.pop %v1247
  %v1249 = vadd.f32 %v1248, 1.0
  %v1250 = vrcp.pop %v1249
  %v1251 = vmul.f32 1.0, %v1250
  %v1252 = vadd.f32 %v1235, %v567
  %v1253 = vmul.f32 %v1244, %v1252
  %v1254 = vadd.f32 %v1096, %v1253
  %v1255 = vtanh.pop %v1254
  %v1256 = vsub.f32 1.0, %v1251
  %v1257 = vmul.f32 %v1256, %v1255
  %v1258 = vmul.f32 %v1251, %v1088
  %v1259 = vadd.f32 %v1257, %v1258
  %s1260 = scalar_lea.vmem [#allocation2], 32
  %1261 = vst [vmem:[%s1260] sm:$0xff] %v1259
  %s1262 = smul.u32 5, 3
  %s1263 = smul.addr %s1262, 8
  %s1264 = scalar_lea.vmem [#allocation3], %s1263
  %v1265 = vld [vmem:[%s1264] sm:$0xff]
  %v1266 = vld [vmem:[%s1264 + $0x8] sm:$0xff]
  %v1267 = vld [vmem:[%s1264 + $0x10] sm:$0xff]
  %1268 = vmatprep.subr.mxu0 %v354
  %1269 = vmatpush1.msra.mxu0 %v353
  %1270 = vmatprep.subr.mxu0 %v357
  %1271 = vmatpush1.msra.mxu0 %v356
  %1272 = vmatprep.subr.mxu0 %v360
  %1273 = vmatpush1.msra.mxu0 %v359
  %1274 = vmatprep.subr.mxu0 %v363
  %1275 = vmatpush1.msra.mxu0 %v362
  %1276 = vmatprep.subr.mxu0 %v366
  %1277 = vmatpush1.msra.mxu0 %v365
  %1278 = vmatprep.subr.mxu0 %v369
  %1279 = vmatpush1.msra.mxu0 %v368
  %1280 = vmatprep.subr.mxu0 %v372
  %1281 = vmatpush1.msra.mxu0 %v371
  %1282 = vmatprep.subr.mxu0 %v375
  %1283 = vmatpush1.msra.mxu0 %v374
  %1284 = vmatprep.subr.mxu0 %v378
  %1285 = vmatpush1.msra.mxu0 %v377
  %1286 = vmatprep.subr.mxu0 %v381
  %1287 = vmatpush1.msra.mxu0 %v380
  %1288 = vmatprep.subr.mxu0 %v384
  %1289 = vmatpush1.msra.mxu0 %v383
  %1290 = vmatprep.subr.mxu0 %v387
  %1291 = vmatpush1.msra.mxu0 %v386
  %1292 = vmatprep.subr.mxu0 %v390
  %1293 = vmatpush1.msra.mxu0 %v389
  %1294 = vmatprep.subr.mxu0 %v393
  %1295 = vmatpush1.msra.mxu0 %v392
  %1296 = vmatprep.subr.mxu0 %v396
  %1297 = vmatpush1.msra.mxu0 %v395
  %1298 = vmatprep.subr.mxu0 %v399
  %1299 = vmatpush1.msra.mxu0 %v398
  %1300 = vmatprep.subr.mxu0 0.0
  %1301 = vmatpush1.msra.mxu0 0.0
  %1302 = vmatprep.subr.mxu0 0.0
  %1303 = vmatpush1.msra.mxu0 0.0
  %1304 = vmatprep.subr.mxu0 0.0
  %1305 = vmatpush1.msra.mxu0 0.0
  %1306 = vmatprep.subr.mxu0 0.0
  %1307 = vmatpush1.msra.mxu0 0.0
  %1308 = vmatprep.subr.mxu0 0.0
  %1309 = vmatpush1.msra.mxu0 0.0
  %1310 = vmatprep.subr.mxu0 0.0
  %1311 = vmatpush1.msra.mxu0 0.0
  %1312 = vmatprep.subr.mxu0 0.0
  %1313 = vmatpush1.msra.mxu0 0.0
  %1314 = vmatprep.subr.mxu0 0.0
  %1315 = vmatpush1.msra.mxu0 0.0
  %1316 = vmatprep.subr.mxu0 0.0
  %1317 = vmatpush1.msra.mxu0 0.0
  %1318 = vmatprep.subr.mxu0 0.0
  %1319 = vmatpush1.msra.mxu0 0.0
  %1320 = vmatprep.subr.mxu0 0.0
  %1321 = vmatpush1.msra.mxu0 0.0
  %1322 = vmatprep.subr.mxu0 0.0
  %1323 = vmatpush1.msra.mxu0 0.0
  %1324 = vmatprep.subr.mxu0 0.0
  %1325 = vmatpush1.msra.mxu0 0.0
  %1326 = vmatprep.subr.mxu0 0.0
  %1327 = vmatpush1.msra.mxu0 0.0
  %1328 = vmatprep.subr.mxu0 0.0
  %1329 = vmatpush1.msra.mxu0 0.0
  %1330 = vmatprep.subr.mxu0 0.0
  %1331 = vmatpush1.msra.mxu0 0.0
  %1332 = vmatprep.mubr.f32.mxu0 0.0
  %1333 = vmatmul.mubr.f32.gmra.mrb[0].mxu0 %v1259
  %v1334 = vpop.f32.mrb[0].mxu0
  %v1335 = vadd.f32 0.0, %v1334
  %v1336 = vpop.f32.mrb[0].mxu0
  %v1337 = vadd.f32 0.0, %v1336
  %1338 = vdwg.mxu0
  %1339 = vmatprep.subr.mxu0 0.0
  %1340 = vmatpush1.msra.mxu0 %v355
  %1341 = vmatprep.subr.mxu0 0.0
  %1342 = vmatpush1.msra.mxu0 %v358
  %1343 = vmatprep.subr.mxu0 0.0
  %1344 = vmatpush1.msra.mxu0 %v361
  %1345 = vmatprep.subr.mxu0 0.0
  %1346 = vmatpush1.msra.mxu0 %v364
  %1347 = vmatprep.subr.mxu0 0.0
  %1348 = vmatpush1.msra.mxu0 %v367
  %1349 = vmatprep.subr.mxu0 0.0
  %1350 = vmatpush1.msra.mxu0 %v370
  %1351 = vmatprep.subr.mxu0 0.0
  %1352 = vmatpush1.msra.mxu0 %v373
  %1353 = vmatprep.subr.mxu0 0.0
  %1354 = vmatpush1.msra.mxu0 %v376
  %1355 = vmatprep.subr.mxu0 0.0
  %1356 = vmatpush1.msra.mxu0 %v379
  %1357 = vmatprep.subr.mxu0 0.0
  %1358 = vmatpush1.msra.mxu0 %v382
  %1359 = vmatprep.subr.mxu0 0.0
  %1360 = vmatpush1.msra.mxu0 %v385
  %1361 = vmatprep.subr.mxu0 0.0
  %1362 = vmatpush1.msra.mxu0 %v388
  %1363 = vmatprep.subr.mxu0 0.0
  %1364 = vmatpush1.msra.mxu0 %v391
  %1365 = vmatprep.subr.mxu0 0.0
  %1366 = vmatpush1.msra.mxu0 %v394
  %1367 = vmatprep.subr.mxu0 0.0
  %1368 = vmatpush1.msra.mxu0 %v397
  %1369 = vmatprep.subr.mxu0 0.0
  %1370 = vmatpush1.msra.mxu0 %v400
  %1371 = vmatprep.subr.mxu0 0.0
  %1372 = vmatpush1.msra.mxu0 0.0
  %1373 = vmatprep.subr.mxu0 0.0
  %1374 = vmatpush1.msra.mxu0 0.0
  %1375 = vmatprep.subr.mxu0 0.0
  %1376 = vmatpush1.msra.mxu0 0.0
  %1377 = vmatprep.subr.mxu0 0.0
  %1378 = vmatpush1.msra.mxu0 0.0
  %1379 = vmatprep.subr.mxu0 0.0
  %1380 = vmatpush1.msra.mxu0 0.0
  %1381 = vmatprep.subr.mxu0 0.0
  %1382 = vmatpush1.msra.mxu0 0.0
  %1383 = vmatprep.subr.mxu0 0.0
  %1384 = vmatpush1.msra.mxu0 0.0
  %1385 = vmatprep.subr.mxu0 0.0
  %1386 = vmatpush1.msra.mxu0 0.0
  %1387 = vmatprep.subr.mxu0 0.0
  %1388 = vmatpush1.msra.mxu0 0.0
  %1389 = vmatprep.subr.mxu0 0.0
  %1390 = vmatpush1.msra.mxu0 0.0
  %1391 = vmatprep.subr.mxu0 0.0
  %1392 = vmatpush1.msra.mxu0 0.0
  %1393 = vmatprep.subr.mxu0 0.0
  %1394 = vmatpush1.msra.mxu0 0.0
  %1395 = vmatprep.subr.mxu0 0.0
  %1396 = vmatpush1.msra.mxu0 0.0
  %1397 = vmatprep.subr.mxu0 0.0
  %1398 = vmatpush1.msra.mxu0 0.0
  %1399 = vmatprep.subr.mxu0 0.0
  %1400 = vmatpush1.msra.mxu0 0.0
  %1401 = vmatprep.subr.mxu0 0.0
  %1402 = vmatpush1.msra.mxu0 0.0
  %1403 = vmatprep.mubr.f32.mxu0 0.0
  %1404 = vmatmul.mubr.f32.gmra.mrb[0].mxu0 %v1259
  %v1405 = vpop.f32.mrb[0].mxu0
  %v1406 = vadd.f32 0.0, %v1405
  %v1407 = vpop.f32.mrb[0].mxu0
  %1408 = vdwg.mxu0
  %v1409 = vadd.f32 %v1265, %v1335
  %v1410 = vxor.u32 %v1409, 2147483648
  %v1411 = vmul.f32 %v1410, 1.442695
  %v1412 = vpow.pop %v1411
  %v1413 = vadd.f32 %v1412, 1.0
  %v1414 = vrcp.pop %v1413
  %v1415 = vmul.f32 1.0, %v1414
  %v1416 = vadd.f32 %v1266, %v1337
  %v1417 = vxor.u32 %v1416, 2147483648
  %v1418 = vmul.f32 %v1417, 1.442695
  %v1419 = vpow.pop %v1418
  %v1420 = vadd.f32 %v1419, 1.0
  %v1421 = vrcp.pop %v1420
  %v1422 = vmul.f32 1.0, %v1421
  %v1423 = vadd.f32 %v1406, %v567
  %v1424 = vmul.f32 %v1415, %v1423
  %v1425 = vadd.f32 %v1267, %v1424
  %v1426 = vtanh.pop %v1425
  %v1427 = vsub.f32 1.0, %v1422
  %v1428 = vmul.f32 %v1427, %v1426
  %v1429 = vmul.f32 %v1422, %v1259
  %v1430 = vadd.f32 %v1428, %v1429
  %s1431 = scalar_lea.vmem [#allocation2], 40
  %1432 = vst [vmem:[%s1431] sm:$0xff] %v1430
  %s1433 = smul.u32 6, 3
  %s1434 = smul.addr %s1433, 8
  %s1435 = scalar_lea.vmem [#allocation3], %s1434
  %v1436 = vld [vmem:[%s1435] sm:$0xff]
  %v1437 = vld [vmem:[%s1435 + $0x8] sm:$0xff]
  %v1438 = vld [vmem:[%s1435 + $0x10] sm:$0xff]
  %1439 = vmatprep.subr.mxu0 %v354
  %1440 = vmatpush1.msra.mxu0 %v353
  %1441 = vmatprep.subr.mxu0 %v357
  %1442 = vmatpush1.msra.mxu0 %v356
  %1443 = vmatprep.subr.mxu0 %v360
  %1444 = vmatpush1.msra.mxu0 %v359
  %1445 = vmatprep.subr.mxu0 %v363
  %1446 = vmatpush1.msra.mxu0 %v362
  %1447 = vmatprep.subr.mxu0 %v366
  %1448 = vmatpush1.msra.mxu0 %v365
  %1449 = vmatprep.subr.mxu0 %v369
  %1450 = vmatpush1.msra.mxu0 %v368
  %1451 = vmatprep.subr.mxu0 %v372
  %1452 = vmatpush1.msra.mxu0 %v371
  %1453 = vmatprep.subr.mxu0 %v375
  %1454 = vmatpush1.msra.mxu0 %v374
  %1455 = vmatprep.subr.mxu0 %v378
  %1456 = vmatpush1.msra.mxu0 %v377
  %1457 = vmatprep.subr.mxu0 %v381
  %1458 = vmatpush1.msra.mxu0 %v380
  %1459 = vmatprep.subr.mxu0 %v384
  %1460 = vmatpush1.msra.mxu0 %v383
  %1461 = vmatprep.subr.mxu0 %v387
  %1462 = vmatpush1.msra.mxu0 %v386
  %1463 = vmatprep.subr.mxu0 %v390
  %1464 = vmatpush1.msra.mxu0 %v389
  %1465 = vmatprep.subr.mxu0 %v393
  %1466 = vmatpush1.msra.mxu0 %v392
  %1467 = vmatprep.subr.mxu0 %v396
  %1468 = vmatpush1.msra.mxu0 %v395
  %1469 = vmatprep.subr.mxu0 %v399
  %1470 = vmatpush1.msra.mxu0 %v398
  %1471 = vmatprep.subr.mxu0 0.0
  %1472 = vmatpush1.msra.mxu0 0.0
  %1473 = vmatprep.subr.mxu0 0.0
  %1474 = vmatpush1.msra.mxu0 0.0
  %1475 = vmatprep.subr.mxu0 0.0
  %1476 = vmatpush1.msra.mxu0 0.0
  %1477 = vmatprep.subr.mxu0 0.0
  %1478 = vmatpush1.msra.mxu0 0.0
  %1479 = vmatprep.subr.mxu0 0.0
  %1480 = vmatpush1.msra.mxu0 0.0
  %1481 = vmatprep.subr.mxu0 0.0
  %1482 = vmatpush1.msra.mxu0 0.0
  %1483 = vmatprep.subr.mxu0 0.0
  %1484 = vmatpush1.msra.mxu0 0.0
  %1485 = vmatprep.subr.mxu0 0.0
  %1486 = vmatpush1.msra.mxu0 0.0
  %1487 = vmatprep.subr.mxu0 0.0
  %1488 = vmatpush1.msra.mxu0 0.0
  %1489 = vmatprep.subr.mxu0 0.0
  %1490 = vmatpush1.msra.mxu0 0.0
  %1491 = vmatprep.subr.mxu0 0.0
  %1492 = vmatpush1.msra.mxu0 0.0
  %1493 = vmatprep.subr.mxu0 0.0
  %1494 = vmatpush1.msra.mxu0 0.0
  %1495 = vmatprep.subr.mxu0 0.0
  %1496 = vmatpush1.msra.mxu0 0.0
  %1497 = vmatprep.subr.mxu0 0.0
  %1498 = vmatpush1.msra.mxu0 0.0
  %1499 = vmatprep.subr.mxu0 0.0
  %1500 = vmatpush1.msra.mxu0 0.0
  %1501 = vmatprep.subr.mxu0 0.0
  %1502 = vmatpush1.msra.mxu0 0.0
  %1503 = vmatprep.mubr.f32.mxu0 0.0
  %1504 = vmatmul.mubr.f32.gmra.mrb[0].mxu0 %v1430
  %v1505 = vpop.f32.mrb[0].mxu0
  %v1506 = vadd.f32 0.0, %v1505
  %v1507 = vpop.f32.mrb[0].mxu0
  %v1508 = vadd.f32 0.0, %v1507
  %1509 = vdwg.mxu0
  %1510 = vmatprep.subr.mxu0 0.0
  %1511 = vmatpush1.msra.mxu0 %v355
  %1512 = vmatprep.subr.mxu0 0.0
  %1513 = vmatpush1.msra.mxu0 %v358
  %1514 = vmatprep.subr.mxu0 0.0
  %1515 = vmatpush1.msra.mxu0 %v361
  %1516 = vmatprep.subr.mxu0 0.0
  %1517 = vmatpush1.msra.mxu0 %v364
  %1518 = vmatprep.subr.mxu0 0.0
  %1519 = vmatpush1.msra.mxu0 %v367
  %1520 = vmatprep.subr.mxu0 0.0
  %1521 = vmatpush1.msra.mxu0 %v370
  %1522 = vmatprep.subr.mxu0 0.0
  %1523 = vmatpush1.msra.mxu0 %v373
  %1524 = vmatprep.subr.mxu0 0.0
  %1525 = vmatpush1.msra.mxu0 %v376
  %1526 = vmatprep.subr.mxu0 0.0
  %1527 = vmatpush1.msra.mxu0 %v379
  %1528 = vmatprep.subr.mxu0 0.0
  %1529 = vmatpush1.msra.mxu0 %v382
  %1530 = vmatprep.subr.mxu0 0.0
  %1531 = vmatpush1.msra.mxu0 %v385
  %1532 = vmatprep.subr.mxu0 0.0
  %1533 = vmatpush1.msra.mxu0 %v388
  %1534 = vmatprep.subr.mxu0 0.0
  %1535 = vmatpush1.msra.mxu0 %v391
  %1536 = vmatprep.subr.mxu0 0.0
  %1537 = vmatpush1.msra.mxu0 %v394
  %1538 = vmatprep.subr.mxu0 0.0
  %1539 = vmatpush1.msra.mxu0 %v397
  %1540 = vmatprep.subr.mxu0 0.0
  %1541 = vmatpush1.msra.mxu0 %v400
  %1542 = vmatprep.subr.mxu0 0.0
  %1543 = vmatpush1.msra.mxu0 0.0
  %1544 = vmatprep.subr.mxu0 0.0
  %1545 = vmatpush1.msra.mxu0 0.0
  %1546 = vmatprep.subr.mxu0 0.0
  %1547 = vmatpush1.msra.mxu0 0.0
  %1548 = vmatprep.subr.mxu0 0.0
  %1549 = vmatpush1.msra.mxu0 0.0
  %1550 = vmatprep.subr.mxu0 0.0
  %1551 = vmatpush1.msra.mxu0 0.0
  %1552 = vmatprep.subr.mxu0 0.0
  %1553 = vmatpush1.msra.mxu0 0.0
  %1554 = vmatprep.subr.mxu0 0.0
  %1555 = vmatpush1.msra.mxu0 0.0
  %1556 = vmatprep.subr.mxu0 0.0
  %1557 = vmatpush1.msra.mxu0 0.0
  %1558 = vmatprep.subr.mxu0 0.0
  %1559 = vmatpush1.msra.mxu0 0.0
  %1560 = vmatprep.subr.mxu0 0.0
  %1561 = vmatpush1.msra.mxu0 0.0
  %1562 = vmatprep.subr.mxu0 0.0
  %1563 = vmatpush1.msra.mxu0 0.0
  %1564 = vmatprep.subr.mxu0 0.0
  %1565 = vmatpush1.msra.mxu0 0.0
  %1566 = vmatprep.subr.mxu0 0.0
  %1567 = vmatpush1.msra.mxu0 0.0
  %1568 = vmatprep.subr.mxu0 0.0
  %1569 = vmatpush1.msra.mxu0 0.0
  %1570 = vmatprep.subr.mxu0 0.0
  %1571 = vmatpush1.msra.mxu0 0.0
  %1572 = vmatprep.subr.mxu0 0.0
  %1573 = vmatpush1.msra.mxu0 0.0
  %1574 = vmatprep.mubr.f32.mxu0 0.0
  %1575 = vmatmul.mubr.f32.gmra.mrb[0].mxu0 %v1430
  %v1576 = vpop.f32.mrb[0].mxu0
  %v1577 = vadd.f32 0.0, %v1576
  %v1578 = vpop.f32.mrb[0].mxu0
  %1579 = vdwg.mxu0
  %v1580 = vadd.f32 %v1436, %v1506
  %v1581 = vxor.u32 %v1580, 2147483648
  %v1582 = vmul.f32 %v1581, 1.442695
  %v1583 = vpow.pop %v1582
  %v1584 = vadd.f32 %v1583, 1.0
  %v1585 = vrcp.pop %v1584
  %v1586 = vmul.f32 1.0, %v1585
  %v1587 = vadd.f32 %v1437, %v1508
  %v1588 = vxor.u32 %v1587, 2147483648
  %v1589 = vmul.f32 %v1588, 1.442695
  %v1590 = vpow.pop %v1589
  %v1591 = vadd.f32 %v1590, 1.0
  %v1592 = vrcp.pop %v1591
  %v1593 = vmul.f32 1.0, %v1592
  %v1594 = vadd.f32 %v1577, %v567
  %v1595 = vmul.f32 %v1586, %v1594
  %v1596 = vadd.f32 %v1438, %v1595
  %v1597 = vtanh.pop %v1596
  %v1598 = vsub.f32 1.0, %v1593
  %v1599 = vmul.f32 %v1598, %v1597
  %v1600 = vmul.f32 %v1593, %v1430
  %v1601 = vadd.f32 %v1599, %v1600
  %s1602 = scalar_lea.vmem [#allocation2], 48
  %1603 = vst [vmem:[%s1602] sm:$0xff] %v1601
  %s1604 = smul.u32 7, 3
  %s1605 = smul.addr %s1604, 8
  %s1606 = scalar_lea.vmem [#allocation3], %s1605
  %v1607 = vld [vmem:[%s1606] sm:$0xff]
  %v1608 = vld [vmem:[%s1606 + $0x8] sm:$0xff]
  %v1609 = vld [vmem:[%s1606 + $0x10] sm:$0xff]
  %1610 = vmatprep.subr.mxu0 %v354
  %1611 = vmatpush1.msra.mxu0 %v353
  %1612 = vmatprep.subr.mxu0 %v357
  %1613 = vmatpush1.msra.mxu0 %v356
  %1614 = vmatprep.subr.mxu0 %v360
  %1615 = vmatpush1.msra.mxu0 %v359
  %1616 = vmatprep.subr.mxu0 %v363
  %1617 = vmatpush1.msra.mxu0 %v362
  %1618 = vmatprep.subr.mxu0 %v366
  %1619 = vmatpush1.msra.mxu0 %v365
  %1620 = vmatprep.subr.mxu0 %v369
  %1621 = vmatpush1.msra.mxu0 %v368
  %1622 = vmatprep.subr.mxu0 %v372
  %1623 = vmatpush1.msra.mxu0 %v371
  %1624 = vmatprep.subr.mxu0 %v375
  %1625 = vmatpush1.msra.mxu0 %v374
  %1626 = vmatprep.subr.mxu0 %v378
  %1627 = vmatpush1.msra.mxu0 %v377
  %1628 = vmatprep.subr.mxu0 %v381
  %1629 = vmatpush1.msra.mxu0 %v380
  %1630 = vmatprep.subr.mxu0 %v384
  %1631 = vmatpush1.msra.mxu0 %v383
  %1632 = vmatprep.subr.mxu0 %v387
  %1633 = vmatpush1.msra.mxu0 %v386
  %1634 = vmatprep.subr.mxu0 %v390
  %1635 = vmatpush1.msra.mxu0 %v389
  %1636 = vmatprep.subr.mxu0 %v393
  %1637 = vmatpush1.msra.mxu0 %v392
  %1638 = vmatprep.subr.mxu0 %v396
  %1639 = vmatpush1.msra.mxu0 %v395
  %1640 = vmatprep.subr.mxu0 %v399
  %1641 = vmatpush1.msra.mxu0 %v398
  %1642 = vmatprep.subr.mxu0 0.0
  %1643 = vmatpush1.msra.mxu0 0.0
  %1644 = vmatprep.subr.mxu0 0.0
  %1645 = vmatpush1.msra.mxu0 0.0
  %1646 = vmatprep.subr.mxu0 0.0
  %1647 = vmatpush1.msra.mxu0 0.0
  %1648 = vmatprep.subr.mxu0 0.0
  %1649 = vmatpush1.msra.mxu0 0.0
  %1650 = vmatprep.subr.mxu0 0.0
  %1651 = vmatpush1.msra.mxu0 0.0
  %1652 = vmatprep.subr.mxu0 0.0
  %1653 = vmatpush1.msra.mxu0 0.0
  %1654 = vmatprep.subr.mxu0 0.0
  %1655 = vmatpush1.msra.mxu0 0.0
  %1656 = vmatprep.subr.mxu0 0.0
  %1657 = vmatpush1.msra.mxu0 0.0
  %1658 = vmatprep.subr.mxu0 0.0
  %1659 = vmatpush1.msra.mxu0 0.0
  %1660 = vmatprep.subr.mxu0 0.0
  %1661 = vmatpush1.msra.mxu0 0.0
  %1662 = vmatprep.subr.mxu0 0.0
  %1663 = vmatpush1.msra.mxu0 0.0
  %1664 = vmatprep.subr.mxu0 0.0
  %1665 = vmatpush1.msra.mxu0 0.0
  %1666 = vmatprep.subr.mxu0 0.0
  %1667 = vmatpush1.msra.mxu0 0.0
  %1668 = vmatprep.subr.mxu0 0.0
  %1669 = vmatpush1.msra.mxu0 0.0
  %1670 = vmatprep.subr.mxu0 0.0
  %1671 = vmatpush1.msra.mxu0 0.0
  %1672 = vmatprep.subr.mxu0 0.0
  %1673 = vmatpush1.msra.mxu0 0.0
  %1674 = vmatprep.mubr.f32.mxu0 0.0
  %1675 = vmatmul.mubr.f32.gmra.mrb[0].mxu0 %v1601
  %v1676 = vpop.f32.mrb[0].mxu0
  %v1677 = vadd.f32 0.0, %v1676
  %v1678 = vpop.f32.mrb[0].mxu0
  %v1679 = vadd.f32 0.0, %v1678
  %1680 = vdwg.mxu0
  %1681 = vmatprep.subr.mxu0 0.0
  %1682 = vmatpush1.msra.mxu0 %v355
  %1683 = vmatprep.subr.mxu0 0.0
  %1684 = vmatpush1.msra.mxu0 %v358
  %1685 = vmatprep.subr.mxu0 0.0
  %1686 = vmatpush1.msra.mxu0 %v361
  %1687 = vmatprep.subr.mxu0 0.0
  %1688 = vmatpush1.msra.mxu0 %v364
  %1689 = vmatprep.subr.mxu0 0.0
  %1690 = vmatpush1.msra.mxu0 %v367
  %1691 = vmatprep.subr.mxu0 0.0
  %1692 = vmatpush1.msra.mxu0 %v370
  %1693 = vmatprep.subr.mxu0 0.0
  %1694 = vmatpush1.msra.mxu0 %v373
  %1695 = vmatprep.subr.mxu0 0.0
  %1696 = vmatpush1.msra.mxu0 %v376
  %1697 = vmatprep.subr.mxu0 0.0
  %1698 = vmatpush1.msra.mxu0 %v379
  %1699 = vmatprep.subr.mxu0 0.0
  %1700 = vmatpush1.msra.mxu0 %v382
  %1701 = vmatprep.subr.mxu0 0.0
  %1702 = vmatpush1.msra.mxu0 %v385
  %1703 = vmatprep.subr.mxu0 0.0
  %1704 = vmatpush1.msra.mxu0 %v388
  %1705 = vmatprep.subr.mxu0 0.0
  %1706 = vmatpush1.msra.mxu0 %v391
  %1707 = vmatprep.subr.mxu0 0.0
  %1708 = vmatpush1.msra.mxu0 %v394
  %1709 = vmatprep.subr.mxu0 0.0
  %1710 = vmatpush1.msra.mxu0 %v397
  %1711 = vmatprep.subr.mxu0 0.0
  %1712 = vmatpush1.msra.mxu0 %v400
  %1713 = vmatprep.subr.mxu0 0.0
  %1714 = vmatpush1.msra.mxu0 0.0
  %1715 = vmatprep.subr.mxu0 0.0
  %1716 = vmatpush1.msra.mxu0 0.0
  %1717 = vmatprep.subr.mxu0 0.0
  %1718 = vmatpush1.msra.mxu0 0.0
  %1719 = vmatprep.subr.mxu0 0.0
  %1720 = vmatpush1.msra.mxu0 0.0
  %1721 = vmatprep.subr.mxu0 0.0
  %1722 = vmatpush1.msra.mxu0 0.0
  %1723 = vmatprep.subr.mxu0 0.0
  %1724 = vmatpush1.msra.mxu0 0.0
  %1725 = vmatprep.subr.mxu0 0.0
  %1726 = vmatpush1.msra.mxu0 0.0
  %1727 = vmatprep.subr.mxu0 0.0
  %1728 = vmatpush1.msra.mxu0 0.0
  %1729 = vmatprep.subr.mxu0 0.0
  %1730 = vmatpush1.msra.mxu0 0.0
  %1731 = vmatprep.subr.mxu0 0.0
  %1732 = vmatpush1.msra.mxu0 0.0
  %1733 = vmatprep.subr.mxu0 0.0
  %1734 = vmatpush1.msra.mxu0 0.0
  %1735 = vmatprep.subr.mxu0 0.0
  %1736 = vmatpush1.msra.mxu0 0.0
  %1737 = vmatprep.subr.mxu0 0.0
  %1738 = vmatpush1.msra.mxu0 0.0
  %1739 = vmatprep.subr.mxu0 0.0
  %1740 = vmatpush1.msra.mxu0 0.0
  %1741 = vmatprep.subr.mxu0 0.0
  %1742 = vmatpush1.msra.mxu0 0.0
  %1743 = vmatprep.subr.mxu0 0.0
  %1744 = vmatpush1.msra.mxu0 0.0
  %1745 = vmatprep.mubr.f32.mxu0 0.0
  %1746 = vmatmul.mubr.f32.gmra.mrb[0].mxu0 %v1601
  %v1747 = vpop.f32.mrb[0].mxu0
  %v1748 = vadd.f32 0.0, %v1747
  %v1749 = vpop.f32.mrb[0].mxu0
  %1750 = vdwg.mxu0
  %v1751 = vadd.f32 %v1607, %v1677
  %v1752 = vxor.u32 %v1751, 2147483648
  %v1753 = vmul.f32 %v1752, 1.442695
  %v1754 = vpow.pop %v1753
  %v1755 = vadd.f32 %v1754, 1.0
  %v1756 = vrcp.pop %v1755
  %v1757 = vmul.f32 1.0, %v1756
  %v1758 = vadd.f32 %v1608, %v1679
  %v1759 = vxor.u32 %v1758, 2147483648
  %v1760 = vmul.f32 %v1759, 1.442695
  %v1761 = vpow.pop %v1760
  %v1762 = vadd.f32 %v1761, 1.0
  %v1763 = vrcp.pop %v1762
  %v1764 = vmul.f32 1.0, %v1763
  %v1765 = vadd.f32 %v1748, %v567
  %v1766 = vmul.f32 %v1757, %v1765
  %v1767 = vadd.f32 %v1609, %v1766
  %v1768 = vtanh.pop %v1767
  %v1769 = vsub.f32 1.0, %v1764
  %v1770 = vmul.f32 %v1769, %v1768
  %v1771 = vmul.f32 %v1764, %v1601
  %v1772 = vadd.f32 %v1770, %v1771
  %s1773 = scalar_lea.vmem [#allocation2], 56
  %1774 = vst [vmem:[%s1773] sm:$0xff] %v1772
  %v1775 = vld [vmem:[#allocation2] sm:$0xff]
  %v1776 = vld [vmem:[#allocation2 + $0x8] sm:$0xff]
  %v1777 = vld [vmem:[#allocation2 + $0x10] sm:$0xff]
  %v1778 = vld [vmem:[#allocation2 + $0x18] sm:$0xff]
  %v1779 = vld [vmem:[#allocation2 + $0x20] sm:$0xff]
  %v1780 = vld [vmem:[#allocation2 + $0x28] sm:$0xff]
  %v1781 = vld [vmem:[#allocation2 + $0x30] sm:$0xff]
  %v1782 = vld [vmem:[#allocation2 + $0x38] sm:$0xff]
  %v1783 = vld [vmem:[%s5] sm:$0xff]
  %v1784 = vld [vmem:[%s5 + $0x8] sm:$0xff]
  %v1785 = vld [vmem:[%s5 + $0x10] sm:$0xff]
  %v1786 = vld [vmem:[%s5 + $0x18] sm:$0xff]
  %v1787 = vld [vmem:[%s5 + $0x20] sm:$0xff]
  %v1788 = vld [vmem:[%s5 + $0x28] sm:$0xff]
  %v1789 = vld [vmem:[%s5 + $0x30] sm:$0xff]
  %v1790 = vld [vmem:[%s5 + $0x38] sm:$0xff]
  %v1791 = vld [vmem:[%s5 + $0x40] sm:$0xff]
  %v1792 = vld [vmem:[%s5 + $0x48] sm:$0xff]
  %v1793 = vld [vmem:[%s5 + $0x50] sm:$0xff]
  %v1794 = vld [vmem:[%s5 + $0x58] sm:$0xff]
  %v1795 = vld [vmem:[%s5 + $0x60] sm:$0xff]
  %v1796 = vld [vmem:[%s5 + $0x68] sm:$0xff]
  %v1797 = vld [vmem:[%s5 + $0x70] sm:$0xff]
  %v1798 = vld [vmem:[%s5 + $0x78] sm:$0xff]
  %v1799 = vld [vmem:[%s5 + $0x80] sm:$0xff]
  %v1800 = vld [vmem:[%s5 + $0x88] sm:$0xff]
  %v1801 = vld [vmem:[%s5 + $0x90] sm:$0xff]
  %v1802 = vld [vmem:[%s5 + $0x98] sm:$0xff]
  %v1803 = vld [vmem:[%s5 + $0xa0] sm:$0xff]
  %v1804 = vld [vmem:[%s5 + $0xa8] sm:$0xff]
  %v1805 = vld [vmem:[%s5 + $0xb0] sm:$0xff]
  %v1806 = vld [vmem:[%s5 + $0xb8] sm:$0xff]
  %v1807 = vld [vmem:[%s5 + $0xc0] sm:$0xff]
  %v1808 = vld [vmem:[%s5 + $0xc8] sm:$0xff]
  %v1809 = vld [vmem:[%s5 + $0xd0] sm:$0xff]
  %v1810 = vld [vmem:[%s5 + $0xd8] sm:$0xff]
  %v1811 = vld [vmem:[%s5 + $0xe0] sm:$0xff]
  %v1812 = vld [vmem:[%s5 + $0xe8] sm:$0xff]
  %v1813 = vld [vmem:[%s5 + $0xf0] sm:$0xff]
  %v1814 = vld [vmem:[%s5 + $0xf8] sm:$0xff]
  %v1815 = vld [vmem:[%s5 + $0x100] sm:$0xff]
  %v1816 = vld [vmem:[%s5 + $0x108] sm:$0xff]
  %v1817 = vld [vmem:[%s5 + $0x110] sm:$0xff]
  %v1818 = vld [vmem:[%s5 + $0x118] sm:$0xff]
  %v1819 = vld [vmem:[%s5 + $0x120] sm:$0xff]
  %v1820 = vld [vmem:[%s5 + $0x128] sm:$0xff]
  %v1821 = vld [vmem:[%s5 + $0x130] sm:$0xff]
  %v1822 = vld [vmem:[%s5 + $0x138] sm:$0xff]
  %v1823 = vld [vmem:[%s5 + $0x140] sm:$0xff]
  %v1824 = vld [vmem:[%s5 + $0x148] sm:$0xff]
  %v1825 = vld [vmem:[%s5 + $0x150] sm:$0xff]
  %v1826 = vld [vmem:[%s5 + $0x158] sm:$0xff]
  %v1827 = vld [vmem:[%s5 + $0x160] sm:$0xff]
  %v1828 = vld [vmem:[%s5 + $0x168] sm:$0xff]
  %v1829 = vld [vmem:[%s5 + $0x170] sm:$0xff]
  %v1830 = vld [vmem:[%s5 + $0x178] sm:$0xff]
  %v1831 = vld [vmem:[%s7] sm:$0x7]
  %v1833 = vlaneseq
  %v1834 = vshrl.u32 %v1833, 7
  %v1835 = vsub.s32 0, %v1834
  %v1836 = vrot.slane %v1831, %v1835
  %v1837 = vlaneseq
  %v1838 = vshrl.u32 %v1837, 7
  %v1839 = vsub.s32 1, %v1838
  %v1840 = vrot.slane %v1831, %v1839
  %v1841 = vlaneseq
  %v1842 = vshrl.u32 %v1841, 7
  %v1843 = vsub.s32 2, %v1842
  %v1844 = vrot.slane %v1831, %v1843
  %1848 = vmatprep.subr.mxu0 %v1784
  %1849 = vmatpush1.msra.mxu0 %v1783
  %1850 = vmatprep.subr.mxu0 %v1787
  %1851 = vmatpush1.msra.mxu0 %v1786
  %1852 = vmatprep.subr.mxu0 %v1790
  %1853 = vmatpush1.msra.mxu0 %v1789
  %1854 = vmatprep.subr.mxu0 %v1793
  %1855 = vmatpush1.msra.mxu0 %v1792
  %1856 = vmatprep.subr.mxu0 %v1796
  %1857 = vmatpush1.msra.mxu0 %v1795
  %1858 = vmatprep.subr.mxu0 %v1799
  %1859 = vmatpush1.msra.mxu0 %v1798
  %1860 = vmatprep.subr.mxu0 %v1802
  %1861 = vmatpush1.msra.mxu0 %v1801
  %1862 = vmatprep.subr.mxu0 %v1805
  %1863 = vmatpush1.msra.mxu0 %v1804
  %1864 = vmatprep.subr.mxu0 %v1808
  %1865 = vmatpush1.msra.mxu0 %v1807
  %1866 = vmatprep.subr.mxu0 %v1811
  %1867 = vmatpush1.msra.mxu0 %v1810
  %1868 = vmatprep.subr.mxu0 %v1814
  %1869 = vmatpush1.msra.mxu0 %v1813
  %1870 = vmatprep.subr.mxu0 %v1817
  %1871 = vmatpush1.msra.mxu0 %v1816
  %1872 = vmatprep.subr.mxu0 %v1820
  %1873 = vmatpush1.msra.mxu0 %v1819
  %1874 = vmatprep.subr.mxu0 %v1823
  %1875 = vmatpush1.msra.mxu0 %v1822
  %1876 = vmatprep.subr.mxu0 %v1826
  %1877 = vmatpush1.msra.mxu0 %v1825
  %1878 = vmatprep.subr.mxu0 %v1829
  %1879 = vmatpush1.msra.mxu0 %v1828
  %1880 = vmatprep.subr.mxu0 0.0
  %1881 = vmatpush1.msra.mxu0 0.0
  %1882 = vmatprep.subr.mxu0 0.0
  %1883 = vmatpush1.msra.mxu0 0.0
  %1884 = vmatprep.subr.mxu0 0.0
  %1885 = vmatpush1.msra.mxu0 0.0
  %1886 = vmatprep.subr.mxu0 0.0
  %1887 = vmatpush1.msra.mxu0 0.0
  %1888 = vmatprep.subr.mxu0 0.0
  %1889 = vmatpush1.msra.mxu0 0.0
  %1890 = vmatprep.subr.mxu0 0.0
  %1891 = vmatpush1.msra.mxu0 0.0
  %1892 = vmatprep.subr.mxu0 0.0
  %1893 = vmatpush1.msra.mxu0 0.0
  %1894 = vmatprep.subr.mxu0 0.0
  %1895 = vmatpush1.msra.mxu0 0.0
  %1896 = vmatprep.subr.mxu0 0.0
  %1897 = vmatpush1.msra.mxu0 0.0
  %1898 = vmatprep.subr.mxu0 0.0
  %1899 = vmatpush1.msra.mxu0 0.0
  %1900 = vmatprep.subr.mxu0 0.0
  %1901 = vmatpush1.msra.mxu0 0.0
  %1902 = vmatprep.subr.mxu0 0.0
  %1903 = vmatpush1.msra.mxu0 0.0
  %1904 = vmatprep.subr.mxu0 0.0
  %1905 = vmatpush1.msra.mxu0 0.0
  %1906 = vmatprep.subr.mxu0 0.0
  %1907 = vmatpush1.msra.mxu0 0.0
  %1908 = vmatprep.subr.mxu0 0.0
  %1909 = vmatpush1.msra.mxu0 0.0
  %1910 = vmatprep.subr.mxu0 0.0
  %1911 = vmatpush1.msra.mxu0 0.0
  %1912 = vmatprep.mubr.f32.mxu0 0.0
  %1913 = vmatmul.mubr.f32.gmra.mrb[0].mxu0 %v1775
  %v1914 = vpop.f32.mrb[0].mxu0
  %v1915 = vadd.f32 %v1836, %v1914
  %v1916 = vpop.f32.mrb[0].mxu0
  %v1917 = vadd.f32 %v1840, %v1916
  %1918 = vmatprep.mubr.f32.mxu0 0.0
  %1919 = vmatmul.mubr.f32.gmra.mrb[0].mxu0 %v1776
  %v1920 = vpop.f32.mrb[0].mxu0
  %v1921 = vadd.f32 %v1836, %v1920
  %v1922 = vpop.f32.mrb[0].mxu0
  %v1923 = vadd.f32 %v1840, %v1922
  %1924 = vmatprep.mubr.f32.mxu0 0.0
  %1925 = vmatmul.mubr.f32.gmra.mrb[0].mxu0 %v1777
  %v1926 = vpop.f32.mrb[0].mxu0
  %v1927 = vadd.f32 %v1836, %v1926
  %v1928 = vpop.f32.mrb[0].mxu0
  %v1929 = vadd.f32 %v1840, %v1928
  %1930 = vmatprep.mubr.f32.mxu0 0.0
  %1931 = vmatmul.mubr.f32.gmra.mrb[0].mxu0 %v1778
  %v1932 = vpop.f32.mrb[0].mxu0
  %v1933 = vadd.f32 %v1836, %v1932
  %v1934 = vpop.f32.mrb[0].mxu0
  %v1935 = vadd.f32 %v1840, %v1934
  %1936 = vmatprep.mubr.f32.mxu0 0.0
  %1937 = vmatmul.mubr.f32.gmra.mrb[0].mxu0 %v1779
  %v1938 = vpop.f32.mrb[0].mxu0
  %v1939 = vadd.f32 %v1836, %v1938
  %v1940 = vpop.f32.mrb[0].mxu0
  %v1941 = vadd.f32 %v1840, %v1940
  %1942 = vmatprep.mubr.f32.mxu0 0.0
  %1943 = vmatmul.mubr.f32.gmra.mrb[0].mxu0 %v1780
  %v1944 = vpop.f32.mrb[0].mxu0
  %v1945 = vadd.f32 %v1836, %v1944
  %v1946 = vpop.f32.mrb[0].mxu0
  %v1947 = vadd.f32 %v1840, %v1946
  %1948 = vmatprep.mubr.f32.mxu0 0.0
  %1949 = vmatmul.mubr.f32.gmra.mrb[0].mxu0 %v1781
  %v1950 = vpop.f32.mrb[0].mxu0
  %v1951 = vadd.f32 %v1836, %v1950
  %v1952 = vpop.f32.mrb[0].mxu0
  %v1953 = vadd.f32 %v1840, %v1952
  %1954 = vmatprep.mubr.f32.mxu0 0.0
  %1955 = vmatmul.mubr.f32.gmra.mrb[0].mxu0 %v1782
  %v1956 = vpop.f32.mrb[0].mxu0
  %v1957 = vadd.f32 %v1836, %v1956
  %v1958 = vpop.f32.mrb[0].mxu0
  %v1959 = vadd.f32 %v1840, %v1958
  %1960 = vdwg.mxu0
  %1961 = vmatprep.subr.mxu0 0.0
  %1962 = vmatpush1.msra.mxu0 %v1785
  %1963 = vmatprep.subr.mxu0 0.0
  %1964 = vmatpush1.msra.mxu0 %v1788
  %1965 = vmatprep.subr.mxu0 0.0
  %1966 = vmatpush1.msra.mxu0 %v1791
  %1967 = vmatprep.subr.mxu0 0.0
  %1968 = vmatpush1.msra.mxu0 %v1794
  %1969 = vmatprep.subr.mxu0 0.0
  %1970 = vmatpush1.msra.mxu0 %v1797
  %1971 = vmatprep.subr.mxu0 0.0
  %1972 = vmatpush1.msra.mxu0 %v1800
  %1973 = vmatprep.subr.mxu0 0.0
  %1974 = vmatpush1.msra.mxu0 %v1803
  %1975 = vmatprep.subr.mxu0 0.0
  %1976 = vmatpush1.msra.mxu0 %v1806
  %1977 = vmatprep.subr.mxu0 0.0
  %1978 = vmatpush1.msra.mxu0 %v1809
  %1979 = vmatprep.subr.mxu0 0.0
  %1980 = vmatpush1.msra.mxu0 %v1812
  %1981 = vmatprep.subr.mxu0 0.0
  %1982 = vmatpush1.msra.mxu0 %v1815
  %1983 = vmatprep.subr.mxu0 0.0
  %1984 = vmatpush1.msra.mxu0 %v1818
  %1985 = vmatprep.subr.mxu0 0.0
  %1986 = vmatpush1.msra.mxu0 %v1821
  %1987 = vmatprep.subr.mxu0 0.0
  %1988 = vmatpush1.msra.mxu0 %v1824
  %1989 = vmatprep.subr.mxu0 0.0
  %1990 = vmatpush1.msra.mxu0 %v1827
  %1991 = vmatprep.subr.mxu0 0.0
  %1992 = vmatpush1.msra.mxu0 %v1830
  %1993 = vmatprep.subr.mxu0 0.0
  %1994 = vmatpush1.msra.mxu0 0.0
  %1995 = vmatprep.subr.mxu0 0.0
  %1996 = vmatpush1.msra.mxu0 0.0
  %1997 = vmatprep.subr.mxu0 0.0
  %1998 = vmatpush1.msra.mxu0 0.0
  %1999 = vmatprep.subr.mxu0 0.0
  %2000 = vmatpush1.msra.mxu0 0.0
  %2001 = vmatprep.subr.mxu0 0.0
  %2002 = vmatpush1.msra.mxu0 0.0
  %2003 = vmatprep.subr.mxu0 0.0
  %2004 = vmatpush1.msra.mxu0 0.0
  %2005 = vmatprep.subr.mxu0 0.0
  %2006 = vmatpush1.msra.mxu0 0.0
  %2007 = vmatprep.subr.mxu0 0.0
  %2008 = vmatpush1.msra.mxu0 0.0
  %2009 = vmatprep.subr.mxu0 0.0
  %2010 = vmatpush1.msra.mxu0 0.0
  %2011 = vmatprep.subr.mxu0 0.0
  %2012 = vmatpush1.msra.mxu0 0.0
  %2013 = vmatprep.subr.mxu0 0.0
  %2014 = vmatpush1.msra.mxu0 0.0
  %2015 = vmatprep.subr.mxu0 0.0
  %2016 = vmatpush1.msra.mxu0 0.0
  %2017 = vmatprep.subr.mxu0 0.0
  %2018 = vmatpush1.msra.mxu0 0.0
  %2019 = vmatprep.subr.mxu0 0.0
  %2020 = vmatpush1.msra.mxu0 0.0
  %2021 = vmatprep.subr.mxu0 0.0
  %2022 = vmatpush1.msra.mxu0 0.0
  %2023 = vmatprep.subr.mxu0 0.0
  %2024 = vmatpush1.msra.mxu0 0.0
  %2025 = vmatprep.mubr.f32.mxu0 0.0
  %2026 = vmatmul.mubr.f32.gmra.mrb[0].mxu0 %v1775
  %v2027 = vpop.f32.mrb[0].mxu0
  %v2028 = vadd.f32 %v1844, %v2027
  %v2029 = vpop.f32.mrb[0].mxu0
  %2030 = vmatprep.mubr.f32.mxu0 0.0
  %2031 = vmatmul.mubr.f32.gmra.mrb[0].mxu0 %v1776
  %v2032 = vpop.f32.mrb[0].mxu0
  %v2033 = vadd.f32 %v1844, %v2032
  %v2034 = vpop.f32.mrb[0].mxu0
  %2035 = vmatprep.mubr.f32.mxu0 0.0
  %2036 = vmatmul.mubr.f32.gmra.mrb[0].mxu0 %v1777
  %v2037 = vpop.f32.mrb[0].mxu0
  %v2038 = vadd.f32 %v1844, %v2037
  %v2039 = vpop.f32.mrb[0].mxu0
  %2040 = vmatprep.mubr.f32.mxu0 0.0
  %2041 = vmatmul.mubr.f32.gmra.mrb[0].mxu0 %v1778
  %v2042 = vpop.f32.mrb[0].mxu0
  %v2043 = vadd.f32 %v1844, %v2042
  %v2044 = vpop.f32.mrb[0].mxu0
  %2045 = vmatprep.mubr.f32.mxu0 0.0
  %2046 = vmatmul.mubr.f32.gmra.mrb[0].mxu0 %v1779
  %v2047 = vpop.f32.mrb[0].mxu0
  %v2048 = vadd.f32 %v1844, %v2047
  %v2049 = vpop.f32.mrb[0].mxu0
  %2050 = vmatprep.mubr.f32.mxu0 0.0
  %2051 = vmatmul.mubr.f32.gmra.mrb[0].mxu0 %v1780
  %v2052 = vpop.f32.mrb[0].mxu0
  %v2053 = vadd.f32 %v1844, %v2052
  %v2054 = vpop.f32.mrb[0].mxu0
  %2055 = vmatprep.mubr.f32.mxu0 0.0
  %2056 = vmatmul.mubr.f32.gmra.mrb[0].mxu0 %v1781
  %v2057 = vpop.f32.mrb[0].mxu0
  %v2058 = vadd.f32 %v1844, %v2057
  %v2059 = vpop.f32.mrb[0].mxu0
  %2060 = vmatprep.mubr.f32.mxu0 0.0
  %2061 = vmatmul.mubr.f32.gmra.mrb[0].mxu0 %v1782
  %v2062 = vpop.f32.mrb[0].mxu0
  %v2063 = vadd.f32 %v1844, %v2062
  %v2064 = vpop.f32.mrb[0].mxu0
  %2065 = vdwg.mxu0
  %2066 = vst [vmem:[#allocation3] sm:$0xff] %v1915
  %2067 = vst [vmem:[#allocation3 + $0x8] sm:$0xff] %v1917
  %2068 = vst [vmem:[#allocation3 + $0x10] sm:$0xff] %v2028
  %2069 = vst [vmem:[#allocation3 + $0x18] sm:$0xff] %v1921
  %2070 = vst [vmem:[#allocation3 + $0x20] sm:$0xff] %v1923
  %2071 = vst [vmem:[#allocation3 + $0x28] sm:$0xff] %v2033
  %2072 = vst [vmem:[#allocation3 + $0x30] sm:$0xff] %v1927
  %2073 = vst [vmem:[#allocation3 + $0x38] sm:$0xff] %v1929
  %2074 = vst [vmem:[#allocation3 + $0x40] sm:$0xff] %v2038
  %2075 = vst [vmem:[#allocation3 + $0x48] sm:$0xff] %v1933
  %2076 = vst [vmem:[#allocation3 + $0x50] sm:$0xff] %v1935
  %2077 = vst [vmem:[#allocation3 + $0x58] sm:$0xff] %v2043
  %2078 = vst [vmem:[#allocation3 + $0x60] sm:$0xff] %v1939
  %2079 = vst [vmem:[#allocation3 + $0x68] sm:$0xff] %v1941
  %2080 = vst [vmem:[#allocation3 + $0x70] sm:$0xff] %v2048
  %2081 = vst [vmem:[#allocation3 + $0x78] sm:$0xff] %v1945
  %2082 = vst [vmem:[#allocation3 + $0x80] sm:$0xff] %v1947
  %2083 = vst [vmem:[#allocation3 + $0x88] sm:$0xff] %v2053
  %2084 = vst [vmem:[#allocation3 + $0x90] sm:$0xff] %v1951
  %2085 = vst [vmem:[#allocation3 + $0x98] sm:$0xff] %v1953
  %2086 = vst [vmem:[#allocation3 + $0xa0] sm:$0xff] %v2058
  %2087 = vst [vmem:[#allocation3 + $0xa8] sm:$0xff] %v1957
  %2088 = vst [vmem:[#allocation3 + $0xb0] sm:$0xff] %v1959
  %2089 = vst [vmem:[#allocation3 + $0xb8] sm:$0xff] %v2063
  %v2090 = vld [vmem:[%s6] sm:$0xff]
  %v2091 = vld [vmem:[%s6 + $0x8] sm:$0xff]
  %v2092 = vld [vmem:[%s6 + $0x10] sm:$0xff]
  %v2093 = vld [vmem:[%s6 + $0x18] sm:$0xff]
  %v2094 = vld [vmem:[%s6 + $0x20] sm:$0xff]
  %v2095 = vld [vmem:[%s6 + $0x28] sm:$0xff]
  %v2096 = vld [vmem:[%s6 + $0x30] sm:$0xff]
  %v2097 = vld [vmem:[%s6 + $0x38] sm:$0xff]
  %v2098 = vld [vmem:[%s6 + $0x40] sm:$0xff]
  %v2099 = vld [vmem:[%s6 + $0x48] sm:$0xff]
  %v2100 = vld [vmem:[%s6 + $0x50] sm:$0xff]
  %v2101 = vld [vmem:[%s6 + $0x58] sm:$0xff]
  %v2102 = vld [vmem:[%s6 + $0x60] sm:$0xff]
  %v2103 = vld [vmem:[%s6 + $0x68] sm:$0xff]
  %v2104 = vld [vmem:[%s6 + $0x70] sm:$0xff]
  %v2105 = vld [vmem:[%s6 + $0x78] sm:$0xff]
  %v2106 = vld [vmem:[%s6 + $0x80] sm:$0xff]
  %v2107 = vld [vmem:[%s6 + $0x88] sm:$0xff]
  %v2108 = vld [vmem:[%s6 + $0x90] sm:$0xff]
  %v2109 = vld [vmem:[%s6 + $0x98] sm:$0xff]
  %v2110 = vld [vmem:[%s6 + $0xa0] sm:$0xff]
  %v2111 = vld [vmem:[%s6 + $0xa8] sm:$0xff]
  %v2112 = vld [vmem:[%s6 + $0xb0] sm:$0xff]
  %v2113 = vld [vmem:[%s6 + $0xb8] sm:$0xff]
  %v2114 = vld [vmem:[%s6 + $0xc0] sm:$0xff]
  %v2115 = vld [vmem:[%s6 + $0xc8] sm:$0xff]
  %v2116 = vld [vmem:[%s6 + $0xd0] sm:$0xff]
  %v2117 = vld [vmem:[%s6 + $0xd8] sm:$0xff]
  %v2118 = vld [vmem:[%s6 + $0xe0] sm:$0xff]
  %v2119 = vld [vmem:[%s6 + $0xe8] sm:$0xff]
  %v2120 = vld [vmem:[%s6 + $0xf0] sm:$0xff]
  %v2121 = vld [vmem:[%s6 + $0xf8] sm:$0xff]
  %v2122 = vld [vmem:[%s6 + $0x100] sm:$0xff]
  %v2123 = vld [vmem:[%s6 + $0x108] sm:$0xff]
  %v2124 = vld [vmem:[%s6 + $0x110] sm:$0xff]
  %v2125 = vld [vmem:[%s6 + $0x118] sm:$0xff]
  %v2126 = vld [vmem:[%s6 + $0x120] sm:$0xff]
  %v2127 = vld [vmem:[%s6 + $0x128] sm:$0xff]
  %v2128 = vld [vmem:[%s6 + $0x130] sm:$0xff]
  %v2129 = vld [vmem:[%s6 + $0x138] sm:$0xff]
  %v2130 = vld [vmem:[%s6 + $0x140] sm:$0xff]
  %v2131 = vld [vmem:[%s6 + $0x148] sm:$0xff]
  %v2132 = vld [vmem:[%s6 + $0x150] sm:$0xff]
  %v2133 = vld [vmem:[%s6 + $0x158] sm:$0xff]
  %v2134 = vld [vmem:[%s6 + $0x160] sm:$0xff]
  %v2135 = vld [vmem:[%s6 + $0x168] sm:$0xff]
  %v2136 = vld [vmem:[%s6 + $0x170] sm:$0xff]
  %v2137 = vld [vmem:[%s6 + $0x178] sm:$0xff]
  %v2138 = vld [vmem:[%s8] sm:$0x1]
  %v2139 = vld [vmem:[%s404] sm:$0xff]
  %v2140 = vld [vmem:[%s404 + $0x8] sm:$0xff]
  %v2141 = vld [vmem:[%s404 + $0x10] sm:$0xff]
  %2142 = vmatprep.subr.mxu0 %v2091
  %2143 = vmatpush1.msra.mxu0 %v2090
  %2144 = vmatprep.subr.mxu0 %v2094
  %2145 = vmatpush1.msra.mxu0 %v2093
  %2146 = vmatprep.subr.mxu0 %v2097
  %2147 = vmatpush1.msra.mxu0 %v2096
  %2148 = vmatprep.subr.mxu0 %v2100
  %2149 = vmatpush1.msra.mxu0 %v2099
  %2150 = vmatprep.subr.mxu0 %v2103
  %2151 = vmatpush1.msra.mxu0 %v2102
  %2152 = vmatprep.subr.mxu0 %v2106
  %2153 = vmatpush1.msra.mxu0 %v2105
  %2154 = vmatprep.subr.mxu0 %v2109
  %2155 = vmatpush1.msra.mxu0 %v2108
  %2156 = vmatprep.subr.mxu0 %v2112
  %2157 = vmatpush1.msra.mxu0 %v2111
  %2158 = vmatprep.subr.mxu0 %v2115
  %2159 = vmatpush1.msra.mxu0 %v2114
  %2160 = vmatprep.subr.mxu0 %v2118
  %2161 = vmatpush1.msra.mxu0 %v2117
  %2162 = vmatprep.subr.mxu0 %v2121
  %2163 = vmatpush1.msra.mxu0 %v2120
  %2164 = vmatprep.subr.mxu0 %v2124
  %2165 = vmatpush1.msra.mxu0 %v2123
  %2166 = vmatprep.subr.mxu0 %v2127
  %2167 = vmatpush1.msra.mxu0 %v2126
  %2168 = vmatprep.subr.mxu0 %v2130
  %2169 = vmatpush1.msra.mxu0 %v2129
  %2170 = vmatprep.subr.mxu0 %v2133
  %2171 = vmatpush1.msra.mxu0 %v2132
  %2172 = vmatprep.subr.mxu0 %v2136
  %2173 = vmatpush1.msra.mxu0 %v2135
  %2174 = vmatprep.subr.mxu0 0.0
  %2175 = vmatpush1.msra.mxu0 0.0
  %2176 = vmatprep.subr.mxu0 0.0
  %2177 = vmatpush1.msra.mxu0 0.0
  %2178 = vmatprep.subr.mxu0 0.0
  %2179 = vmatpush1.msra.mxu0 0.0
  %2180 = vmatprep.subr.mxu0 0.0
  %2181 = vmatpush1.msra.mxu0 0.0
  %2182 = vmatprep.subr.mxu0 0.0
  %2183 = vmatpush1.msra.mxu0 0.0
  %2184 = vmatprep.subr.mxu0 0.0
  %2185 = vmatpush1.msra.mxu0 0.0
  %2186 = vmatprep.subr.mxu0 0.0
  %2187 = vmatpush1.msra.mxu0 0.0
  %2188 = vmatprep.subr.mxu0 0.0
  %2189 = vmatpush1.msra.mxu0 0.0
  %2190 = vmatprep.subr.mxu0 0.0
  %2191 = vmatpush1.msra.mxu0 0.0
  %2192 = vmatprep.subr.mxu0 0.0
  %2193 = vmatpush1.msra.mxu0 0.0
  %2194 = vmatprep.subr.mxu0 0.0
  %2195 = vmatpush1.msra.mxu0 0.0
  %2196 = vmatprep.subr.mxu0 0.0
  %2197 = vmatpush1.msra.mxu0 0.0
  %2198 = vmatprep.subr.mxu0 0.0
  %2199 = vmatpush1.msra.mxu0 0.0
  %2200 = vmatprep.subr.mxu0 0.0
  %2201 = vmatpush1.msra.mxu0 0.0
  %2202 = vmatprep.subr.mxu0 0.0
  %2203 = vmatpush1.msra.mxu0 0.0
  %2204 = vmatprep.subr.mxu0 0.0
  %2205 = vmatpush1.msra.mxu0 0.0
  %2206 = vmatprep.mubr.f32.mxu0 0.0
  %2207 = vmatmul.mubr.f32.gmra.mrb[0].mxu0 0.0
  %v2208 = vpop.f32.mrb[0].mxu0
  %v2209 = vadd.f32 0.0, %v2208
  %v2210 = vpop.f32.mrb[0].mxu0
  %v2211 = vadd.f32 0.0, %v2210
  %2212 = vdwg.mxu0
  %2213 = vmatprep.subr.mxu0 0.0
  %2214 = vmatpush1.msra.mxu0 %v2092
  %2215 = vmatprep.subr.mxu0 0.0
  %2216 = vmatpush1.msra.mxu0 %v2095
  %2217 = vmatprep.subr.mxu0 0.0
  %2218 = vmatpush1.msra.mxu0 %v2098
  %2219 = vmatprep.subr.mxu0 0.0
  %2220 = vmatpush1.msra.mxu0 %v2101
  %2221 = vmatprep.subr.mxu0 0.0
  %2222 = vmatpush1.msra.mxu0 %v2104
  %2223 = vmatprep.subr.mxu0 0.0
  %2224 = vmatpush1.msra.mxu0 %v2107
  %2225 = vmatprep.subr.mxu0 0.0
  %2226 = vmatpush1.msra.mxu0 %v2110
  %2227 = vmatprep.subr.mxu0 0.0
  %2228 = vmatpush1.msra.mxu0 %v2113
  %2229 = vmatprep.subr.mxu0 0.0
  %2230 = vmatpush1.msra.mxu0 %v2116
  %2231 = vmatprep.subr.mxu0 0.0
  %2232 = vmatpush1.msra.mxu0 %v2119
  %2233 = vmatprep.subr.mxu0 0.0
  %2234 = vmatpush1.msra.mxu0 %v2122
  %2235 = vmatprep.subr.mxu0 0.0
  %2236 = vmatpush1.msra.mxu0 %v2125
  %2237 = vmatprep.subr.mxu0 0.0
  %2238 = vmatpush1.msra.mxu0 %v2128
  %2239 = vmatprep.subr.mxu0 0.0
  %2240 = vmatpush1.msra.mxu0 %v2131
  %2241 = vmatprep.subr.mxu0 0.0
  %2242 = vmatpush1.msra.mxu0 %v2134
  %2243 = vmatprep.subr.mxu0 0.0
  %2244 = vmatpush1.msra.mxu0 %v2137
  %2245 = vmatprep.subr.mxu0 0.0
  %2246 = vmatpush1.msra.mxu0 0.0
  %2247 = vmatprep.subr.mxu0 0.0
  %2248 = vmatpush1.msra.mxu0 0.0
  %2249 = vmatprep.subr.mxu0 0.0
  %2250 = vmatpush1.msra.mxu0 0.0
  %2251 = vmatprep.subr.mxu0 0.0
  %2252 = vmatpush1.msra.mxu0 0.0
  %2253 = vmatprep.subr.mxu0 0.0
  %2254 = vmatpush1.msra.mxu0 0.0
  %2255 = vmatprep.subr.mxu0 0.0
  %2256 = vmatpush1.msra.mxu0 0.0
  %2257 = vmatprep.subr.mxu0 0.0
  %2258 = vmatpush1.msra.mxu0 0.0
  %2259 = vmatprep.subr.mxu0 0.0
  %2260 = vmatpush1.msra.mxu0 0.0
  %2261 = vmatprep.subr.mxu0 0.0
  %2262 = vmatpush1.msra.mxu0 0.0
  %2263 = vmatprep.subr.mxu0 0.0
  %2264 = vmatpush1.msra.mxu0 0.0
  %2265 = vmatprep.subr.mxu0 0.0
  %2266 = vmatpush1.msra.mxu0 0.0
  %2267 = vmatprep.subr.mxu0 0.0
  %2268 = vmatpush1.msra.mxu0 0.0
  %2269 = vmatprep.subr.mxu0 0.0
  %2270 = vmatpush1.msra.mxu0 0.0
  %2271 = vmatprep.subr.mxu0 0.0
  %2272 = vmatpush1.msra.mxu0 0.0
  %2273 = vmatprep.subr.mxu0 0.0
  %2274 = vmatpush1.msra.mxu0 0.0
  %2275 = vmatprep.subr.mxu0 0.0
  %2276 = vmatpush1.msra.mxu0 0.0
  %2277 = vmatprep.mubr.f32.mxu0 0.0
  %2278 = vmatmul.mubr.f32.gmra.mrb[0].mxu0 0.0
  %v2279 = vpop.f32.mrb[0].mxu0
  %v2280 = vadd.f32 0.0, %v2279
  %v2281 = vpop.f32.mrb[0].mxu0
  %2282 = vdwg.mxu0
  %v2283 = vadd.f32 %v2139, %v2209
  %v2284 = vxor.u32 %v2283, 2147483648
  %v2285 = vmul.f32 %v2284, 1.442695
  %v2286 = vpow.pop %v2285
  %v2287 = vadd.f32 %v2286, 1.0
  %v2288 = vrcp.pop %v2287
  %v2289 = vmul.f32 1.0, %v2288
  %v2290 = vadd.f32 %v2140, %v2211
  %v2291 = vxor.u32 %v2290, 2147483648
  %v2292 = vmul.f32 %v2291, 1.442695
  %v2293 = vpow.pop %v2292
  %v2294 = vadd.f32 %v2293, 1.0
  %v2295 = vrcp.pop %v2294
  %v2296 = vmul.f32 1.0, %v2295
  %v2298 = vlaneseq
  %v2299 = vshrl.u32 %v2298, 7
  %v2300 = vsub.s32 0, %v2299
  %v2301 = vrot.slane %v2138, %v2300
  %v2303 = vadd.f32 %v2280, %v2301
  %v2304 = vmul.f32 %v2289, %v2303
  %v2305 = vadd.f32 %v2141, %v2304
  %v2306 = vtanh.pop %v2305
  %v2307 = vsub.f32 1.0, %v2296
  %v2308 = vmul.f32 %v2307, %v2306
  %v2309 = vmul.f32 %v2296, 0.0
  %v2310 = vadd.f32 %v2308, %v2309
  %v2311 = vld [vmem:[%s580] sm:$0xff]
  %v2312 = vld [vmem:[%s580 + $0x8] sm:$0xff]
  %v2313 = vld [vmem:[%s580 + $0x10] sm:$0xff]
  %2314 = vmatprep.subr.mxu0 %v2091
  %2315 = vmatpush1.msra.mxu0 %v2090
  %2316 = vmatprep.subr.mxu0 %v2094
  %2317 = vmatpush1.msra.mxu0 %v2093
  %2318 = vmatprep.subr.mxu0 %v2097
  %2319 = vmatpush1.msra.mxu0 %v2096
  %2320 = vmatprep.subr.mxu0 %v2100
  %2321 = vmatpush1.msra.mxu0 %v2099
  %2322 = vmatprep.subr.mxu0 %v2103
  %2323 = vmatpush1.msra.mxu0 %v2102
  %2324 = vmatprep.subr.mxu0 %v2106
  %2325 = vmatpush1.msra.mxu0 %v2105
  %2326 = vmatprep.subr.mxu0 %v2109
  %2327 = vmatpush1.msra.mxu0 %v2108
  %2328 = vmatprep.subr.mxu0 %v2112
  %2329 = vmatpush1.msra.mxu0 %v2111
  %2330 = vmatprep.subr.mxu0 %v2115
  %2331 = vmatpush1.msra.mxu0 %v2114
  %2332 = vmatprep.subr.mxu0 %v2118
  %2333 = vmatpush1.msra.mxu0 %v2117
  %2334 = vmatprep.subr.mxu0 %v2121
  %2335 = vmatpush1.msra.mxu0 %v2120
  %2336 = vmatprep.subr.mxu0 %v2124
  %2337 = vmatpush1.msra.mxu0 %v2123
  %2338 = vmatprep.subr.mxu0 %v2127
  %2339 = vmatpush1.msra.mxu0 %v2126
  %2340 = vmatprep.subr.mxu0 %v2130
  %2341 = vmatpush1.msra.mxu0 %v2129
  %2342 = vmatprep.subr.mxu0 %v2133
  %2343 = vmatpush1.msra.mxu0 %v2132
  %2344 = vmatprep.subr.mxu0 %v2136
  %2345 = vmatpush1.msra.mxu0 %v2135
  %2346 = vmatprep.subr.mxu0 0.0
  %2347 = vmatpush1.msra.mxu0 0.0
  %2348 = vmatprep.subr.mxu0 0.0
  %2349 = vmatpush1.msra.mxu0 0.0
  %2350 = vmatprep.subr.mxu0 0.0
  %2351 = vmatpush1.msra.mxu0 0.0
  %2352 = vmatprep.subr.mxu0 0.0
  %2353 = vmatpush1.msra.mxu0 0.0
  %2354 = vmatprep.subr.mxu0 0.0
  %2355 = vmatpush1.msra.mxu0 0.0
  %2356 = vmatprep.subr.mxu0 0.0
  %2357 = vmatpush1.msra.mxu0 0.0
  %2358 = vmatprep.subr.mxu0 0.0
  %2359 = vmatpush1.msra.mxu0 0.0
  %2360 = vmatprep.subr.mxu0 0.0
  %2361 = vmatpush1.msra.mxu0 0.0
  %2362 = vmatprep.subr.mxu0 0.0
  %2363 = vmatpush1.msra.mxu0 0.0
  %2364 = vmatprep.subr.mxu0 0.0
  %2365 = vmatpush1.msra.mxu0 0.0
  %2366 = vmatprep.subr.mxu0 0.0
  %2367 = vmatpush1.msra.mxu0 0.0
  %2368 = vmatprep.subr.mxu0 0.0
  %2369 = vmatpush1.msra.mxu0 0.0
  %2370 = vmatprep.subr.mxu0 0.0
  %2371 = vmatpush1.msra.mxu0 0.0
  %2372 = vmatprep.subr.mxu0 0.0
  %2373 = vmatpush1.msra.mxu0 0.0
  %2374 = vmatprep.subr.mxu0 0.0
  %2375 = vmatpush1.msra.mxu0 0.0
  %2376 = vmatprep.subr.mxu0 0.0
  %2377 = vmatpush1.msra.mxu0 0.0
  %2378 = vmatprep.mubr.f32.mxu0 0.0
  %2379 = vmatmul.mubr.f32.gmra.mrb[0].mxu0 %v2310
  %v2380 = vpop.f32.mrb[0].mxu0
  %v2381 = vadd.f32 0.0, %v2380
  %v2382 = vpop.f32.mrb[0].mxu0
  %v2383 = vadd.f32 0.0, %v2382
  %2384 = vdwg.mxu0
  %2385 = vmatprep.subr.mxu0 0.0
  %2386 = vmatpush1.msra.mxu0 %v2092
  %2387 = vmatprep.subr.mxu0 0.0
  %2388 = vmatpush1.msra.mxu0 %v2095
  %2389 = vmatprep.subr.mxu0 0.0
  %2390 = vmatpush1.msra.mxu0 %v2098
  %2391 = vmatprep.subr.mxu0 0.0
  %2392 = vmatpush1.msra.mxu0 %v2101
  %2393 = vmatprep.subr.mxu0 0.0
  %2394 = vmatpush1.msra.mxu0 %v2104
  %2395 = vmatprep.subr.mxu0 0.0
  %2396 = vmatpush1.msra.mxu0 %v2107
  %2397 = vmatprep.subr.mxu0 0.0
  %2398 = vmatpush1.msra.mxu0 %v2110
  %2399 = vmatprep.subr.mxu0 0.0
  %2400 = vmatpush1.msra.mxu0 %v2113
  %2401 = vmatprep.subr.mxu0 0.0
  %2402 = vmatpush1.msra.mxu0 %v2116
  %2403 = vmatprep.subr.mxu0 0.0
  %2404 = vmatpush1.msra.mxu0 %v2119
  %2405 = vmatprep.subr.mxu0 0.0
  %2406 = vmatpush1.msra.mxu0 %v2122
  %2407 = vmatprep.subr.mxu0 0.0
  %2408 = vmatpush1.msra.mxu0 %v2125
  %2409 = vmatprep.subr.mxu0 0.0
  %2410 = vmatpush1.msra.mxu0 %v2128
  %2411 = vmatprep.subr.mxu0 0.0
  %2412 = vmatpush1.msra.mxu0 %v2131
  %2413 = vmatprep.subr.mxu0 0.0
  %2414 = vmatpush1.msra.mxu0 %v2134
  %2415 = vmatprep.subr.mxu0 0.0
  %2416 = vmatpush1.msra.mxu0 %v2137
  %2417 = vmatprep.subr.mxu0 0.0
  %2418 = vmatpush1.msra.mxu0 0.0
  %2419 = vmatprep.subr.mxu0 0.0
  %2420 = vmatpush1.msra.mxu0 0.0
  %2421 = vmatprep.subr.mxu0 0.0
  %2422 = vmatpush1.msra.mxu0 0.0
  %2423 = vmatprep.subr.mxu0 0.0
  %2424 = vmatpush1.msra.mxu0 0.0
  %2425 = vmatprep.subr.mxu0 0.0
  %2426 = vmatpush1.msra.mxu0 0.0
  %2427 = vmatprep.subr.mxu0 0.0
  %2428 = vmatpush1.msra.mxu0 0.0
  %2429 = vmatprep.subr.mxu0 0.0
  %2430 = vmatpush1.msra.mxu0 0.0
  %2431 = vmatprep.subr.mxu0 0.0
  %2432 = vmatpush1.msra.mxu0 0.0
  %2433 = vmatprep.subr.mxu0 0.0
  %2434 = vmatpush1.msra.mxu0 0.0
  %2435 = vmatprep.subr.mxu0 0.0
  %2436 = vmatpush1.msra.mxu0 0.0
  %2437 = vmatprep.subr.mxu0 0.0
  %2438 = vmatpush1.msra.mxu0 0.0
  %2439 = vmatprep.subr.mxu0 0.0
  %2440 = vmatpush1.msra.mxu0 0.0
  %2441 = vmatprep.subr.mxu0 0.0
  %2442 = vmatpush1.msra.mxu0 0.0
  %2443 = vmatprep.subr.mxu0 0.0
  %2444 = vmatpush1.msra.mxu0 0.0
  %2445 = vmatprep.subr.mxu0 0.0
  %2446 = vmatpush1.msra.mxu0 0.0
  %2447 = vmatprep.subr.mxu0 0.0
  %2448 = vmatpush1.msra.mxu0 0.0
  %2449 = vmatprep.mubr.f32.mxu0 0.0
  %2450 = vmatmul.mubr.f32.gmra.mrb[0].mxu0 %v2310
  %v2451 = vpop.f32.mrb[0].mxu0
  %v2452 = vadd.f32 0.0, %v2451
  %v2453 = vpop.f32.mrb[0].mxu0
  %2454 = vdwg.mxu0
  %v2455 = vadd.f32 %v2311, %v2381
  %v2456 = vxor.u32 %v2455, 2147483648
  %v2457 = vmul.f32 %v2456, 1.442695
  %v2458 = vpow.pop %v2457
  %v2459 = vadd.f32 %v2458, 1.0
  %v2460 = vrcp.pop %v2459
  %v2461 = vmul.f32 1.0, %v2460
  %v2462 = vadd.f32 %v2312, %v2383
  %v2463 = vxor.u32 %v2462, 2147483648
  %v2464 = vmul.f32 %v2463, 1.442695
  %v2465 = vpow.pop %v2464
  %v2466 = vadd.f32 %v2465, 1.0
  %v2467 = vrcp.pop %v2466
  %v2468 = vmul.f32 1.0, %v2467
  %v2469 = vadd.f32 %v2452, %v2301
  %v2470 = vmul.f32 %v2461, %v2469
  %v2471 = vadd.f32 %v2313, %v2470
  %v2472 = vtanh.pop %v2471
  %v2473 = vsub.f32 1.0, %v2468
  %v2474 = vmul.f32 %v2473, %v2472
  %v2475 = vmul.f32 %v2468, %v2310
  %v2476 = vadd.f32 %v2474, %v2475
  %v2477 = vld [vmem:[%s751] sm:$0xff]
  %v2478 = vld [vmem:[%s751 + $0x8] sm:$0xff]
  %v2479 = vld [vmem:[%s751 + $0x10] sm:$0xff]
  %2480 = vmatprep.subr.mxu0 %v2091
  %2481 = vmatpush1.msra.mxu0 %v2090
  %2482 = vmatprep.subr.mxu0 %v2094
  %2483 = vmatpush1.msra.mxu0 %v2093
  %2484 = vmatprep.subr.mxu0 %v2097
  %2485 = vmatpush1.msra.mxu0 %v2096
  %2486 = vmatprep.subr.mxu0 %v2100
  %2487 = vmatpush1.msra.mxu0 %v2099
  %2488 = vmatprep.subr.mxu0 %v2103
  %2489 = vmatpush1.msra.mxu0 %v2102
  %2490 = vmatprep.subr.mxu0 %v2106
  %2491 = vmatpush1.msra.mxu0 %v2105
  %2492 = vmatprep.subr.mxu0 %v2109
  %2493 = vmatpush1.msra.mxu0 %v2108
  %2494 = vmatprep.subr.mxu0 %v2112
  %2495 = vmatpush1.msra.mxu0 %v2111
  %2496 = vmatprep.subr.mxu0 %v2115
  %2497 = vmatpush1.msra.mxu0 %v2114
  %2498 = vmatprep.subr.mxu0 %v2118
  %2499 = vmatpush1.msra.mxu0 %v2117
  %2500 = vmatprep.subr.mxu0 %v2121
  %2501 = vmatpush1.msra.mxu0 %v2120
  %2502 = vmatprep.subr.mxu0 %v2124
  %2503 = vmatpush1.msra.mxu0 %v2123
  %2504 = vmatprep.subr.mxu0 %v2127
  %2505 = vmatpush1.msra.mxu0 %v2126
  %2506 = vmatprep.subr.mxu0 %v2130
  %2507 = vmatpush1.msra.mxu0 %v2129
  %2508 = vmatprep.subr.mxu0 %v2133
  %2509 = vmatpush1.msra.mxu0 %v2132
  %2510 = vmatprep.subr.mxu0 %v2136
  %2511 = vmatpush1.msra.mxu0 %v2135
  %2512 = vmatprep.subr.mxu0 0.0
  %2513 = vmatpush1.msra.mxu0 0.0
  %2514 = vmatprep.subr.mxu0 0.0
  %2515 = vmatpush1.msra.mxu0 0.0
  %2516 = vmatprep.subr.mxu0 0.0
  %2517 = vmatpush1.msra.mxu0 0.0
  %2518 = vmatprep.subr.mxu0 0.0
  %2519 = vmatpush1.msra.mxu0 0.0
  %2520 = vmatprep.subr.mxu0 0.0
  %2521 = vmatpush1.msra.mxu0 0.0
  %2522 = vmatprep.subr.mxu0 0.0
  %2523 = vmatpush1.msra.mxu0 0.0
  %2524 = vmatprep.subr.mxu0 0.0
  %2525 = vmatpush1.msra.mxu0 0.0
  %2526 = vmatprep.subr.mxu0 0.0
  %2527 = vmatpush1.msra.mxu0 0.0
  %2528 = vmatprep.subr.mxu0 0.0
  %2529 = vmatpush1.msra.mxu0 0.0
  %2530 = vmatprep.subr.mxu0 0.0
  %2531 = vmatpush1.msra.mxu0 0.0
  %2532 = vmatprep.subr.mxu0 0.0
  %2533 = vmatpush1.msra.mxu0 0.0
  %2534 = vmatprep.subr.mxu0 0.0
  %2535 = vmatpush1.msra.mxu0 0.0
  %2536 = vmatprep.subr.mxu0 0.0
  %2537 = vmatpush1.msra.mxu0 0.0
  %2538 = vmatprep.subr.mxu0 0.0
  %2539 = vmatpush1.msra.mxu0 0.0
  %2540 = vmatprep.subr.mxu0 0.0
  %2541 = vmatpush1.msra.mxu0 0.0
  %2542 = vmatprep.subr.mxu0 0.0
  %2543 = vmatpush1.msra.mxu0 0.0
  %2544 = vmatprep.mubr.f32.mxu0 0.0
  %2545 = vmatmul.mubr.f32.gmra.mrb[0].mxu0 %v2476
  %v2546 = vpop.f32.mrb[0].mxu0
  %v2547 = vadd.f32 0.0, %v2546
  %v2548 = vpop.f32.mrb[0].mxu0
  %v2549 = vadd.f32 0.0, %v2548
  %2550 = vdwg.mxu0
  %2551 = vmatprep.subr.mxu0 0.0
  %2552 = vmatpush1.msra.mxu0 %v2092
  %2553 = vmatprep.subr.mxu0 0.0
  %2554 = vmatpush1.msra.mxu0 %v2095
  %2555 = vmatprep.subr.mxu0 0.0
  %2556 = vmatpush1.msra.mxu0 %v2098
  %2557 = vmatprep.subr.mxu0 0.0
  %2558 = vmatpush1.msra.mxu0 %v2101
  %2559 = vmatprep.subr.mxu0 0.0
  %2560 = vmatpush1.msra.mxu0 %v2104
  %2561 = vmatprep.subr.mxu0 0.0
  %2562 = vmatpush1.msra.mxu0 %v2107
  %2563 = vmatprep.subr.mxu0 0.0
  %2564 = vmatpush1.msra.mxu0 %v2110
  %2565 = vmatprep.subr.mxu0 0.0
  %2566 = vmatpush1.msra.mxu0 %v2113
  %2567 = vmatprep.subr.mxu0 0.0
  %2568 = vmatpush1.msra.mxu0 %v2116
  %2569 = vmatprep.subr.mxu0 0.0
  %2570 = vmatpush1.msra.mxu0 %v2119
  %2571 = vmatprep.subr.mxu0 0.0
  %2572 = vmatpush1.msra.mxu0 %v2122
  %2573 = vmatprep.subr.mxu0 0.0
  %2574 = vmatpush1.msra.mxu0 %v2125
  %2575 = vmatprep.subr.mxu0 0.0
  %2576 = vmatpush1.msra.mxu0 %v2128
  %2577 = vmatprep.subr.mxu0 0.0
  %2578 = vmatpush1.msra.mxu0 %v2131
  %2579 = vmatprep.subr.mxu0 0.0
  %2580 = vmatpush1.msra.mxu0 %v2134
  %2581 = vmatprep.subr.mxu0 0.0
  %2582 = vmatpush1.msra.mxu0 %v2137
  %2583 = vmatprep.subr.mxu0 0.0
  %2584 = vmatpush1.msra.mxu0 0.0
  %2585 = vmatprep.subr.mxu0 0.0
  %2586 = vmatpush1.msra.mxu0 0.0
  %2587 = vmatprep.subr.mxu0 0.0
  %2588 = vmatpush1.msra.mxu0 0.0
  %2589 = vmatprep.subr.mxu0 0.0
  %2590 = vmatpush1.msra.mxu0 0.0
  %2591 = vmatprep.subr.mxu0 0.0
  %2592 = vmatpush1.msra.mxu0 0.0
  %2593 = vmatprep.subr.mxu0 0.0
  %2594 = vmatpush1.msra.mxu0 0.0
  %2595 = vmatprep.subr.mxu0 0.0
  %2596 = vmatpush1.msra.mxu0 0.0
  %2597 = vmatprep.subr.mxu0 0.0
  %2598 = vmatpush1.msra.mxu0 0.0
  %2599 = vmatprep.subr.mxu0 0.0
  %2600 = vmatpush1.msra.mxu0 0.0
  %2601 = vmatprep.subr.mxu0 0.0
  %2602 = vmatpush1.msra.mxu0 0.0
  %2603 = vmatprep.subr.mxu0 0.0
  %2604 = vmatpush1.msra.mxu0 0.0
  %2605 = vmatprep.subr.mxu0 0.0
  %2606 = vmatpush1.msra.mxu0 0.0
  %2607 = vmatprep.subr.mxu0 0.0
  %2608 = vmatpush1.msra.mxu0 0.0
  %2609 = vmatprep.subr.mxu0 0.0
  %2610 = vmatpush1.msra.mxu0 0.0
  %2611 = vmatprep.subr.mxu0 0.0
  %2612 = vmatpush1.msra.mxu0 0.0
  %2613 = vmatprep.subr.mxu0 0.0
  %2614 = vmatpush1.msra.mxu0 0.0
  %2615 = vmatprep.mubr.f32.mxu0 0.0
  %2616 = vmatmul.mubr.f32.gmra.mrb[0].mxu0 %v2476
  %v2617 = vpop.f32.mrb[0].mxu0
  %v2618 = vadd.f32 0.0, %v2617
  %v2619 = vpop.f32.mrb[0].mxu0
  %2620 = vdwg.mxu0
  %v2621 = vadd.f32 %v2477, %v2547
  %v2622 = vxor.u32 %v2621, 2147483648
  %v2623 = vmul.f32 %v2622, 1.442695
  %v2624 = vpow.pop %v2623
  %v2625 = vadd.f32 %v2624, 1.0
  %v2626 = vrcp.pop %v2625
  %v2627 = vmul.f32 1.0, %v2626
  %v2628 = vadd.f32 %v2478, %v2549
  %v2629 = vxor.u32 %v2628, 2147483648
  %v2630 = vmul.f32 %v2629, 1.442695
  %v2631 = vpow.pop %v2630
  %v2632 = vadd.f32 %v2631, 1.0
  %v2633 = vrcp.pop %v2632
  %v2634 = vmul.f32 1.0, %v2633
  %v2635 = vadd.f32 %v2618, %v2301
  %v2636 = vmul.f32 %v2627, %v2635
  %v2637 = vadd.f32 %v2479, %v2636
  %v2638 = vtanh.pop %v2637
  %v2639 = vsub.f32 1.0, %v2634
  %v2640 = vmul.f32 %v2639, %v2638
  %v2641 = vmul.f32 %v2634, %v2476
  %v2642 = vadd.f32 %v2640, %v2641
  %v2643 = vld [vmem:[%s922] sm:$0xff]
  %v2644 = vld [vmem:[%s922 + $0x8] sm:$0xff]
  %v2645 = vld [vmem:[%s922 + $0x10] sm:$0xff]
  %2646 = vmatprep.subr.mxu0 %v2091
  %2647 = vmatpush1.msra.mxu0 %v2090
  %2648 = vmatprep.subr.mxu0 %v2094
  %2649 = vmatpush1.msra.mxu0 %v2093
  %2650 = vmatprep.subr.mxu0 %v2097
  %2651 = vmatpush1.msra.mxu0 %v2096
  %2652 = vmatprep.subr.mxu0 %v2100
  %2653 = vmatpush1.msra.mxu0 %v2099
  %2654 = vmatprep.subr.mxu0 %v2103
  %2655 = vmatpush1.msra.mxu0 %v2102
  %2656 = vmatprep.subr.mxu0 %v2106
  %2657 = vmatpush1.msra.mxu0 %v2105
  %2658 = vmatprep.subr.mxu0 %v2109
  %2659 = vmatpush1.msra.mxu0 %v2108
  %2660 = vmatprep.subr.mxu0 %v2112
  %2661 = vmatpush1.msra.mxu0 %v2111
  %2662 = vmatprep.subr.mxu0 %v2115
  %2663 = vmatpush1.msra.mxu0 %v2114
  %2664 = vmatprep.subr.mxu0 %v2118
  %2665 = vmatpush1.msra.mxu0 %v2117
  %2666 = vmatprep.subr.mxu0 %v2121
  %2667 = vmatpush1.msra.mxu0 %v2120
  %2668 = vmatprep.subr.mxu0 %v2124
  %2669 = vmatpush1.msra.mxu0 %v2123
  %2670 = vmatprep.subr.mxu0 %v2127
  %2671 = vmatpush1.msra.mxu0 %v2126
  %2672 = vmatprep.subr.mxu0 %v2130
  %2673 = vmatpush1.msra.mxu0 %v2129
  %2674 = vmatprep.subr.mxu0 %v2133
  %2675 = vmatpush1.msra.mxu0 %v2132
  %2676 = vmatprep.subr.mxu0 %v2136
  %2677 = vmatpush1.msra.mxu0 %v2135
  %2678 = vmatprep.subr.mxu0 0.0
  %2679 = vmatpush1.msra.mxu0 0.0
  %2680 = vmatprep.subr.mxu0 0.0
  %2681 = vmatpush1.msra.mxu0 0.0
  %2682 = vmatprep.subr.mxu0 0.0
  %2683 = vmatpush1.msra.mxu0 0.0
  %2684 = vmatprep.subr.mxu0 0.0
  %2685 = vmatpush1.msra.mxu0 0.0
  %2686 = vmatprep.subr.mxu0 0.0
  %2687 = vmatpush1.msra.mxu0 0.0
  %2688 = vmatprep.subr.mxu0 0.0
  %2689 = vmatpush1.msra.mxu0 0.0
  %2690 = vmatprep.subr.mxu0 0.0
  %2691 = vmatpush1.msra.mxu0 0.0
  %2692 = vmatprep.subr.mxu0 0.0
  %2693 = vmatpush1.msra.mxu0 0.0
  %2694 = vmatprep.subr.mxu0 0.0
  %2695 = vmatpush1.msra.mxu0 0.0
  %2696 = vmatprep.subr.mxu0 0.0
  %2697 = vmatpush1.msra.mxu0 0.0
  %2698 = vmatprep.subr.mxu0 0.0
  %2699 = vmatpush1.msra.mxu0 0.0
  %2700 = vmatprep.subr.mxu0 0.0
  %2701 = vmatpush1.msra.mxu0 0.0
  %2702 = vmatprep.subr.mxu0 0.0
  %2703 = vmatpush1.msra.mxu0 0.0
  %2704 = vmatprep.subr.mxu0 0.0
  %2705 = vmatpush1.msra.mxu0 0.0
  %2706 = vmatprep.subr.mxu0 0.0
  %2707 = vmatpush1.msra.mxu0 0.0
  %2708 = vmatprep.subr.mxu0 0.0
  %2709 = vmatpush1.msra.mxu0 0.0
  %2710 = vmatprep.mubr.f32.mxu0 0.0
  %2711 = vmatmul.mubr.f32.gmra.mrb[0].mxu0 %v2642
  %v2712 = vpop.f32.mrb[0].mxu0
  %v2713 = vadd.f32 0.0, %v2712
  %v2714 = vpop.f32.mrb[0].mxu0
  %v2715 = vadd.f32 0.0, %v2714
  %2716 = vdwg.mxu0
  %2717 = vmatprep.subr.mxu0 0.0
  %2718 = vmatpush1.msra.mxu0 %v2092
  %2719 = vmatprep.subr.mxu0 0.0
  %2720 = vmatpush1.msra.mxu0 %v2095
  %2721 = vmatprep.subr.mxu0 0.0
  %2722 = vmatpush1.msra.mxu0 %v2098
  %2723 = vmatprep.subr.mxu0 0.0
  %2724 = vmatpush1.msra.mxu0 %v2101
  %2725 = vmatprep.subr.mxu0 0.0
  %2726 = vmatpush1.msra.mxu0 %v2104
  %2727 = vmatprep.subr.mxu0 0.0
  %2728 = vmatpush1.msra.mxu0 %v2107
  %2729 = vmatprep.subr.mxu0 0.0
  %2730 = vmatpush1.msra.mxu0 %v2110
  %2731 = vmatprep.subr.mxu0 0.0
  %2732 = vmatpush1.msra.mxu0 %v2113
  %2733 = vmatprep.subr.mxu0 0.0
  %2734 = vmatpush1.msra.mxu0 %v2116
  %2735 = vmatprep.subr.mxu0 0.0
  %2736 = vmatpush1.msra.mxu0 %v2119
  %2737 = vmatprep.subr.mxu0 0.0
  %2738 = vmatpush1.msra.mxu0 %v2122
  %2739 = vmatprep.subr.mxu0 0.0
  %2740 = vmatpush1.msra.mxu0 %v2125
  %2741 = vmatprep.subr.mxu0 0.0
  %2742 = vmatpush1.msra.mxu0 %v2128
  %2743 = vmatprep.subr.mxu0 0.0
  %2744 = vmatpush1.msra.mxu0 %v2131
  %2745 = vmatprep.subr.mxu0 0.0
  %2746 = vmatpush1.msra.mxu0 %v2134
  %2747 = vmatprep.subr.mxu0 0.0
  %2748 = vmatpush1.msra.mxu0 %v2137
  %2749 = vmatprep.subr.mxu0 0.0
  %2750 = vmatpush1.msra.mxu0 0.0
  %2751 = vmatprep.subr.mxu0 0.0
  %2752 = vmatpush1.msra.mxu0 0.0
  %2753 = vmatprep.subr.mxu0 0.0
  %2754 = vmatpush1.msra.mxu0 0.0
  %2755 = vmatprep.subr.mxu0 0.0
  %2756 = vmatpush1.msra.mxu0 0.0
  %2757 = vmatprep.subr.mxu0 0.0
  %2758 = vmatpush1.msra.mxu0 0.0
  %2759 = vmatprep.subr.mxu0 0.0
  %2760 = vmatpush1.msra.mxu0 0.0
  %2761 = vmatprep.subr.mxu0 0.0
  %2762 = vmatpush1.msra.mxu0 0.0
  %2763 = vmatprep.subr.mxu0 0.0
  %2764 = vmatpush1.msra.mxu0 0.0
  %2765 = vmatprep.subr.mxu0 0.0
  %2766 = vmatpush1.msra.mxu0 0.0
  %2767 = vmatprep.subr.mxu0 0.0
  %2768 = vmatpush1.msra.mxu0 0.0
  %2769 = vmatprep.subr.mxu0 0.0
  %2770 = vmatpush1.msra.mxu0 0.0
  %2771 = vmatprep.subr.mxu0 0.0
  %2772 = vmatpush1.msra.mxu0 0.0
  %2773 = vmatprep.subr.mxu0 0.0
  %2774 = vmatpush1.msra.mxu0 0.0
  %2775 = vmatprep.subr.mxu0 0.0
  %2776 = vmatpush1.msra.mxu0 0.0
  %2777 = vmatprep.subr.mxu0 0.0
  %2778 = vmatpush1.msra.mxu0 0.0
  %2779 = vmatprep.subr.mxu0 0.0
  %2780 = vmatpush1.msra.mxu0 0.0
  %2781 = vmatprep.mubr.f32.mxu0 0.0
  %2782 = vmatmul.mubr.f32.gmra.mrb[0].mxu0 %v2642
  %v2783 = vpop.f32.mrb[0].mxu0
  %v2784 = vadd.f32 0.0, %v2783
  %v2785 = vpop.f32.mrb[0].mxu0
  %2786 = vdwg.mxu0
  %v2787 = vadd.f32 %v2643, %v2713
  %v2788 = vxor.u32 %v2787, 2147483648
  %v2789 = vmul.f32 %v2788, 1.442695
  %v2790 = vpow.pop %v2789
  %v2791 = vadd.f32 %v2790, 1.0
  %v2792 = vrcp.pop %v2791
  %v2793 = vmul.f32 1.0, %v2792
  %v2794 = vadd.f32 %v2644, %v2715
  %v2795 = vxor.u32 %v2794, 2147483648
  %v2796 = vmul.f32 %v2795, 1.442695
  %v2797 = vpow.pop %v2796
  %v2798 = vadd.f32 %v2797, 1.0
  %v2799 = vrcp.pop %v2798
  %v2800 = vmul.f32 1.0, %v2799
  %v2801 = vadd.f32 %v2784, %v2301
  %v2802 = vmul.f32 %v2793, %v2801
  %v2803 = vadd.f32 %v2645, %v2802
  %v2804 = vtanh.pop %v2803
  %v2805 = vsub.f32 1.0, %v2800
  %v2806 = vmul.f32 %v2805, %v2804
  %v2807 = vmul.f32 %v2800, %v2642
  %v2808 = vadd.f32 %v2806, %v2807
  %v2809 = vld [vmem:[%s1093] sm:$0xff]
  %v2810 = vld [vmem:[%s1093 + $0x8] sm:$0xff]
  %v2811 = vld [vmem:[%s1093 + $0x10] sm:$0xff]
  %2812 = vmatprep.subr.mxu0 %v2091
  %2813 = vmatpush1.msra.mxu0 %v2090
  %2814 = vmatprep.subr.mxu0 %v2094
  %2815 = vmatpush1.msra.mxu0 %v2093
  %2816 = vmatprep.subr.mxu0 %v2097
  %2817 = vmatpush1.msra.mxu0 %v2096
  %2818 = vmatprep.subr.mxu0 %v2100
  %2819 = vmatpush1.msra.mxu0 %v2099
  %2820 = vmatprep.subr.mxu0 %v2103
  %2821 = vmatpush1.msra.mxu0 %v2102
  %2822 = vmatprep.subr.mxu0 %v2106
  %2823 = vmatpush1.msra.mxu0 %v2105
  %2824 = vmatprep.subr.mxu0 %v2109
  %2825 = vmatpush1.msra.mxu0 %v2108
  %2826 = vmatprep.subr.mxu0 %v2112
  %2827 = vmatpush1.msra.mxu0 %v2111
  %2828 = vmatprep.subr.mxu0 %v2115
  %2829 = vmatpush1.msra.mxu0 %v2114
  %2830 = vmatprep.subr.mxu0 %v2118
  %2831 = vmatpush1.msra.mxu0 %v2117
  %2832 = vmatprep.subr.mxu0 %v2121
  %2833 = vmatpush1.msra.mxu0 %v2120
  %2834 = vmatprep.subr.mxu0 %v2124
  %2835 = vmatpush1.msra.mxu0 %v2123
  %2836 = vmatprep.subr.mxu0 %v2127
  %2837 = vmatpush1.msra.mxu0 %v2126
  %2838 = vmatprep.subr.mxu0 %v2130
  %2839 = vmatpush1.msra.mxu0 %v2129
  %2840 = vmatprep.subr.mxu0 %v2133
  %2841 = vmatpush1.msra.mxu0 %v2132
  %2842 = vmatprep.subr.mxu0 %v2136
  %2843 = vmatpush1.msra.mxu0 %v2135
  %2844 = vmatprep.subr.mxu0 0.0
  %2845 = vmatpush1.msra.mxu0 0.0
  %2846 = vmatprep.subr.mxu0 0.0
  %2847 = vmatpush1.msra.mxu0 0.0
  %2848 = vmatprep.subr.mxu0 0.0
  %2849 = vmatpush1.msra.mxu0 0.0
  %2850 = vmatprep.subr.mxu0 0.0
  %2851 = vmatpush1.msra.mxu0 0.0
  %2852 = vmatprep.subr.mxu0 0.0
  %2853 = vmatpush1.msra.mxu0 0.0
  %2854 = vmatprep.subr.mxu0 0.0
  %2855 = vmatpush1.msra.mxu0 0.0
  %2856 = vmatprep.subr.mxu0 0.0
  %2857 = vmatpush1.msra.mxu0 0.0
  %2858 = vmatprep.subr.mxu0 0.0
  %2859 = vmatpush1.msra.mxu0 0.0
  %2860 = vmatprep.subr.mxu0 0.0
  %2861 = vmatpush1.msra.mxu0 0.0
  %2862 = vmatprep.subr.mxu0 0.0
  %2863 = vmatpush1.msra.mxu0 0.0
  %2864 = vmatprep.subr.mxu0 0.0
  %2865 = vmatpush1.msra.mxu0 0.0
  %2866 = vmatprep.subr.mxu0 0.0
  %2867 = vmatpush1.msra.mxu0 0.0
  %2868 = vmatprep.subr.mxu0 0.0
  %2869 = vmatpush1.msra.mxu0 0.0
  %2870 = vmatprep.subr.mxu0 0.0
  %2871 = vmatpush1.msra.mxu0 0.0
  %2872 = vmatprep.subr.mxu0 0.0
  %2873 = vmatpush1.msra.mxu0 0.0
  %2874 = vmatprep.subr.mxu0 0.0
  %2875 = vmatpush1.msra.mxu0 0.0
  %2876 = vmatprep.mubr.f32.mxu0 0.0
  %2877 = vmatmul.mubr.f32.gmra.mrb[0].mxu0 %v2808
  %v2878 = vpop.f32.mrb[0].mxu0
  %v2879 = vadd.f32 0.0, %v2878
  %v2880 = vpop.f32.mrb[0].mxu0
  %v2881 = vadd.f32 0.0, %v2880
  %2882 = vdwg.mxu0
  %2883 = vmatprep.subr.mxu0 0.0
  %2884 = vmatpush1.msra.mxu0 %v2092
  %2885 = vmatprep.subr.mxu0 0.0
  %2886 = vmatpush1.msra.mxu0 %v2095
  %2887 = vmatprep.subr.mxu0 0.0
  %2888 = vmatpush1.msra.mxu0 %v2098
  %2889 = vmatprep.subr.mxu0 0.0
  %2890 = vmatpush1.msra.mxu0 %v2101
  %2891 = vmatprep.subr.mxu0 0.0
  %2892 = vmatpush1.msra.mxu0 %v2104
  %2893 = vmatprep.subr.mxu0 0.0
  %2894 = vmatpush1.msra.mxu0 %v2107
  %2895 = vmatprep.subr.mxu0 0.0
  %2896 = vmatpush1.msra.mxu0 %v2110
  %2897 = vmatprep.subr.mxu0 0.0
  %2898 = vmatpush1.msra.mxu0 %v2113
  %2899 = vmatprep.subr.mxu0 0.0
  %2900 = vmatpush1.msra.mxu0 %v2116
  %2901 = vmatprep.subr.mxu0 0.0
  %2902 = vmatpush1.msra.mxu0 %v2119
  %2903 = vmatprep.subr.mxu0 0.0
  %2904 = vmatpush1.msra.mxu0 %v2122
  %2905 = vmatprep.subr.mxu0 0.0
  %2906 = vmatpush1.msra.mxu0 %v2125
  %2907 = vmatprep.subr.mxu0 0.0
  %2908 = vmatpush1.msra.mxu0 %v2128
  %2909 = vmatprep.subr.mxu0 0.0
  %2910 = vmatpush1.msra.mxu0 %v2131
  %2911 = vmatprep.subr.mxu0 0.0
  %2912 = vmatpush1.msra.mxu0 %v2134
  %2913 = vmatprep.subr.mxu0 0.0
  %2914 = vmatpush1.msra.mxu0 %v2137
  %2915 = vmatprep.subr.mxu0 0.0
  %2916 = vmatpush1.msra.mxu0 0.0
  %2917 = vmatprep.subr.mxu0 0.0
  %2918 = vmatpush1.msra.mxu0 0.0
  %2919 = vmatprep.subr.mxu0 0.0
  %2920 = vmatpush1.msra.mxu0 0.0
  %2921 = vmatprep.subr.mxu0 0.0
  %2922 = vmatpush1.msra.mxu0 0.0
  %2923 = vmatprep.subr.mxu0 0.0
  %2924 = vmatpush1.msra.mxu0 0.0
  %2925 = vmatprep.subr.mxu0 0.0
  %2926 = vmatpush1.msra.mxu0 0.0
  %2927 = vmatprep.subr.mxu0 0.0
  %2928 = vmatpush1.msra.mxu0 0.0
  %2929 = vmatprep.subr.mxu0 0.0
  %2930 = vmatpush1.msra.mxu0 0.0
  %2931 = vmatprep.subr.mxu0 0.0
  %2932 = vmatpush1.msra.mxu0 0.0
  %2933 = vmatprep.subr.mxu0 0.0
  %2934 = vmatpush1.msra.mxu0 0.0
  %2935 = vmatprep.subr.mxu0 0.0
  %2936 = vmatpush1.msra.mxu0 0.0
  %2937 = vmatprep.subr.mxu0 0.0
  %2938 = vmatpush1.msra.mxu0 0.0
  %2939 = vmatprep.subr.mxu0 0.0
  %2940 = vmatpush1.msra.mxu0 0.0
  %2941 = vmatprep.subr.mxu0 0.0
  %2942 = vmatpush1.msra.mxu0 0.0
  %2943 = vmatprep.subr.mxu0 0.0
  %2944 = vmatpush1.msra.mxu0 0.0
  %2945 = vmatprep.subr.mxu0 0.0
  %2946 = vmatpush1.msra.mxu0 0.0
  %2947 = vmatprep.mubr.f32.mxu0 0.0
  %2948 = vmatmul.mubr.f32.gmra.mrb[0].mxu0 %v2808
  %v2949 = vpop.f32.mrb[0].mxu0
  %v2950 = vadd.f32 0.0, %v2949
  %v2951 = vpop.f32.mrb[0].mxu0
  %2952 = vdwg.mxu0
  %v2953 = vadd.f32 %v2809, %v2879
  %v2954 = vxor.u32 %v2953, 2147483648
  %v2955 = vmul.f32 %v2954, 1.442695
  %v2956 = vpow.pop %v2955
  %v2957 = vadd.f32 %v2956, 1.0
  %v2958 = vrcp.pop %v2957
  %v2959 = vmul.f32 1.0, %v2958
  %v2960 = vadd.f32 %v2810, %v2881
  %v2961 = vxor.u32 %v2960, 2147483648
  %v2962 = vmul.f32 %v2961, 1.442695
  %v2963 = vpow.pop %v2962
  %v2964 = vadd.f32 %v2963, 1.0
  %v2965 = vrcp.pop %v2964
  %v2966 = vmul.f32 1.0, %v2965
  %v2967 = vadd.f32 %v2950, %v2301
  %v2968 = vmul.f32 %v2959, %v2967
  %v2969 = vadd.f32 %v2811, %v2968
  %v2970 = vtanh.pop %v2969
  %v2971 = vsub.f32 1.0, %v2966
  %v2972 = vmul.f32 %v2971, %v2970
  %v2973 = vmul.f32 %v2966, %v2808
  %v2974 = vadd.f32 %v2972, %v2973
  %v2975 = vld [vmem:[%s1264] sm:$0xff]
  %v2976 = vld [vmem:[%s1264 + $0x8] sm:$0xff]
  %v2977 = vld [vmem:[%s1264 + $0x10] sm:$0xff]
  %2978 = vmatprep.subr.mxu0 %v2091
  %2979 = vmatpush1.msra.mxu0 %v2090
  %2980 = vmatprep.subr.mxu0 %v2094
  %2981 = vmatpush1.msra.mxu0 %v2093
  %2982 = vmatprep.subr.mxu0 %v2097
  %2983 = vmatpush1.msra.mxu0 %v2096
  %2984 = vmatprep.subr.mxu0 %v2100
  %2985 = vmatpush1.msra.mxu0 %v2099
  %2986 = vmatprep.subr.mxu0 %v2103
  %2987 = vmatpush1.msra.mxu0 %v2102
  %2988 = vmatprep.subr.mxu0 %v2106
  %2989 = vmatpush1.msra.mxu0 %v2105
  %2990 = vmatprep.subr.mxu0 %v2109
  %2991 = vmatpush1.msra.mxu0 %v2108
  %2992 = vmatprep.subr.mxu0 %v2112
  %2993 = vmatpush1.msra.mxu0 %v2111
  %2994 = vmatprep.subr.mxu0 %v2115
  %2995 = vmatpush1.msra.mxu0 %v2114
  %2996 = vmatprep.subr.mxu0 %v2118
  %2997 = vmatpush1.msra.mxu0 %v2117
  %2998 = vmatprep.subr.mxu0 %v2121
  %2999 = vmatpush1.msra.mxu0 %v2120
  %3000 = vmatprep.subr.mxu0 %v2124
  %3001 = vmatpush1.msra.mxu0 %v2123
  %3002 = vmatprep.subr.mxu0 %v2127
  %3003 = vmatpush1.msra.mxu0 %v2126
  %3004 = vmatprep.subr.mxu0 %v2130
  %3005 = vmatpush1.msra.mxu0 %v2129
  %3006 = vmatprep.subr.mxu0 %v2133
  %3007 = vmatpush1.msra.mxu0 %v2132
  %3008 = vmatprep.subr.mxu0 %v2136
  %3009 = vmatpush1.msra.mxu0 %v2135
  %3010 = vmatprep.subr.mxu0 0.0
  %3011 = vmatpush1.msra.mxu0 0.0
  %3012 = vmatprep.subr.mxu0 0.0
  %3013 = vmatpush1.msra.mxu0 0.0
  %3014 = vmatprep.subr.mxu0 0.0
  %3015 = vmatpush1.msra.mxu0 0.0
  %3016 = vmatprep.subr.mxu0 0.0
  %3017 = vmatpush1.msra.mxu0 0.0
  %3018 = vmatprep.subr.mxu0 0.0
  %3019 = vmatpush1.msra.mxu0 0.0
  %3020 = vmatprep.subr.mxu0 0.0
  %3021 = vmatpush1.msra.mxu0 0.0
  %3022 = vmatprep.subr.mxu0 0.0
  %3023 = vmatpush1.msra.mxu0 0.0
  %3024 = vmatprep.subr.mxu0 0.0
  %3025 = vmatpush1.msra.mxu0 0.0
  %3026 = vmatprep.subr.mxu0 0.0
  %3027 = vmatpush1.msra.mxu0 0.0
  %3028 = vmatprep.subr.mxu0 0.0
  %3029 = vmatpush1.msra.mxu0 0.0
  %3030 = vmatprep.subr.mxu0 0.0
  %3031 = vmatpush1.msra.mxu0 0.0
  %3032 = vmatprep.subr.mxu0 0.0
  %3033 = vmatpush1.msra.mxu0 0.0
  %3034 = vmatprep.subr.mxu0 0.0
  %3035 = vmatpush1.msra.mxu0 0.0
  %3036 = vmatprep.subr.mxu0 0.0
  %3037 = vmatpush1.msra.mxu0 0.0
  %3038 = vmatprep.subr.mxu0 0.0
  %3039 = vmatpush1.msra.mxu0 0.0
  %3040 = vmatprep.subr.mxu0 0.0
  %3041 = vmatpush1.msra.mxu0 0.0
  %3042 = vmatprep.mubr.f32.mxu0 0.0
  %3043 = vmatmul.mubr.f32.gmra.mrb[0].mxu0 %v2974
  %v3044 = vpop.f32.mrb[0].mxu0
  %v3045 = vadd.f32 0.0, %v3044
  %v3046 = vpop.f32.mrb[0].mxu0
  %v3047 = vadd.f32 0.0, %v3046
  %3048 = vdwg.mxu0
  %3049 = vmatprep.subr.mxu0 0.0
  %3050 = vmatpush1.msra.mxu0 %v2092
  %3051 = vmatprep.subr.mxu0 0.0
  %3052 = vmatpush1.msra.mxu0 %v2095
  %3053 = vmatprep.subr.mxu0 0.0
  %3054 = vmatpush1.msra.mxu0 %v2098
  %3055 = vmatprep.subr.mxu0 0.0
  %3056 = vmatpush1.msra.mxu0 %v2101
  %3057 = vmatprep.subr.mxu0 0.0
  %3058 = vmatpush1.msra.mxu0 %v2104
  %3059 = vmatprep.subr.mxu0 0.0
  %3060 = vmatpush1.msra.mxu0 %v2107
  %3061 = vmatprep.subr.mxu0 0.0
  %3062 = vmatpush1.msra.mxu0 %v2110
  %3063 = vmatprep.subr.mxu0 0.0
  %3064 = vmatpush1.msra.mxu0 %v2113
  %3065 = vmatprep.subr.mxu0 0.0
  %3066 = vmatpush1.msra.mxu0 %v2116
  %3067 = vmatprep.subr.mxu0 0.0
  %3068 = vmatpush1.msra.mxu0 %v2119
  %3069 = vmatprep.subr.mxu0 0.0
  %3070 = vmatpush1.msra.mxu0 %v2122
  %3071 = vmatprep.subr.mxu0 0.0
  %3072 = vmatpush1.msra.mxu0 %v2125
  %3073 = vmatprep.subr.mxu0 0.0
  %3074 = vmatpush1.msra.mxu0 %v2128
  %3075 = vmatprep.subr.mxu0 0.0
  %3076 = vmatpush1.msra.mxu0 %v2131
  %3077 = vmatprep.subr.mxu0 0.0
  %3078 = vmatpush1.msra.mxu0 %v2134
  %3079 = vmatprep.subr.mxu0 0.0
  %3080 = vmatpush1.msra.mxu0 %v2137
  %3081 = vmatprep.subr.mxu0 0.0
  %3082 = vmatpush1.msra.mxu0 0.0
  %3083 = vmatprep.subr.mxu0 0.0
  %3084 = vmatpush1.msra.mxu0 0.0
  %3085 = vmatprep.subr.mxu0 0.0
  %3086 = vmatpush1.msra.mxu0 0.0
  %3087 = vmatprep.subr.mxu0 0.0
  %3088 = vmatpush1.msra.mxu0 0.0
  %3089 = vmatprep.subr.mxu0 0.0
  %3090 = vmatpush1.msra.mxu0 0.0
  %3091 = vmatprep.subr.mxu0 0.0
  %3092 = vmatpush1.msra.mxu0 0.0
  %3093 = vmatprep.subr.mxu0 0.0
  %3094 = vmatpush1.msra.mxu0 0.0
  %3095 = vmatprep.subr.mxu0 0.0
  %3096 = vmatpush1.msra.mxu0 0.0
  %3097 = vmatprep.subr.mxu0 0.0
  %3098 = vmatpush1.msra.mxu0 0.0
  %3099 = vmatprep.subr.mxu0 0.0
  %3100 = vmatpush1.msra.mxu0 0.0
  %3101 = vmatprep.subr.mxu0 0.0
  %3102 = vmatpush1.msra.mxu0 0.0
  %3103 = vmatprep.subr.mxu0 0.0
  %3104 = vmatpush1.msra.mxu0 0.0
  %3105 = vmatprep.subr.mxu0 0.0
  %3106 = vmatpush1.msra.mxu0 0.0
  %3107 = vmatprep.subr.mxu0 0.0
  %3108 = vmatpush1.msra.mxu0 0.0
  %3109 = vmatprep.subr.mxu0 0.0
  %3110 = vmatpush1.msra.mxu0 0.0
  %3111 = vmatprep.subr.mxu0 0.0
  %3112 = vmatpush1.msra.mxu0 0.0
  %3113 = vmatprep.mubr.f32.mxu0 0.0
  %3114 = vmatmul.mubr.f32.gmra.mrb[0].mxu0 %v2974
  %v3115 = vpop.f32.mrb[0].mxu0
  %v3116 = vadd.f32 0.0, %v3115
  %v3117 = vpop.f32.mrb[0].mxu0
  %3118 = vdwg.mxu0
  %v3119 = vadd.f32 %v2975, %v3045
  %v3120 = vxor.u32 %v3119, 2147483648
  %v3121 = vmul.f32 %v3120, 1.442695
  %v3122 = vpow.pop %v3121
  %v3123 = vadd.f32 %v3122, 1.0
  %v3124 = vrcp.pop %v3123
  %v3125 = vmul.f32 1.0, %v3124
  %v3126 = vadd.f32 %v2976, %v3047
  %v3127 = vxor.u32 %v3126, 2147483648
  %v3128 = vmul.f32 %v3127, 1.442695
  %v3129 = vpow.pop %v3128
  %v3130 = vadd.f32 %v3129, 1.0
  %v3131 = vrcp.pop %v3130
  %v3132 = vmul.f32 1.0, %v3131
  %v3133 = vadd.f32 %v3116, %v2301
  %v3134 = vmul.f32 %v3125, %v3133
  %v3135 = vadd.f32 %v2977, %v3134
  %v3136 = vtanh.pop %v3135
  %v3137 = vsub.f32 1.0, %v3132
  %v3138 = vmul.f32 %v3137, %v3136
  %v3139 = vmul.f32 %v3132, %v2974
  %v3140 = vadd.f32 %v3138, %v3139
  %v3141 = vld [vmem:[%s1435] sm:$0xff]
  %v3142 = vld [vmem:[%s1435 + $0x8] sm:$0xff]
  %v3143 = vld [vmem:[%s1435 + $0x10] sm:$0xff]
  %3144 = vmatprep.subr.mxu0 %v2091
  %3145 = vmatpush1.msra.mxu0 %v2090
  %3146 = vmatprep.subr.mxu0 %v2094
  %3147 = vmatpush1.msra.mxu0 %v2093
  %3148 = vmatprep.subr.mxu0 %v2097
  %3149 = vmatpush1.msra.mxu0 %v2096
  %3150 = vmatprep.subr.mxu0 %v2100
  %3151 = vmatpush1.msra.mxu0 %v2099
  %3152 = vmatprep.subr.mxu0 %v2103
  %3153 = vmatpush1.msra.mxu0 %v2102
  %3154 = vmatprep.subr.mxu0 %v2106
  %3155 = vmatpush1.msra.mxu0 %v2105
  %3156 = vmatprep.subr.mxu0 %v2109
  %3157 = vmatpush1.msra.mxu0 %v2108
  %3158 = vmatprep.subr.mxu0 %v2112
  %3159 = vmatpush1.msra.mxu0 %v2111
  %3160 = vmatprep.subr.mxu0 %v2115
  %3161 = vmatpush1.msra.mxu0 %v2114
  %3162 = vmatprep.subr.mxu0 %v2118
  %3163 = vmatpush1.msra.mxu0 %v2117
  %3164 = vmatprep.subr.mxu0 %v2121
  %3165 = vmatpush1.msra.mxu0 %v2120
  %3166 = vmatprep.subr.mxu0 %v2124
  %3167 = vmatpush1.msra.mxu0 %v2123
  %3168 = vmatprep.subr.mxu0 %v2127
  %3169 = vmatpush1.msra.mxu0 %v2126
  %3170 = vmatprep.subr.mxu0 %v2130
  %3171 = vmatpush1.msra.mxu0 %v2129
  %3172 = vmatprep.subr.mxu0 %v2133
  %3173 = vmatpush1.msra.mxu0 %v2132
  %3174 = vmatprep.subr.mxu0 %v2136
  %3175 = vmatpush1.msra.mxu0 %v2135
  %3176 = vmatprep.subr.mxu0 0.0
  %3177 = vmatpush1.msra.mxu0 0.0
  %3178 = vmatprep.subr.mxu0 0.0
  %3179 = vmatpush1.msra.mxu0 0.0
  %3180 = vmatprep.subr.mxu0 0.0
  %3181 = vmatpush1.msra.mxu0 0.0
  %3182 = vmatprep.subr.mxu0 0.0
  %3183 = vmatpush1.msra.mxu0 0.0
  %3184 = vmatprep.subr.mxu0 0.0
  %3185 = vmatpush1.msra.mxu0 0.0
  %3186 = vmatprep.subr.mxu0 0.0
  %3187 = vmatpush1.msra.mxu0 0.0
  %3188 = vmatprep.subr.mxu0 0.0
  %3189 = vmatpush1.msra.mxu0 0.0
  %3190 = vmatprep.subr.mxu0 0.0
  %3191 = vmatpush1.msra.mxu0 0.0
  %3192 = vmatprep.subr.mxu0 0.0
  %3193 = vmatpush1.msra.mxu0 0.0
  %3194 = vmatprep.subr.mxu0 0.0
  %3195 = vmatpush1.msra.mxu0 0.0
  %3196 = vmatprep.subr.mxu0 0.0
  %3197 = vmatpush1.msra.mxu0 0.0
  %3198 = vmatprep.subr.mxu0 0.0
  %3199 = vmatpush1.msra.mxu0 0.0
  %3200 = vmatprep.subr.mxu0 0.0
  %3201 = vmatpush1.msra.mxu0 0.0
  %3202 = vmatprep.subr.mxu0 0.0
  %3203 = vmatpush1.msra.mxu0 0.0
  %3204 = vmatprep.subr.mxu0 0.0
  %3205 = vmatpush1.msra.mxu0 0.0
  %3206 = vmatprep.subr.mxu0 0.0
  %3207 = vmatpush1.msra.mxu0 0.0
  %3208 = vmatprep.mubr.f32.mxu0 0.0
  %3209 = vmatmul.mubr.f32.gmra.mrb[0].mxu0 %v3140
  %v3210 = vpop.f32.mrb[0].mxu0
  %v3211 = vadd.f32 0.0, %v3210
  %v3212 = vpop.f32.mrb[0].mxu0
  %v3213 = vadd.f32 0.0, %v3212
  %3214 = vdwg.mxu0
  %3215 = vmatprep.subr.mxu0 0.0
  %3216 = vmatpush1.msra.mxu0 %v2092
  %3217 = vmatprep.subr.mxu0 0.0
  %3218 = vmatpush1.msra.mxu0 %v2095
  %3219 = vmatprep.subr.mxu0 0.0
  %3220 = vmatpush1.msra.mxu0 %v2098
  %3221 = vmatprep.subr.mxu0 0.0
  %3222 = vmatpush1.msra.mxu0 %v2101
  %3223 = vmatprep.subr.mxu0 0.0
  %3224 = vmatpush1.msra.mxu0 %v2104
  %3225 = vmatprep.subr.mxu0 0.0
  %3226 = vmatpush1.msra.mxu0 %v2107
  %3227 = vmatprep.subr.mxu0 0.0
  %3228 = vmatpush1.msra.mxu0 %v2110
  %3229 = vmatprep.subr.mxu0 0.0
  %3230 = vmatpush1.msra.mxu0 %v2113
  %3231 = vmatprep.subr.mxu0 0.0
  %3232 = vmatpush1.msra.mxu0 %v2116
  %3233 = vmatprep.subr.mxu0 0.0
  %3234 = vmatpush1.msra.mxu0 %v2119
  %3235 = vmatprep.subr.mxu0 0.0
  %3236 = vmatpush1.msra.mxu0 %v2122
  %3237 = vmatprep.subr.mxu0 0.0
  %3238 = vmatpush1.msra.mxu0 %v2125
  %3239 = vmatprep.subr.mxu0 0.0
  %3240 = vmatpush1.msra.mxu0 %v2128
  %3241 = vmatprep.subr.mxu0 0.0
  %3242 = vmatpush1.msra.mxu0 %v2131
  %3243 = vmatprep.subr.mxu0 0.0
  %3244 = vmatpush1.msra.mxu0 %v2134
  %3245 = vmatprep.subr.mxu0 0.0
  %3246 = vmatpush1.msra.mxu0 %v2137
  %3247 = vmatprep.subr.mxu0 0.0
  %3248 = vmatpush1.msra.mxu0 0.0
  %3249 = vmatprep.subr.mxu0 0.0
  %3250 = vmatpush1.msra.mxu0 0.0
  %3251 = vmatprep.subr.mxu0 0.0
  %3252 = vmatpush1.msra.mxu0 0.0
  %3253 = vmatprep.subr.mxu0 0.0
  %3254 = vmatpush1.msra.mxu0 0.0
  %3255 = vmatprep.subr.mxu0 0.0
  %3256 = vmatpush1.msra.mxu0 0.0
  %3257 = vmatprep.subr.mxu0 0.0
  %3258 = vmatpush1.msra.mxu0 0.0
  %3259 = vmatprep.subr.mxu0 0.0
  %3260 = vmatpush1.msra.mxu0 0.0
  %3261 = vmatprep.subr.mxu0 0.0
  %3262 = vmatpush1.msra.mxu0 0.0
  %3263 = vmatprep.subr.mxu0 0.0
  %3264 = vmatpush1.msra.mxu0 0.0
  %3265 = vmatprep.subr.mxu0 0.0
  %3266 = vmatpush1.msra.mxu0 0.0
  %3267 = vmatprep.subr.mxu0 0.0
  %3268 = vmatpush1.msra.mxu0 0.0
  %3269 = vmatprep.subr.mxu0 0.0
  %3270 = vmatpush1.msra.mxu0 0.0
  %3271 = vmatprep.subr.mxu0 0.0
  %3272 = vmatpush1.msra.mxu0 0.0
  %3273 = vmatprep.subr.mxu0 0.0
  %3274 = vmatpush1.msra.mxu0 0.0
  %3275 = vmatprep.subr.mxu0 0.0
  %3276 = vmatpush1.msra.mxu0 0.0
  %3277 = vmatprep.subr.mxu0 0.0
  %3278 = vmatpush1.msra.mxu0 0.0
  %3279 = vmatprep.mubr.f32.mxu0 0.0
  %3280 = vmatmul.mubr.f32.gmra.mrb[0].mxu0 %v3140
  %v3281 = vpop.f32.mrb[0].mxu0
  %v3282 = vadd.f32 0.0, %v3281
  %v3283 = vpop.f32.mrb[0].mxu0
  %3284 = vdwg.mxu0
  %v3285 = vadd.f32 %v3141, %v3211
  %v3286 = vxor.u32 %v3285, 2147483648
  %v3287 = vmul.f32 %v3286, 1.442695
  %v3288 = vpow.pop %v3287
  %v3289 = vadd.f32 %v3288, 1.0
  %v3290 = vrcp.pop %v3289
  %v3291 = vmul.f32 1.0, %v3290
  %v3292 = vadd.f32 %v3142, %v3213
  %v3293 = vxor.u32 %v3292, 2147483648
  %v3294 = vmul.f32 %v3293, 1.442695
  %v3295 = vpow.pop %v3294
  %v3296 = vadd.f32 %v3295, 1.0
  %v3297 = vrcp.pop %v3296
  %v3298 = vmul.f32 1.0, %v3297
  %v3299 = vadd.f32 %v3282, %v2301
  %v3300 = vmul.f32 %v3291, %v3299
  %v3301 = vadd.f32 %v3143, %v3300
  %v3302 = vtanh.pop %v3301
  %v3303 = vsub.f32 1.0, %v3298
  %v3304 = vmul.f32 %v3303, %v3302
  %v3305 = vmul.f32 %v3298, %v3140
  %v3306 = vadd.f32 %v3304, %v3305
  %v3307 = vld [vmem:[%s1606] sm:$0xff]
  %v3308 = vld [vmem:[%s1606 + $0x8] sm:$0xff]
  %v3309 = vld [vmem:[%s1606 + $0x10] sm:$0xff]
  %3310 = vmatprep.subr.mxu0 %v2091
  %3311 = vmatpush1.msra.mxu0 %v2090
  %3312 = vmatprep.subr.mxu0 %v2094
  %3313 = vmatpush1.msra.mxu0 %v2093
  %3314 = vmatprep.subr.mxu0 %v2097
  %3315 = vmatpush1.msra.mxu0 %v2096
  %3316 = vmatprep.subr.mxu0 %v2100
  %3317 = vmatpush1.msra.mxu0 %v2099
  %3318 = vmatprep.subr.mxu0 %v2103
  %3319 = vmatpush1.msra.mxu0 %v2102
  %3320 = vmatprep.subr.mxu0 %v2106
  %3321 = vmatpush1.msra.mxu0 %v2105
  %3322 = vmatprep.subr.mxu0 %v2109
  %3323 = vmatpush1.msra.mxu0 %v2108
  %3324 = vmatprep.subr.mxu0 %v2112
  %3325 = vmatpush1.msra.mxu0 %v2111
  %3326 = vmatprep.subr.mxu0 %v2115
  %3327 = vmatpush1.msra.mxu0 %v2114
  %3328 = vmatprep.subr.mxu0 %v2118
  %3329 = vmatpush1.msra.mxu0 %v2117
  %3330 = vmatprep.subr.mxu0 %v2121
  %3331 = vmatpush1.msra.mxu0 %v2120
  %3332 = vmatprep.subr.mxu0 %v2124
  %3333 = vmatpush1.msra.mxu0 %v2123
  %3334 = vmatprep.subr.mxu0 %v2127
  %3335 = vmatpush1.msra.mxu0 %v2126
  %3336 = vmatprep.subr.mxu0 %v2130
  %3337 = vmatpush1.msra.mxu0 %v2129
  %3338 = vmatprep.subr.mxu0 %v2133
  %3339 = vmatpush1.msra.mxu0 %v2132
  %3340 = vmatprep.subr.mxu0 %v2136
  %3341 = vmatpush1.msra.mxu0 %v2135
  %3342 = vmatprep.subr.mxu0 0.0
  %3343 = vmatpush1.msra.mxu0 0.0
  %3344 = vmatprep.subr.mxu0 0.0
  %3345 = vmatpush1.msra.mxu0 0.0
  %3346 = vmatprep.subr.mxu0 0.0
  %3347 = vmatpush1.msra.mxu0 0.0
  %3348 = vmatprep.subr.mxu0 0.0
  %3349 = vmatpush1.msra.mxu0 0.0
  %3350 = vmatprep.subr.mxu0 0.0
  %3351 = vmatpush1.msra.mxu0 0.0
  %3352 = vmatprep.subr.mxu0 0.0
  %3353 = vmatpush1.msra.mxu0 0.0
  %3354 = vmatprep.subr.mxu0 0.0
  %3355 = vmatpush1.msra.mxu0 0.0
  %3356 = vmatprep.subr.mxu0 0.0
  %3357 = vmatpush1.msra.mxu0 0.0
  %3358 = vmatprep.subr.mxu0 0.0
  %3359 = vmatpush1.msra.mxu0 0.0
  %3360 = vmatprep.subr.mxu0 0.0
  %3361 = vmatpush1.msra.mxu0 0.0
  %3362 = vmatprep.subr.mxu0 0.0
  %3363 = vmatpush1.msra.mxu0 0.0
  %3364 = vmatprep.subr.mxu0 0.0
  %3365 = vmatpush1.msra.mxu0 0.0
  %3366 = vmatprep.subr.mxu0 0.0
  %3367 = vmatpush1.msra.mxu0 0.0
  %3368 = vmatprep.subr.mxu0 0.0
  %3369 = vmatpush1.msra.mxu0 0.0
  %3370 = vmatprep.subr.mxu0 0.0
  %3371 = vmatpush1.msra.mxu0 0.0
  %3372 = vmatprep.subr.mxu0 0.0
  %3373 = vmatpush1.msra.mxu0 0.0
  %3374 = vmatprep.mubr.f32.mxu0 0.0
  %3375 = vmatmul.mubr.f32.gmra.mrb[0].mxu0 %v3306
  %v3376 = vpop.f32.mrb[0].mxu0
  %v3377 = vadd.f32 0.0, %v3376
  %v3378 = vpop.f32.mrb[0].mxu0
  %v3379 = vadd.f32 0.0, %v3378
  %3380 = vdwg.mxu0
  %3381 = vmatprep.subr.mxu0 0.0
  %3382 = vmatpush1.msra.mxu0 %v2092
  %3383 = vmatprep.subr.mxu0 0.0
  %3384 = vmatpush1.msra.mxu0 %v2095
  %3385 = vmatprep.subr.mxu0 0.0
  %3386 = vmatpush1.msra.mxu0 %v2098
  %3387 = vmatprep.subr.mxu0 0.0
  %3388 = vmatpush1.msra.mxu0 %v2101
  %3389 = vmatprep.subr.mxu0 0.0
  %3390 = vmatpush1.msra.mxu0 %v2104
  %3391 = vmatprep.subr.mxu0 0.0
  %3392 = vmatpush1.msra.mxu0 %v2107
  %3393 = vmatprep.subr.mxu0 0.0
  %3394 = vmatpush1.msra.mxu0 %v2110
  %3395 = vmatprep.subr.mxu0 0.0
  %3396 = vmatpush1.msra.mxu0 %v2113
  %3397 = vmatprep.subr.mxu0 0.0
  %3398 = vmatpush1.msra.mxu0 %v2116
  %3399 = vmatprep.subr.mxu0 0.0
  %3400 = vmatpush1.msra.mxu0 %v2119
  %3401 = vmatprep.subr.mxu0 0.0
  %3402 = vmatpush1.msra.mxu0 %v2122
  %3403 = vmatprep.subr.mxu0 0.0
  %3404 = vmatpush1.msra.mxu0 %v2125
  %3405 = vmatprep.subr.mxu0 0.0
  %3406 = vmatpush1.msra.mxu0 %v2128
  %3407 = vmatprep.subr.mxu0 0.0
  %3408 = vmatpush1.msra.mxu0 %v2131
  %3409 = vmatprep.subr.mxu0 0.0
  %3410 = vmatpush1.msra.mxu0 %v2134
  %3411 = vmatprep.subr.mxu0 0.0
  %3412 = vmatpush1.msra.mxu0 %v2137
  %3413 = vmatprep.subr.mxu0 0.0
  %3414 = vmatpush1.msra.mxu0 0.0
  %3415 = vmatprep.subr.mxu0 0.0
  %3416 = vmatpush1.msra.mxu0 0.0
  %3417 = vmatprep.subr.mxu0 0.0
  %3418 = vmatpush1.msra.mxu0 0.0
  %3419 = vmatprep.subr.mxu0 0.0
  %3420 = vmatpush1.msra.mxu0 0.0
  %3421 = vmatprep.subr.mxu0 0.0
  %3422 = vmatpush1.msra.mxu0 0.0
  %3423 = vmatprep.subr.mxu0 0.0
  %3424 = vmatpush1.msra.mxu0 0.0
  %3425 = vmatprep.subr.mxu0 0.0
  %3426 = vmatpush1.msra.mxu0 0.0
  %3427 = vmatprep.subr.mxu0 0.0
  %3428 = vmatpush1.msra.mxu0 0.0
  %3429 = vmatprep.subr.mxu0 0.0
  %3430 = vmatpush1.msra.mxu0 0.0
  %3431 = vmatprep.subr.mxu0 0.0
  %3432 = vmatpush1.msra.mxu0 0.0
  %3433 = vmatprep.subr.mxu0 0.0
  %3434 = vmatpush1.msra.mxu0 0.0
  %3435 = vmatprep.subr.mxu0 0.0
  %3436 = vmatpush1.msra.mxu0 0.0
  %3437 = vmatprep.subr.mxu0 0.0
  %3438 = vmatpush1.msra.mxu0 0.0
  %3439 = vmatprep.subr.mxu0 0.0
  %3440 = vmatpush1.msra.mxu0 0.0
  %3441 = vmatprep.subr.mxu0 0.0
  %3442 = vmatpush1.msra.mxu0 0.0
  %3443 = vmatprep.subr.mxu0 0.0
  %3444 = vmatpush1.msra.mxu0 0.0
  %3445 = vmatprep.mubr.f32.mxu0 0.0
  %3446 = vmatmul.mubr.f32.gmra.mrb[0].mxu0 %v3306
  %v3447 = vpop.f32.mrb[0].mxu0
  %v3448 = vadd.f32 0.0, %v3447
  %v3449 = vpop.f32.mrb[0].mxu0
  %3450 = vdwg.mxu0
  %v3451 = vadd.f32 %v3307, %v3377
  %v3452 = vxor.u32 %v3451, 2147483648
  %v3453 = vmul.f32 %v3452, 1.442695
  %v3454 = vpow.pop %v3453
  %v3455 = vadd.f32 %v3454, 1.0
  %v3456 = vrcp.pop %v3455
  %v3457 = vmul.f32 1.0, %v3456
  %v3458 = vadd.f32 %v3308, %v3379
  %v3459 = vxor.u32 %v3458, 2147483648
  %v3460 = vmul.f32 %v3459, 1.442695
  %v3461 = vpow.pop %v3460
  %v3462 = vadd.f32 %v3461, 1.0
  %v3463 = vrcp.pop %v3462
  %v3464 = vmul.f32 1.0, %v3463
  %v3465 = vadd.f32 %v3448, %v2301
  %v3466 = vmul.f32 %v3457, %v3465
  %v3467 = vadd.f32 %v3309, %v3466
  %v3468 = vtanh.pop %v3467
  %v3469 = vsub.f32 1.0, %v3464
  %v3470 = vmul.f32 %v3469, %v3468
  %v3471 = vmul.f32 %v3464, %v3306
  %v3472 = vadd.f32 %v3470, %v3471
  %v3473 = vld [vmem:[%s9] sm:$0xff]
  %v3474 = vld [vmem:[%s9 + $0x8] sm:$0xff]
  %v3475 = vld [vmem:[%s9 + $0x10] sm:$0xff]
  %v3476 = vld [vmem:[%s9 + $0x18] sm:$0xff]
  %v3477 = vld [vmem:[%s9 + $0x20] sm:$0xff]
  %v3478 = vld [vmem:[%s9 + $0x28] sm:$0xff]
  %v3479 = vld [vmem:[%s9 + $0x30] sm:$0xff]
  %v3480 = vld [vmem:[%s9 + $0x38] sm:$0xff]
  %v3481 = vld [vmem:[%s9 + $0x40] sm:$0xff]
  %v3482 = vld [vmem:[%s9 + $0x48] sm:$0xff]
  %v3483 = vld [vmem:[%s9 + $0x50] sm:$0xff]
  %v3484 = vld [vmem:[%s9 + $0x58] sm:$0xff]
  %v3485 = vld [vmem:[%s9 + $0x60] sm:$0xff]
  %v3486 = vld [vmem:[%s9 + $0x68] sm:$0xff]
  %v3487 = vld [vmem:[%s9 + $0x70] sm:$0xff]
  %v3488 = vld [vmem:[%s9 + $0x78] sm:$0xff]
  %v3489 = vld [vmem:[%s10] sm:$0x1]
  %v3491 = vlaneseq
  %v3492 = vshrl.u32 %v3491, 7
  %v3493 = vsub.s32 0, %v3492
  %v3494 = vrot.slane %v3489, %v3493
  %3496 = vmatprep.subr.mxu0 0.0
  %3497 = vmatpush1.msra.mxu0 %v3473
  %3498 = vmatprep.subr.mxu0 0.0
  %3499 = vmatpush1.msra.mxu0 %v3474
  %3500 = vmatprep.subr.mxu0 0.0
  %3501 = vmatpush1.msra.mxu0 %v3475
  %3502 = vmatprep.subr.mxu0 0.0
  %3503 = vmatpush1.msra.mxu0 %v3476
  %3504 = vmatprep.subr.mxu0 0.0
  %3505 = vmatpush1.msra.mxu0 %v3477
  %3506 = vmatprep.subr.mxu0 0.0
  %3507 = vmatpush1.msra.mxu0 %v3478
  %3508 = vmatprep.subr.mxu0 0.0
  %3509 = vmatpush1.msra.mxu0 %v3479
  %3510 = vmatprep.subr.mxu0 0.0
  %3511 = vmatpush1.msra.mxu0 %v3480
  %3512 = vmatprep.subr.mxu0 0.0
  %3513 = vmatpush1.msra.mxu0 %v3481
  %3514 = vmatprep.subr.mxu0 0.0
  %3515 = vmatpush1.msra.mxu0 %v3482
  %3516 = vmatprep.subr.mxu0 0.0
  %3517 = vmatpush1.msra.mxu0 %v3483
  %3518 = vmatprep.subr.mxu0 0.0
  %3519 = vmatpush1.msra.mxu0 %v3484
  %3520 = vmatprep.subr.mxu0 0.0
  %3521 = vmatpush1.msra.mxu0 %v3485
  %3522 = vmatprep.subr.mxu0 0.0
  %3523 = vmatpush1.msra.mxu0 %v3486
  %3524 = vmatprep.subr.mxu0 0.0
  %3525 = vmatpush1.msra.mxu0 %v3487
  %3526 = vmatprep.subr.mxu0 0.0
  %3527 = vmatpush1.msra.mxu0 %v3488
  %3528 = vmatprep.subr.mxu0 0.0
  %3529 = vmatpush1.msra.mxu0 0.0
  %3530 = vmatprep.subr.mxu0 0.0
  %3531 = vmatpush1.msra.mxu0 0.0
  %3532 = vmatprep.subr.mxu0 0.0
  %3533 = vmatpush1.msra.mxu0 0.0
  %3534 = vmatprep.subr.mxu0 0.0
  %3535 = vmatpush1.msra.mxu0 0.0
  %3536 = vmatprep.subr.mxu0 0.0
  %3537 = vmatpush1.msra.mxu0 0.0
  %3538 = vmatprep.subr.mxu0 0.0
  %3539 = vmatpush1.msra.mxu0 0.0
  %3540 = vmatprep.subr.mxu0 0.0
  %3541 = vmatpush1.msra.mxu0 0.0
  %3542 = vmatprep.subr.mxu0 0.0
  %3543 = vmatpush1.msra.mxu0 0.0
  %3544 = vmatprep.subr.mxu0 0.0
  %3545 = vmatpush1.msra.mxu0 0.0
  %3546 = vmatprep.subr.mxu0 0.0
  %3547 = vmatpush1.msra.mxu0 0.0
  %3548 = vmatprep.subr.mxu0 0.0
  %3549 = vmatpush1.msra.mxu0 0.0
  %3550 = vmatprep.subr.mxu0 0.0
  %3551 = vmatpush1.msra.mxu0 0.0
  %3552 = vmatprep.subr.mxu0 0.0
  %3553 = vmatpush1.msra.mxu0 0.0
  %3554 = vmatprep.subr.mxu0 0.0
  %3555 = vmatpush1.msra.mxu0 0.0
  %3556 = vmatprep.subr.mxu0 0.0
  %3557 = vmatpush1.msra.mxu0 0.0
  %3558 = vmatprep.subr.mxu0 0.0
  %3559 = vmatpush1.msra.mxu0 0.0
  %3560 = vmatprep.mubr.f32.mxu0 0.0
  %3561 = vmatmul.mubr.f32.gmra.mrb[0].mxu0 %v3472
  %v3562 = vpop.f32.mrb[0].mxu0
  %v3563 = vadd.f32 %v3494, %v3562
  %v3564 = vpop.f32.mrb[0].mxu0
  %3565 = vdwg.mxu0
  %3566 = vst [vmem:[%s11] sm:$0xff] %v3563
  // Predicated region
  $region46: #{gru_forward.1} parent=0 // pred_check
    _
  $region47: #{gru_forward.1} parent=0 // pred_check_branch
    %3568 = sbr.rel (0) target = $region49
  $region48: #{gru_forward.1} parent=0 // pred_region
    _
  $region49: #{gru_forward.1} parent=0 // pred_fallthru
    _
  // Predicated region
  $region50: #{gru_forward.1} parent=0 // pred_check
    _
  $region51: #{gru_forward.1} parent=0 // pred_check_branch
    %3570 = sbr.rel (0) target = $region53
  $region52: #{gru_forward.1} parent=0 // pred_region
    _
  $region53: #{gru_forward.1} parent=0 // pred_fallthru
    _

</llo_original>
